<compile_context>
chip_gen: v5e
topology: v5e:2x2
jax: 0.10.0
libtpu: 0.0.40
codegen_flags: <defaults>
</compile_context>

<pallas_src>
import functools

import jax
import jax.numpy as jnp
from jax import lax
from jax.experimental import pallas as pl
from jax.experimental.pallas import tpu as pltpu
import numpy as np


def _round_up(x, m):
    return (x + m - 1) // m * m


# ----------------------------------------------------------------------------
# Pallas kernel: T_BLK timesteps of one direction's LSTM recurrence.
#   grid = (direction, time_block); direction is "parallel", time "arbitrary".
# ----------------------------------------------------------------------------
def _lstm_block_kernel(xproj_ref, whh_ref, h0_ref, c0_ref, lens_ref,
                       hseq_ref, ht_ref, h_sc, c_sc, *, t_blk, hidden):
    tb = pl.program_id(1)

    @pl.when(tb == 0)
    def _():
        h_sc[...] = h0_ref[...]
        c_sc[...] = c0_ref[...]

    lens = lens_ref[...]                      # (Bp, 1) int32
    whh = whh_ref[...]                        # (Hp, 4*Hp) fused recurrent weights
    t0 = tb * t_blk

    h = h_sc[...]                             # (Bp, Hp)
    c = c_sc[...]                             # (Bp, Hp)

    # Fully-unrolled inner time block (same instructions as
    # lax.fori_loop(..., unroll=True)); static indices keep loads/stores simple
    # and give the scheduler the whole block to overlap MXU + elementwise tail.
    for k in range(t_blk):
        # one fused matmul per step: (Bp,Hp) @ (Hp,4Hp) + hoisted x-projection
        gates = xproj_ref[k] + jnp.dot(h, whh,
                                       preferred_element_type=jnp.float32)
        i_g = jax.nn.sigmoid(gates[:, 0 * hidden:1 * hidden])
        f_g = jax.nn.sigmoid(gates[:, 1 * hidden:2 * hidden])
        g_g = jnp.tanh(gates[:, 2 * hidden:3 * hidden])
        o_g = jax.nn.sigmoid(gates[:, 3 * hidden:4 * hidden])
        c_new = f_g * c + i_g * g_g
        h_new = o_g * jnp.tanh(c_new)
        # pack_padded_sequence semantics: freeze state once t >= length
        mask = (t0 + k) < lens                # (Bp, 1) bool
        h = jnp.where(mask, h_new, h)
        c = jnp.where(mask, c_new, c)
        hseq_ref[k] = h

    h_sc[...] = h
    c_sc[...] = c

    @pl.when(tb == pl.num_programs(1) - 1)
    def _():
        ht_ref[...] = h


def lstm_layer_pallas(xproj, whh, h0, c0, lens_col, *, t_blk):
    """Both directions of one LSTM layer in a single pallas_call.

    xproj    : (2, Lp, Bp, 4*Hp)  precomputed x @ W_ih + b, time-major
    whh      : (2, Hp, 4*Hp)      fused recurrent weights (gate order i,f,g,o)
    h0, c0   : (2, Bp, Hp)        initial states per direction
    lens_col : (Bp, 1) int32      sequence lengths
    returns  : hseq (2, Lp, Bp, Hp), h_T (2, Bp, Hp)
    """
    D, Lp, Bp, G = xproj.shape
    Hp = G // 4
    n_tb = Lp // t_blk

    kernel = functools.partial(_lstm_block_kernel, t_blk=t_blk, hidden=Hp)
    grid_spec = pltpu.PrefetchScalarGridSpec(
        num_scalar_prefetch=0,
        grid=(D, n_tb),
        in_specs=[
            pl.BlockSpec((None, t_blk, Bp, G), lambda d, t: (d, t, 0, 0)),  # xproj
            pl.BlockSpec((None, Hp, G), lambda d, t: (d, 0, 0)),            # W_hh
            pl.BlockSpec((None, Bp, Hp), lambda d, t: (d, 0, 0)),           # h0
            pl.BlockSpec((None, Bp, Hp), lambda d, t: (d, 0, 0)),           # c0
            pl.BlockSpec((Bp, 1), lambda d, t: (0, 0)),                     # lens
        ],
        out_specs=(
            pl.BlockSpec((None, t_blk, Bp, Hp), lambda d, t: (d, t, 0, 0)),  # hseq
            pl.BlockSpec((None, Bp, Hp), lambda d, t: (d, 0, 0)),            # h_T
        ),
        scratch_shapes=[
            pltpu.VMEM((Bp, Hp), jnp.float32),   # h carry
            pltpu.VMEM((Bp, Hp), jnp.float32),   # c carry
        ],
    )
    out_shapes = (
        jax.ShapeDtypeStruct((D, Lp, Bp, Hp), jnp.float32),
        jax.ShapeDtypeStruct((D, Bp, Hp), jnp.float32),
    )
    return pl.pallas_call(
        kernel,
        out_shape=out_shapes,
        grid_spec=grid_spec,
        compiler_params=pltpu.CompilerParams(
            # direction axis is independent (two TCs on v7x); time is a
            # sequential recurrence.
            dimension_semantics=("parallel", "arbitrary")),
    )(xproj, whh, h0, c0, lens_col)


# ----------------------------------------------------------------------------
# Encoder forward: embedding gather + fused/hoisted input projection (XLA) +
# per-layer Pallas recurrence handling both directions at once.
# ----------------------------------------------------------------------------
def encoder_forward(params, xx_pad, xx_rev_pad, x_lens, *, t_blk=8):
    emb = params["emb"]                         # (V, E)
    num_layers, H = params["h_0"].shape
    B, L = xx_pad.shape
    E = emb.shape[1]

    Bp = _round_up(B, 8)
    Hp = _round_up(H, 128)
    Lp = _round_up(L, t_blk)
    G = 4 * Hp

    # embedding gather (glue, XLA)
    x_emb = emb[xx_pad].astype(jnp.float32)           # (B, L, E)
    x_rev_emb = emb[xx_rev_pad].astype(jnp.float32)   # (B, L, E)

    # stack directions, pad batch -> Bp, length -> Lp
    x_d = jnp.stack([x_emb, x_rev_emb], axis=0)       # (2, B, L, E)
    x_d = jnp.pad(x_d, ((0, 0), (0, Bp - B), (0, Lp - L), (0, 0)))

    lens_col = jnp.pad(x_lens.astype(jnp.int32), (0, Bp - B)).reshape(Bp, 1)

    def fuse(w, in_pad):
        """Fuse the 4 gates and pad H->Hp (zero cols/rows keep padded lanes 0)."""
        wih, whh, b = w["wih"], w["whh"], w["b"]       # (4,in,H),(4,H,H),(4,1,H)
        in_dim = wih.shape[1]
        wih_p = jnp.pad(wih, ((0, 0), (0, in_pad - in_dim), (0, Hp - H)))
        wih_f = jnp.transpose(wih_p, (1, 0, 2)).reshape(in_pad, G)
        whh_p = jnp.pad(whh, ((0, 0), (0, Hp - H), (0, Hp - H)))
        whh_f = jnp.transpose(whh_p, (1, 0, 2)).reshape(Hp, G)
        b_p = jnp.pad(b, ((0, 0), (0, 0), (0, Hp - H)))
        b_f = jnp.transpose(b_p, (1, 0, 2)).reshape(1, G)
        return wih_f, whh_f, b_f

    def init_state(vec):                               # (H,) -> (Bp, Hp)
        return jnp.broadcast_to(jnp.pad(vec, (0, Hp - H)), (Bp, Hp))

    h_t_layers, h_t_rev_layers = [], []
    x_in = x_d                # layer 0 input: (2, Bp, Lp, E) batch-first
    in_pad = E
    for l in range(num_layers):
        wih_fw, whh_fw, b_fw = fuse(params["lstm1"][l], in_pad)
        wih_rv, whh_rv, b_rv = fuse(params["lstm2"][l], in_pad)
        wih_f = jnp.stack([wih_fw, wih_rv])    # (2, in_pad, G)
        whh_f = jnp.stack([whh_fw, whh_rv])    # (2, Hp, G)
        b_f = jnp.stack([b_fw, b_rv])          # (2, 1, G)

        # Hoisted input projection: one big fused matmul per direction,
        # produced directly time-major so the kernel streams (T_BLK, Bp, G)
        # slabs without an extra transpose pass.
        if l == 0:
            xproj = jnp.einsum('dble,deg->dlbg', x_in, wih_f)
        else:
            xproj = jnp.einsum('dlbh,dhg->dlbg', x_in, wih_f)
        xproj = xproj + b_f[:, None, :, :]     # (2, Lp, Bp, G)

        h0 = jnp.stack([init_state(params["h_0"][l]),
                        init_state(params["h_0_rev"][l])])
        c0 = jnp.stack([init_state(params["c_0"][l]),
                        init_state(params["c_0_rev"][l])])

        hseq, h_T = lstm_layer_pallas(xproj, whh_f, h0, c0, lens_col,
                                      t_blk=t_blk)
        h_t_layers.append(h_T[0, :B, :H])
        h_t_rev_layers.append(h_T[1, :B, :H])
        x_in = hseq                            # (2, Lp, Bp, Hp) feeds next layer
        in_pad = Hp

    return jnp.stack(h_t_layers), jnp.stack(h_t_rev_layers)


# ----------------------------------------------------------------------------
# Pure-JAX reference (lax.scan, unpadded / unfused weights) for correctness.
# ----------------------------------------------------------------------------
def _lstm_layer_ref(x_tm, wih, whh, b, h0, c0, lens):
    L = x_tm.shape[0]

    def step(carry, inp):
        h, c = carry
        x_t, t = inp
        gates = [x_t @ wih[g] + h @ whh[g] + b[g] for g in range(4)]
        i_g = jax.nn.sigmoid(gates[0])
        f_g = jax.nn.sigmoid(gates[1])
        g_g = jnp.tanh(gates[2])
        o_g = jax.nn.sigmoid(gates[3])
        c_new = f_g * c + i_g * g_g
        h_new = o_g * jnp.tanh(c_new)
        mask = (t < lens)[:, None]
        h = jnp.where(mask, h_new, h)
        c = jnp.where(mask, c_new, c)
        return (h, c), h

    (hT, cT), hseq = lax.scan(step, (h0, c0), (x_tm, jnp.arange(L)))
    return hseq, hT, cT


def encoder_forward_ref(params, xx_pad, xx_rev_pad, x_lens):
    emb_table = params["emb"]
    xx_emb = emb_table[xx_pad]
    xx_rev_emb = emb_table[xx_rev_pad]

    def run_direction(layer_weights, h0s, c0s, x_emb):
        B = x_emb.shape[0]
        H = h0s.shape[-1]
        x_tm = jnp.transpose(x_emb, (1, 0, 2)).astype(jnp.float32)
        h_ts = []
        for l, w in enumerate(layer_weights):
            h0 = jnp.broadcast_to(h0s[l], (B, H))
            c0 = jnp.broadcast_to(c0s[l], (B, H))
            hseq, h_t, _ = _lstm_layer_ref(
                x_tm, w["wih"], w["whh"], w["b"], h0, c0, x_lens)
            h_ts.append(h_t)
            x_tm = hseq
        return jnp.stack(h_ts)

    h_t = run_direction(params["lstm1"], params["h_0"], params["c_0"], xx_emb)
    h_t_rev = run_direction(params["lstm2"], params["h_0_rev"],
                            params["c_0_rev"], xx_rev_emb)
    return h_t, h_t_rev


# ----------------------------------------------------------------------------
# Deterministic parameter construction (matches module __init__ shapes).
# ----------------------------------------------------------------------------
def make_params(key, vocab, embed_dim, hidden, num_layers):
    keys = jax.random.split(key, 1 + 2 * num_layers * 4)
    k_emb, keys = keys[0], keys[1:]
    emb = jax.random.normal(k_emb, (vocab, embed_dim), jnp.float32) * 0.1

    kbound = 1.0 / np.sqrt(hidden)

    def make_lstm(keyset):
        layers = []
        for l in range(num_layers):
            in_dim = embed_dim if l == 0 else hidden
            k1, k2, k3, k4 = keyset[4 * l:4 * l + 4]
            wih = jax.random.uniform(k1, (4, in_dim, hidden), jnp.float32,
                                     -kbound, kbound)
            whh = jax.random.uniform(k2, (4, hidden, hidden), jnp.float32,
                                     -kbound, kbound)
            b_ih = jax.random.uniform(k3, (4, 1, hidden), jnp.float32,
                                      -kbound, kbound)
            b_hh = jax.random.uniform(k4, (4, 1, hidden), jnp.float32,
                                      -kbound, kbound)
            layers.append({"wih": wih, "whh": whh, "b": b_ih + b_hh})
        return layers

    lstm1 = make_lstm(keys[:4 * num_layers])
    lstm2 = make_lstm(keys[4 * num_layers:])

    # h_0 / c_0 / h_0_rev / c_0_rev are zero-initialized Parameters in the module
    zeros = jnp.zeros((num_layers, hidden), jnp.float32)
    return {
        "emb": emb,
        "lstm1": lstm1,
        "lstm2": lstm2,
        "h_0": zeros, "c_0": zeros,
        "h_0_rev": zeros, "c_0_rev": zeros,
    }


if __name__ == "__main__":
    B, L, V, ED, H, LAYERS = 2, 8, 50, 16, 32, 2

    key = jax.random.PRNGKey(0)
    k_p, k_x, k_l = jax.random.split(key, 3)
    params = make_params(k_p, V, ED, H, LAYERS)

    # token ids, padded with 0 beyond each length
    x_lens_np = np.array([8, 5], dtype=np.int32)
    xx_np = np.array(jax.random.randint(k_x, (B, L), 1, V), dtype=np.int32)
    for b in range(B):
        xx_np[b, x_lens_np[b]:] = 0
    # reversed valid prefix (what xx_rev_pad carries in the original pipeline)
    xx_rev_np = np.zeros_like(xx_np)
    for b in range(B):
        n = x_lens_np[b]
        xx_rev_np[b, :n] = xx_np[b, :n][::-1]

    xx_pad = jnp.asarray(xx_np)
    xx_rev_pad = jnp.asarray(xx_rev_np)
    x_lens = jnp.asarray(x_lens_np)

    fwd = jax.jit(functools.partial(encoder_forward, params))
    h_t, h_t_rev = fwd(xx_pad, xx_rev_pad, x_lens)
    jax.block_until_ready((h_t, h_t_rev))

    # correctness check against pure-JAX reference
    h_t_r, h_t_rev_r = encoder_forward_ref(params, xx_pad, xx_rev_pad, x_lens)
    np.testing.assert_allclose(np.asarray(h_t), np.asarray(h_t_r),
                               rtol=2e-3, atol=2e-3)
    np.testing.assert_allclose(np.asarray(h_t_rev), np.asarray(h_t_rev_r),
                               rtol=2e-3, atol=2e-3)
    assert h_t.shape == (LAYERS, B, H) and h_t_rev.shape == (LAYERS, B, H)

    print("KERNEL_OK")
</pallas_src>

<mosaic_0001>
module attributes {stable_mosaic.version = 11 : i64} {
  func.func @_lstm_block_kernel(%arg0: i32, %arg1: i32, %arg2: memref<1x8x8x512xf32, #tpu.memory_space<vmem>>, %arg3: memref<1x128x512xf32, #tpu.memory_space<vmem>>, %arg4: memref<1x8x128xf32, #tpu.memory_space<vmem>>, %arg5: memref<1x8x128xf32, #tpu.memory_space<vmem>>, %arg6: memref<8x1xi32, #tpu.memory_space<vmem>>, %arg7: memref<1x8x8x128xf32, #tpu.memory_space<vmem>>, %arg8: memref<1x8x128xf32, #tpu.memory_space<vmem>>, %arg9: memref<8x128xf32, #tpu.memory_space<vmem>>, %arg10: memref<8x128xf32, #tpu.memory_space<vmem>>) attributes {dimension_semantics = [#tpu.dimension_semantics<parallel>, #tpu.dimension_semantics<arbitrary>], iteration_bounds = array<i64: 2, 1>, scalar_prefetch = 0 : i64, scratch_operands = 2 : i64, tpu.core_type = #tpu.core_type<tc>, window_params = [{transform_indices = @transform_0, window_bounds = array<i64: 1, 8, 8, 512>}, {transform_indices = @transform_1, window_bounds = array<i64: 1, 128, 512>}, {transform_indices = @transform_2, window_bounds = array<i64: 1, 8, 128>}, {transform_indices = @transform_3, window_bounds = array<i64: 1, 8, 128>}, {pipeline_mode = #tpu.pipeline_mode<synchronous>, transform_indices = @transform_4, window_bounds = array<i64: 8, 1>}, {transform_indices = @transform_5, window_bounds = array<i64: 1, 8, 8, 128>}, {transform_indices = @transform_6, window_bounds = array<i64: 1, 8, 128>}]} {
    %c0_i32 = arith.constant 0 : i32
    %0 = arith.cmpi eq, %arg1, %c0_i32 : i32
    %1 = arith.extui %0 : i1 to i32
    %c0_i32_0 = arith.constant 0 : i32
    %2 = arith.cmpi ne, %1, %c0_i32_0 : i32
    scf.if %2 {
      %c0_104 = arith.constant 0 : index
      %c0_105 = arith.constant 0 : index
      %c0_106 = arith.constant 0 : index
      %342 = vector.load %arg4[%c0_104, %c0_105, %c0_106] : memref<1x8x128xf32, #tpu.memory_space<vmem>>, vector<1x8x128xf32>
      %343 = vector.shape_cast %342 : vector<1x8x128xf32> to vector<8x128xf32>
      %c0_107 = arith.constant 0 : index
      %c0_108 = arith.constant 0 : index
      %344 = vector.load %arg9[%c0_107, %c0_108] : memref<8x128xf32, #tpu.memory_space<vmem>>, vector<8x128xf32>
      tpu.vector_store %arg9[%c0_107, %c0_108], %343 {strides = array<i32>} : memref<8x128xf32, #tpu.memory_space<vmem>>, vector<8x128xf32>,
      %c0_109 = arith.constant 0 : index
      %c0_110 = arith.constant 0 : index
      %c0_111 = arith.constant 0 : index
      %345 = vector.load %arg5[%c0_109, %c0_110, %c0_111] : memref<1x8x128xf32, #tpu.memory_space<vmem>>, vector<1x8x128xf32>
      %346 = vector.shape_cast %345 : vector<1x8x128xf32> to vector<8x128xf32>
      %c0_112 = arith.constant 0 : index
      %c0_113 = arith.constant 0 : index
      %347 = vector.load %arg10[%c0_112, %c0_113] : memref<8x128xf32, #tpu.memory_space<vmem>>, vector<8x128xf32>
      tpu.vector_store %arg10[%c0_112, %c0_113], %346 {strides = array<i32>} : memref<8x128xf32, #tpu.memory_space<vmem>>, vector<8x128xf32>,
    } else {
    }
    %c0 = arith.constant 0 : index
    %c0_1 = arith.constant 0 : index
    %3 = vector.load %arg6[%c0, %c0_1] : memref<8x1xi32, #tpu.memory_space<vmem>>, vector<8x1xi32>
    %c0_2 = arith.constant 0 : index
    %c0_3 = arith.constant 0 : index
    %c0_4 = arith.constant 0 : index
    %4 = vector.load %arg3[%c0_2, %c0_3, %c0_4] : memref<1x128x512xf32, #tpu.memory_space<vmem>>, vector<1x128x512xf32>
    %5 = vector.shape_cast %4 : vector<1x128x512xf32> to vector<128x512xf32>
    %c8_i32 = arith.constant 8 : i32
    %6 = arith.muli %arg1, %c8_i32 : i32
    %c0_5 = arith.constant 0 : index
    %c0_6 = arith.constant 0 : index
    %7 = vector.load %arg9[%c0_5, %c0_6] : memref<8x128xf32, #tpu.memory_space<vmem>>, vector<8x128xf32>
    %c0_7 = arith.constant 0 : index
    %c0_8 = arith.constant 0 : index
    %8 = vector.load %arg10[%c0_7, %c0_8] : memref<8x128xf32, #tpu.memory_space<vmem>>, vector<8x128xf32>
    %c0_9 = arith.constant 0 : index
    %c0_10 = arith.constant 0 : index
    %c0_11 = arith.constant 0 : index
    %c0_12 = arith.constant 0 : index
    %9 = vector.load %arg2[%c0_9, %c0_10, %c0_11, %c0_12] : memref<1x8x8x512xf32, #tpu.memory_space<vmem>>, vector<1x1x8x512xf32>
    %10 = vector.shape_cast %9 : vector<1x1x8x512xf32> to vector<8x512xf32>
    %cst = arith.constant dense<0.000000e+00> : vector<8x512xf32>
    %11 = tpu.matmul %7, %5, %cst {dimension_numbers = #tpu.dot_dimension_numbers<[1], [0], [0], [1], [0, 0, 1, 1], [], []>} : vector<8x128xf32>, vector<128x512xf32>, vector<8x512xf32> -> vector<8x512xf32>
    %12 = arith.addf %10, %11 : vector<8x512xf32>
    %13 = vector.extract_strided_slice %12 {offsets = [0, 0], sizes = [8, 128], strides = [1, 1]} : vector<8x512xf32> to vector<8x128xf32>
    %14 = arith.negf %13 : vector<8x128xf32>
    %15 = math.exp %14 : vector<8x128xf32>
    %cst_13 = arith.constant 1.000000e+00 : f32
    %16 = vector.broadcast %cst_13 : f32 to vector<8x128xf32>
    %17 = arith.addf %16, %15 : vector<8x128xf32>
    %18 = arith.divf %16, %17 : vector<8x128xf32>
    %19 = vector.extract_strided_slice %12 {offsets = [0, 128], sizes = [8, 128], strides = [1, 1]} : vector<8x512xf32> to vector<8x128xf32>
    %20 = arith.negf %19 : vector<8x128xf32>
    %21 = math.exp %20 : vector<8x128xf32>
    %cst_14 = arith.constant 1.000000e+00 : f32
    %22 = vector.broadcast %cst_14 : f32 to vector<8x128xf32>
    %23 = arith.addf %22, %21 : vector<8x128xf32>
    %24 = arith.divf %22, %23 : vector<8x128xf32>
    %25 = vector.extract_strided_slice %12 {offsets = [0, 256], sizes = [8, 128], strides = [1, 1]} : vector<8x512xf32> to vector<8x128xf32>
    %26 = math.tanh %25 : vector<8x128xf32>
    %27 = vector.extract_strided_slice %12 {offsets = [0, 384], sizes = [8, 128], strides = [1, 1]} : vector<8x512xf32> to vector<8x128xf32>
    %28 = arith.negf %27 : vector<8x128xf32>
    %29 = math.exp %28 : vector<8x128xf32>
    %cst_15 = arith.constant 1.000000e+00 : f32
    %30 = vector.broadcast %cst_15 : f32 to vector<8x128xf32>
    %31 = arith.addf %30, %29 : vector<8x128xf32>
    %32 = arith.divf %30, %31 : vector<8x128xf32>
    %33 = arith.mulf %24, %8 : vector<8x128xf32>
    %34 = arith.mulf %18, %26 : vector<8x128xf32>
    %35 = arith.addf %33, %34 : vector<8x128xf32>
    %36 = math.tanh %35 : vector<8x128xf32>
    %37 = arith.mulf %32, %36 : vector<8x128xf32>
    %c0_i32_16 = arith.constant 0 : i32
    %38 = arith.addi %6, %c0_i32_16 : i32
    %39 = vector.broadcast %38 : i32 to vector<8x1xi32>
    %40 = arith.cmpi slt, %39, %3 : vector<8x1xi32>
    %41 = vector.shape_cast %40 : vector<8x1xi1> to vector<8x1xi1>
    %42 = vector.broadcast %41 : vector<8x1xi1> to vector<8x128xi1>
    %43 = arith.select %42, %37, %7 : vector<8x128xi1>, vector<8x128xf32>
    %44 = vector.shape_cast %40 : vector<8x1xi1> to vector<8x1xi1>
    %45 = vector.broadcast %44 : vector<8x1xi1> to vector<8x128xi1>
    %46 = arith.select %45, %35, %8 : vector<8x128xi1>, vector<8x128xf32>
    %c0_17 = arith.constant 0 : index
    %c0_18 = arith.constant 0 : index
    %c0_19 = arith.constant 0 : index
    %c0_20 = arith.constant 0 : index
    %47 = vector.load %arg7[%c0_17, %c0_18, %c0_19, %c0_20] : memref<1x8x8x128xf32, #tpu.memory_space<vmem>>, vector<1x1x8x128xf32>
    %48 = vector.shape_cast %47 : vector<1x1x8x128xf32> to vector<8x128xf32>
    %49 = vector.shape_cast %43 : vector<8x128xf32> to vector<1x1x8x128xf32>
    tpu.vector_store %arg7[%c0_17, %c0_18, %c0_19, %c0_20], %49 {strides = array<i32>} : memref<1x8x8x128xf32, #tpu.memory_space<vmem>>, vector<1x1x8x128xf32>,
    %c0_21 = arith.constant 0 : index
    %c1 = arith.constant 1 : index
    %c0_22 = arith.constant 0 : index
    %c0_23 = arith.constant 0 : index
    %50 = vector.load %arg2[%c0_21, %c1, %c0_22, %c0_23] : memref<1x8x8x512xf32, #tpu.memory_space<vmem>>, vector<1x1x8x512xf32>
    %51 = vector.shape_cast %50 : vector<1x1x8x512xf32> to vector<8x512xf32>
    %cst_24 = arith.constant dense<0.000000e+00> : vector<8x512xf32>
    %52 = tpu.matmul %43, %5, %cst_24 {dimension_numbers = #tpu.dot_dimension_numbers<[1], [0], [0], [1], [0, 0, 1, 1], [], []>} : vector<8x128xf32>, vector<128x512xf32>, vector<8x512xf32> -> vector<8x512xf32>
    %53 = arith.addf %51, %52 : vector<8x512xf32>
    %54 = vector.extract_strided_slice %53 {offsets = [0, 0], sizes = [8, 128], strides = [1, 1]} : vector<8x512xf32> to vector<8x128xf32>
    %55 = arith.negf %54 : vector<8x128xf32>
    %56 = math.exp %55 : vector<8x128xf32>
    %cst_25 = arith.constant 1.000000e+00 : f32
    %57 = vector.broadcast %cst_25 : f32 to vector<8x128xf32>
    %58 = arith.addf %57, %56 : vector<8x128xf32>
    %59 = arith.divf %57, %58 : vector<8x128xf32>
    %60 = vector.extract_strided_slice %53 {offsets = [0, 128], sizes = [8, 128], strides = [1, 1]} : vector<8x512xf32> to vector<8x128xf32>
    %61 = arith.negf %60 : vector<8x128xf32>
    %62 = math.exp %61 : vector<8x128xf32>
    %cst_26 = arith.constant 1.000000e+00 : f32
    %63 = vector.broadcast %cst_26 : f32 to vector<8x128xf32>
    %64 = arith.addf %63, %62 : vector<8x128xf32>
    %65 = arith.divf %63, %64 : vector<8x128xf32>
    %66 = vector.extract_strided_slice %53 {offsets = [0, 256], sizes = [8, 128], strides = [1, 1]} : vector<8x512xf32> to vector<8x128xf32>
    %67 = math.tanh %66 : vector<8x128xf32>
    %68 = vector.extract_strided_slice %53 {offsets = [0, 384], sizes = [8, 128], strides = [1, 1]} : vector<8x512xf32> to vector<8x128xf32>
    %69 = arith.negf %68 : vector<8x128xf32>
    %70 = math.exp %69 : vector<8x128xf32>
    %cst_27 = arith.constant 1.000000e+00 : f32
    %71 = vector.broadcast %cst_27 : f32 to vector<8x128xf32>
    %72 = arith.addf %71, %70 : vector<8x128xf32>
    %73 = arith.divf %71, %72 : vector<8x128xf32>
    %74 = arith.mulf %65, %46 : vector<8x128xf32>
    %75 = arith.mulf %59, %67 : vector<8x128xf32>
    %76 = arith.addf %74, %75 : vector<8x128xf32>
    %77 = math.tanh %76 : vector<8x128xf32>
    %78 = arith.mulf %73, %77 : vector<8x128xf32>
    %c1_i32 = arith.constant 1 : i32
    %79 = arith.addi %6, %c1_i32 : i32
    %80 = vector.broadcast %79 : i32 to vector<8x1xi32>
    %81 = arith.cmpi slt, %80, %3 : vector<8x1xi32>
    %82 = vector.shape_cast %81 : vector<8x1xi1> to vector<8x1xi1>
    %83 = vector.broadcast %82 : vector<8x1xi1> to vector<8x128xi1>
    %84 = arith.select %83, %78, %43 : vector<8x128xi1>, vector<8x128xf32>
    %85 = vector.shape_cast %81 : vector<8x1xi1> to vector<8x1xi1>
    %86 = vector.broadcast %85 : vector<8x1xi1> to vector<8x128xi1>
    %87 = arith.select %86, %76, %46 : vector<8x128xi1>, vector<8x128xf32>
    %c0_28 = arith.constant 0 : index
    %c1_29 = arith.constant 1 : index
    %c0_30 = arith.constant 0 : index
    %c0_31 = arith.constant 0 : index
    %88 = vector.load %arg7[%c0_28, %c1_29, %c0_30, %c0_31] : memref<1x8x8x128xf32, #tpu.memory_space<vmem>>, vector<1x1x8x128xf32>
    %89 = vector.shape_cast %88 : vector<1x1x8x128xf32> to vector<8x128xf32>
    %90 = vector.shape_cast %84 : vector<8x128xf32> to vector<1x1x8x128xf32>
    tpu.vector_store %arg7[%c0_28, %c1_29, %c0_30, %c0_31], %90 {strides = array<i32>} : memref<1x8x8x128xf32, #tpu.memory_space<vmem>>, vector<1x1x8x128xf32>,
    %c0_32 = arith.constant 0 : index
    %c2 = arith.constant 2 : index
    %c0_33 = arith.constant 0 : index
    %c0_34 = arith.constant 0 : index
    %91 = vector.load %arg2[%c0_32, %c2, %c0_33, %c0_34] : memref<1x8x8x512xf32, #tpu.memory_space<vmem>>, vector<1x1x8x512xf32>
    %92 = vector.shape_cast %91 : vector<1x1x8x512xf32> to vector<8x512xf32>
    %cst_35 = arith.constant dense<0.000000e+00> : vector<8x512xf32>
    %93 = tpu.matmul %84, %5, %cst_35 {dimension_numbers = #tpu.dot_dimension_numbers<[1], [0], [0], [1], [0, 0, 1, 1], [], []>} : vector<8x128xf32>, vector<128x512xf32>, vector<8x512xf32> -> vector<8x512xf32>
    %94 = arith.addf %92, %93 : vector<8x512xf32>
    %95 = vector.extract_strided_slice %94 {offsets = [0, 0], sizes = [8, 128], strides = [1, 1]} : vector<8x512xf32> to vector<8x128xf32>
    %96 = arith.negf %95 : vector<8x128xf32>
    %97 = math.exp %96 : vector<8x128xf32>
    %cst_36 = arith.constant 1.000000e+00 : f32
    %98 = vector.broadcast %cst_36 : f32 to vector<8x128xf32>
    %99 = arith.addf %98, %97 : vector<8x128xf32>
    %100 = arith.divf %98, %99 : vector<8x128xf32>
    %101 = vector.extract_strided_slice %94 {offsets = [0, 128], sizes = [8, 128], strides = [1, 1]} : vector<8x512xf32> to vector<8x128xf32>
    %102 = arith.negf %101 : vector<8x128xf32>
    %103 = math.exp %102 : vector<8x128xf32>
    %cst_37 = arith.constant 1.000000e+00 : f32
    %104 = vector.broadcast %cst_37 : f32 to vector<8x128xf32>
    %105 = arith.addf %104, %103 : vector<8x128xf32>
    %106 = arith.divf %104, %105 : vector<8x128xf32>
    %107 = vector.extract_strided_slice %94 {offsets = [0, 256], sizes = [8, 128], strides = [1, 1]} : vector<8x512xf32> to vector<8x128xf32>
    %108 = math.tanh %107 : vector<8x128xf32>
    %109 = vector.extract_strided_slice %94 {offsets = [0, 384], sizes = [8, 128], strides = [1, 1]} : vector<8x512xf32> to vector<8x128xf32>
    %110 = arith.negf %109 : vector<8x128xf32>
    %111 = math.exp %110 : vector<8x128xf32>
    %cst_38 = arith.constant 1.000000e+00 : f32
    %112 = vector.broadcast %cst_38 : f32 to vector<8x128xf32>
    %113 = arith.addf %112, %111 : vector<8x128xf32>
    %114 = arith.divf %112, %113 : vector<8x128xf32>
    %115 = arith.mulf %106, %87 : vector<8x128xf32>
    %116 = arith.mulf %100, %108 : vector<8x128xf32>
    %117 = arith.addf %115, %116 : vector<8x128xf32>
    %118 = math.tanh %117 : vector<8x128xf32>
    %119 = arith.mulf %114, %118 : vector<8x128xf32>
    %c2_i32 = arith.constant 2 : i32
    %120 = arith.addi %6, %c2_i32 : i32
    %121 = vector.broadcast %120 : i32 to vector<8x1xi32>
    %122 = arith.cmpi slt, %121, %3 : vector<8x1xi32>
    %123 = vector.shape_cast %122 : vector<8x1xi1> to vector<8x1xi1>
    %124 = vector.broadcast %123 : vector<8x1xi1> to vector<8x128xi1>
    %125 = arith.select %124, %119, %84 : vector<8x128xi1>, vector<8x128xf32>
    %126 = vector.shape_cast %122 : vector<8x1xi1> to vector<8x1xi1>
    %127 = vector.broadcast %126 : vector<8x1xi1> to vector<8x128xi1>
    %128 = arith.select %127, %117, %87 : vector<8x128xi1>, vector<8x128xf32>
    %c0_39 = arith.constant 0 : index
    %c2_40 = arith.constant 2 : index
    %c0_41 = arith.constant 0 : index
    %c0_42 = arith.constant 0 : index
    %129 = vector.load %arg7[%c0_39, %c2_40, %c0_41, %c0_42] : memref<1x8x8x128xf32, #tpu.memory_space<vmem>>, vector<1x1x8x128xf32>
    %130 = vector.shape_cast %129 : vector<1x1x8x128xf32> to vector<8x128xf32>
    %131 = vector.shape_cast %125 : vector<8x128xf32> to vector<1x1x8x128xf32>
    tpu.vector_store %arg7[%c0_39, %c2_40, %c0_41, %c0_42], %131 {strides = array<i32>} : memref<1x8x8x128xf32, #tpu.memory_space<vmem>>, vector<1x1x8x128xf32>,
    %c0_43 = arith.constant 0 : index
    %c3 = arith.constant 3 : index
    %c0_44 = arith.constant 0 : index
    %c0_45 = arith.constant 0 : index
    %132 = vector.load %arg2[%c0_43, %c3, %c0_44, %c0_45] : memref<1x8x8x512xf32, #tpu.memory_space<vmem>>, vector<1x1x8x512xf32>
    %133 = vector.shape_cast %132 : vector<1x1x8x512xf32> to vector<8x512xf32>
    %cst_46 = arith.constant dense<0.000000e+00> : vector<8x512xf32>
    %134 = tpu.matmul %125, %5, %cst_46 {dimension_numbers = #tpu.dot_dimension_numbers<[1], [0], [0], [1], [0, 0, 1, 1], [], []>} : vector<8x128xf32>, vector<128x512xf32>, vector<8x512xf32> -> vector<8x512xf32>
    %135 = arith.addf %133, %134 : vector<8x512xf32>
    %136 = vector.extract_strided_slice %135 {offsets = [0, 0], sizes = [8, 128], strides = [1, 1]} : vector<8x512xf32> to vector<8x128xf32>
    %137 = arith.negf %136 : vector<8x128xf32>
    %138 = math.exp %137 : vector<8x128xf32>
    %cst_47 = arith.constant 1.000000e+00 : f32
    %139 = vector.broadcast %cst_47 : f32 to vector<8x128xf32>
    %140 = arith.addf %139, %138 : vector<8x128xf32>
    %141 = arith.divf %139, %140 : vector<8x128xf32>
    %142 = vector.extract_strided_slice %135 {offsets = [0, 128], sizes = [8, 128], strides = [1, 1]} : vector<8x512xf32> to vector<8x128xf32>
    %143 = arith.negf %142 : vector<8x128xf32>
    %144 = math.exp %143 : vector<8x128xf32>
    %cst_48 = arith.constant 1.000000e+00 : f32
    %145 = vector.broadcast %cst_48 : f32 to vector<8x128xf32>
    %146 = arith.addf %145, %144 : vector<8x128xf32>
    %147 = arith.divf %145, %146 : vector<8x128xf32>
    %148 = vector.extract_strided_slice %135 {offsets = [0, 256], sizes = [8, 128], strides = [1, 1]} : vector<8x512xf32> to vector<8x128xf32>
    %149 = math.tanh %148 : vector<8x128xf32>
    %150 = vector.extract_strided_slice %135 {offsets = [0, 384], sizes = [8, 128], strides = [1, 1]} : vector<8x512xf32> to vector<8x128xf32>
    %151 = arith.negf %150 : vector<8x128xf32>
    %152 = math.exp %151 : vector<8x128xf32>
    %cst_49 = arith.constant 1.000000e+00 : f32
    %153 = vector.broadcast %cst_49 : f32 to vector<8x128xf32>
    %154 = arith.addf %153, %152 : vector<8x128xf32>
    %155 = arith.divf %153, %154 : vector<8x128xf32>
    %156 = arith.mulf %147, %128 : vector<8x128xf32>
    %157 = arith.mulf %141, %149 : vector<8x128xf32>
    %158 = arith.addf %156, %157 : vector<8x128xf32>
    %159 = math.tanh %158 : vector<8x128xf32>
    %160 = arith.mulf %155, %159 : vector<8x128xf32>
    %c3_i32 = arith.constant 3 : i32
    %161 = arith.addi %6, %c3_i32 : i32
    %162 = vector.broadcast %161 : i32 to vector<8x1xi32>
    %163 = arith.cmpi slt, %162, %3 : vector<8x1xi32>
    %164 = vector.shape_cast %163 : vector<8x1xi1> to vector<8x1xi1>
    %165 = vector.broadcast %164 : vector<8x1xi1> to vector<8x128xi1>
    %166 = arith.select %165, %160, %125 : vector<8x128xi1>, vector<8x128xf32>
    %167 = vector.shape_cast %163 : vector<8x1xi1> to vector<8x1xi1>
    %168 = vector.broadcast %167 : vector<8x1xi1> to vector<8x128xi1>
    %169 = arith.select %168, %158, %128 : vector<8x128xi1>, vector<8x128xf32>
    %c0_50 = arith.constant 0 : index
    %c3_51 = arith.constant 3 : index
    %c0_52 = arith.constant 0 : index
    %c0_53 = arith.constant 0 : index
    %170 = vector.load %arg7[%c0_50, %c3_51, %c0_52, %c0_53] : memref<1x8x8x128xf32, #tpu.memory_space<vmem>>, vector<1x1x8x128xf32>
    %171 = vector.shape_cast %170 : vector<1x1x8x128xf32> to vector<8x128xf32>
    %172 = vector.shape_cast %166 : vector<8x128xf32> to vector<1x1x8x128xf32>
    tpu.vector_store %arg7[%c0_50, %c3_51, %c0_52, %c0_53], %172 {strides = array<i32>} : memref<1x8x8x128xf32, #tpu.memory_space<vmem>>, vector<1x1x8x128xf32>,
    %c0_54 = arith.constant 0 : index
    %c4 = arith.constant 4 : index
    %c0_55 = arith.constant 0 : index
    %c0_56 = arith.constant 0 : index
    %173 = vector.load %arg2[%c0_54, %c4, %c0_55, %c0_56] : memref<1x8x8x512xf32, #tpu.memory_space<vmem>>, vector<1x1x8x512xf32>
    %174 = vector.shape_cast %173 : vector<1x1x8x512xf32> to vector<8x512xf32>
    %cst_57 = arith.constant dense<0.000000e+00> : vector<8x512xf32>
    %175 = tpu.matmul %166, %5, %cst_57 {dimension_numbers = #tpu.dot_dimension_numbers<[1], [0], [0], [1], [0, 0, 1, 1], [], []>} : vector<8x128xf32>, vector<128x512xf32>, vector<8x512xf32> -> vector<8x512xf32>
    %176 = arith.addf %174, %175 : vector<8x512xf32>
    %177 = vector.extract_strided_slice %176 {offsets = [0, 0], sizes = [8, 128], strides = [1, 1]} : vector<8x512xf32> to vector<8x128xf32>
    %178 = arith.negf %177 : vector<8x128xf32>
    %179 = math.exp %178 : vector<8x128xf32>
    %cst_58 = arith.constant 1.000000e+00 : f32
    %180 = vector.broadcast %cst_58 : f32 to vector<8x128xf32>
    %181 = arith.addf %180, %179 : vector<8x128xf32>
    %182 = arith.divf %180, %181 : vector<8x128xf32>
    %183 = vector.extract_strided_slice %176 {offsets = [0, 128], sizes = [8, 128], strides = [1, 1]} : vector<8x512xf32> to vector<8x128xf32>
    %184 = arith.negf %183 : vector<8x128xf32>
    %185 = math.exp %184 : vector<8x128xf32>
    %cst_59 = arith.constant 1.000000e+00 : f32
    %186 = vector.broadcast %cst_59 : f32 to vector<8x128xf32>
    %187 = arith.addf %186, %185 : vector<8x128xf32>
    %188 = arith.divf %186, %187 : vector<8x128xf32>
    %189 = vector.extract_strided_slice %176 {offsets = [0, 256], sizes = [8, 128], strides = [1, 1]} : vector<8x512xf32> to vector<8x128xf32>
    %190 = math.tanh %189 : vector<8x128xf32>
    %191 = vector.extract_strided_slice %176 {offsets = [0, 384], sizes = [8, 128], strides = [1, 1]} : vector<8x512xf32> to vector<8x128xf32>
    %192 = arith.negf %191 : vector<8x128xf32>
    %193 = math.exp %192 : vector<8x128xf32>
    %cst_60 = arith.constant 1.000000e+00 : f32
    %194 = vector.broadcast %cst_60 : f32 to vector<8x128xf32>
    %195 = arith.addf %194, %193 : vector<8x128xf32>
    %196 = arith.divf %194, %195 : vector<8x128xf32>
    %197 = arith.mulf %188, %169 : vector<8x128xf32>
    %198 = arith.mulf %182, %190 : vector<8x128xf32>
    %199 = arith.addf %197, %198 : vector<8x128xf32>
    %200 = math.tanh %199 : vector<8x128xf32>
    %201 = arith.mulf %196, %200 : vector<8x128xf32>
    %c4_i32 = arith.constant 4 : i32
    %202 = arith.addi %6, %c4_i32 : i32
    %203 = vector.broadcast %202 : i32 to vector<8x1xi32>
    %204 = arith.cmpi slt, %203, %3 : vector<8x1xi32>
    %205 = vector.shape_cast %204 : vector<8x1xi1> to vector<8x1xi1>
    %206 = vector.broadcast %205 : vector<8x1xi1> to vector<8x128xi1>
    %207 = arith.select %206, %201, %166 : vector<8x128xi1>, vector<8x128xf32>
    %208 = vector.shape_cast %204 : vector<8x1xi1> to vector<8x1xi1>
    %209 = vector.broadcast %208 : vector<8x1xi1> to vector<8x128xi1>
    %210 = arith.select %209, %199, %169 : vector<8x128xi1>, vector<8x128xf32>
    %c0_61 = arith.constant 0 : index
    %c4_62 = arith.constant 4 : index
    %c0_63 = arith.constant 0 : index
    %c0_64 = arith.constant 0 : index
    %211 = vector.load %arg7[%c0_61, %c4_62, %c0_63, %c0_64] : memref<1x8x8x128xf32, #tpu.memory_space<vmem>>, vector<1x1x8x128xf32>
    %212 = vector.shape_cast %211 : vector<1x1x8x128xf32> to vector<8x128xf32>
    %213 = vector.shape_cast %207 : vector<8x128xf32> to vector<1x1x8x128xf32>
    tpu.vector_store %arg7[%c0_61, %c4_62, %c0_63, %c0_64], %213 {strides = array<i32>} : memref<1x8x8x128xf32, #tpu.memory_space<vmem>>, vector<1x1x8x128xf32>,
    %c0_65 = arith.constant 0 : index
    %c5 = arith.constant 5 : index
    %c0_66 = arith.constant 0 : index
    %c0_67 = arith.constant 0 : index
    %214 = vector.load %arg2[%c0_65, %c5, %c0_66, %c0_67] : memref<1x8x8x512xf32, #tpu.memory_space<vmem>>, vector<1x1x8x512xf32>
    %215 = vector.shape_cast %214 : vector<1x1x8x512xf32> to vector<8x512xf32>
    %cst_68 = arith.constant dense<0.000000e+00> : vector<8x512xf32>
    %216 = tpu.matmul %207, %5, %cst_68 {dimension_numbers = #tpu.dot_dimension_numbers<[1], [0], [0], [1], [0, 0, 1, 1], [], []>} : vector<8x128xf32>, vector<128x512xf32>, vector<8x512xf32> -> vector<8x512xf32>
    %217 = arith.addf %215, %216 : vector<8x512xf32>
    %218 = vector.extract_strided_slice %217 {offsets = [0, 0], sizes = [8, 128], strides = [1, 1]} : vector<8x512xf32> to vector<8x128xf32>
    %219 = arith.negf %218 : vector<8x128xf32>
    %220 = math.exp %219 : vector<8x128xf32>
    %cst_69 = arith.constant 1.000000e+00 : f32
    %221 = vector.broadcast %cst_69 : f32 to vector<8x128xf32>
    %222 = arith.addf %221, %220 : vector<8x128xf32>
    %223 = arith.divf %221, %222 : vector<8x128xf32>
    %224 = vector.extract_strided_slice %217 {offsets = [0, 128], sizes = [8, 128], strides = [1, 1]} : vector<8x512xf32> to vector<8x128xf32>
    %225 = arith.negf %224 : vector<8x128xf32>
    %226 = math.exp %225 : vector<8x128xf32>
    %cst_70 = arith.constant 1.000000e+00 : f32
    %227 = vector.broadcast %cst_70 : f32 to vector<8x128xf32>
    %228 = arith.addf %227, %226 : vector<8x128xf32>
    %229 = arith.divf %227, %228 : vector<8x128xf32>
    %230 = vector.extract_strided_slice %217 {offsets = [0, 256], sizes = [8, 128], strides = [1, 1]} : vector<8x512xf32> to vector<8x128xf32>
    %231 = math.tanh %230 : vector<8x128xf32>
    %232 = vector.extract_strided_slice %217 {offsets = [0, 384], sizes = [8, 128], strides = [1, 1]} : vector<8x512xf32> to vector<8x128xf32>
    %233 = arith.negf %232 : vector<8x128xf32>
    %234 = math.exp %233 : vector<8x128xf32>
    %cst_71 = arith.constant 1.000000e+00 : f32
    %235 = vector.broadcast %cst_71 : f32 to vector<8x128xf32>
    %236 = arith.addf %235, %234 : vector<8x128xf32>
    %237 = arith.divf %235, %236 : vector<8x128xf32>
    %238 = arith.mulf %229, %210 : vector<8x128xf32>
    %239 = arith.mulf %223, %231 : vector<8x128xf32>
    %240 = arith.addf %238, %239 : vector<8x128xf32>
    %241 = math.tanh %240 : vector<8x128xf32>
    %242 = arith.mulf %237, %241 : vector<8x128xf32>
    %c5_i32 = arith.constant 5 : i32
    %243 = arith.addi %6, %c5_i32 : i32
    %244 = vector.broadcast %243 : i32 to vector<8x1xi32>
    %245 = arith.cmpi slt, %244, %3 : vector<8x1xi32>
    %246 = vector.shape_cast %245 : vector<8x1xi1> to vector<8x1xi1>
    %247 = vector.broadcast %246 : vector<8x1xi1> to vector<8x128xi1>
    %248 = arith.select %247, %242, %207 : vector<8x128xi1>, vector<8x128xf32>
    %249 = vector.shape_cast %245 : vector<8x1xi1> to vector<8x1xi1>
    %250 = vector.broadcast %249 : vector<8x1xi1> to vector<8x128xi1>
    %251 = arith.select %250, %240, %210 : vector<8x128xi1>, vector<8x128xf32>
    %c0_72 = arith.constant 0 : index
    %c5_73 = arith.constant 5 : index
    %c0_74 = arith.constant 0 : index
    %c0_75 = arith.constant 0 : index
    %252 = vector.load %arg7[%c0_72, %c5_73, %c0_74, %c0_75] : memref<1x8x8x128xf32, #tpu.memory_space<vmem>>, vector<1x1x8x128xf32>
    %253 = vector.shape_cast %252 : vector<1x1x8x128xf32> to vector<8x128xf32>
    %254 = vector.shape_cast %248 : vector<8x128xf32> to vector<1x1x8x128xf32>
    tpu.vector_store %arg7[%c0_72, %c5_73, %c0_74, %c0_75], %254 {strides = array<i32>} : memref<1x8x8x128xf32, #tpu.memory_space<vmem>>, vector<1x1x8x128xf32>,
    %c0_76 = arith.constant 0 : index
    %c6 = arith.constant 6 : index
    %c0_77 = arith.constant 0 : index
    %c0_78 = arith.constant 0 : index
    %255 = vector.load %arg2[%c0_76, %c6, %c0_77, %c0_78] : memref<1x8x8x512xf32, #tpu.memory_space<vmem>>, vector<1x1x8x512xf32>
    %256 = vector.shape_cast %255 : vector<1x1x8x512xf32> to vector<8x512xf32>
    %cst_79 = arith.constant dense<0.000000e+00> : vector<8x512xf32>
    %257 = tpu.matmul %248, %5, %cst_79 {dimension_numbers = #tpu.dot_dimension_numbers<[1], [0], [0], [1], [0, 0, 1, 1], [], []>} : vector<8x128xf32>, vector<128x512xf32>, vector<8x512xf32> -> vector<8x512xf32>
    %258 = arith.addf %256, %257 : vector<8x512xf32>
    %259 = vector.extract_strided_slice %258 {offsets = [0, 0], sizes = [8, 128], strides = [1, 1]} : vector<8x512xf32> to vector<8x128xf32>
    %260 = arith.negf %259 : vector<8x128xf32>
    %261 = math.exp %260 : vector<8x128xf32>
    %cst_80 = arith.constant 1.000000e+00 : f32
    %262 = vector.broadcast %cst_80 : f32 to vector<8x128xf32>
    %263 = arith.addf %262, %261 : vector<8x128xf32>
    %264 = arith.divf %262, %263 : vector<8x128xf32>
    %265 = vector.extract_strided_slice %258 {offsets = [0, 128], sizes = [8, 128], strides = [1, 1]} : vector<8x512xf32> to vector<8x128xf32>
    %266 = arith.negf %265 : vector<8x128xf32>
    %267 = math.exp %266 : vector<8x128xf32>
    %cst_81 = arith.constant 1.000000e+00 : f32
    %268 = vector.broadcast %cst_81 : f32 to vector<8x128xf32>
    %269 = arith.addf %268, %267 : vector<8x128xf32>
    %270 = arith.divf %268, %269 : vector<8x128xf32>
    %271 = vector.extract_strided_slice %258 {offsets = [0, 256], sizes = [8, 128], strides = [1, 1]} : vector<8x512xf32> to vector<8x128xf32>
    %272 = math.tanh %271 : vector<8x128xf32>
    %273 = vector.extract_strided_slice %258 {offsets = [0, 384], sizes = [8, 128], strides = [1, 1]} : vector<8x512xf32> to vector<8x128xf32>
    %274 = arith.negf %273 : vector<8x128xf32>
    %275 = math.exp %274 : vector<8x128xf32>
    %cst_82 = arith.constant 1.000000e+00 : f32
    %276 = vector.broadcast %cst_82 : f32 to vector<8x128xf32>
    %277 = arith.addf %276, %275 : vector<8x128xf32>
    %278 = arith.divf %276, %277 : vector<8x128xf32>
    %279 = arith.mulf %270, %251 : vector<8x128xf32>
    %280 = arith.mulf %264, %272 : vector<8x128xf32>
    %281 = arith.addf %279, %280 : vector<8x128xf32>
    %282 = math.tanh %281 : vector<8x128xf32>
    %283 = arith.mulf %278, %282 : vector<8x128xf32>
    %c6_i32 = arith.constant 6 : i32
    %284 = arith.addi %6, %c6_i32 : i32
    %285 = vector.broadcast %284 : i32 to vector<8x1xi32>
    %286 = arith.cmpi slt, %285, %3 : vector<8x1xi32>
    %287 = vector.shape_cast %286 : vector<8x1xi1> to vector<8x1xi1>
    %288 = vector.broadcast %287 : vector<8x1xi1> to vector<8x128xi1>
    %289 = arith.select %288, %283, %248 : vector<8x128xi1>, vector<8x128xf32>
    %290 = vector.shape_cast %286 : vector<8x1xi1> to vector<8x1xi1>
    %291 = vector.broadcast %290 : vector<8x1xi1> to vector<8x128xi1>
    %292 = arith.select %291, %281, %251 : vector<8x128xi1>, vector<8x128xf32>
    %c0_83 = arith.constant 0 : index
    %c6_84 = arith.constant 6 : index
    %c0_85 = arith.constant 0 : index
    %c0_86 = arith.constant 0 : index
    %293 = vector.load %arg7[%c0_83, %c6_84, %c0_85, %c0_86] : memref<1x8x8x128xf32, #tpu.memory_space<vmem>>, vector<1x1x8x128xf32>
    %294 = vector.shape_cast %293 : vector<1x1x8x128xf32> to vector<8x128xf32>
    %295 = vector.shape_cast %289 : vector<8x128xf32> to vector<1x1x8x128xf32>
    tpu.vector_store %arg7[%c0_83, %c6_84, %c0_85, %c0_86], %295 {strides = array<i32>} : memref<1x8x8x128xf32, #tpu.memory_space<vmem>>, vector<1x1x8x128xf32>,
    %c0_87 = arith.constant 0 : index
    %c7 = arith.constant 7 : index
    %c0_88 = arith.constant 0 : index
    %c0_89 = arith.constant 0 : index
    %296 = vector.load %arg2[%c0_87, %c7, %c0_88, %c0_89] : memref<1x8x8x512xf32, #tpu.memory_space<vmem>>, vector<1x1x8x512xf32>
    %297 = vector.shape_cast %296 : vector<1x1x8x512xf32> to vector<8x512xf32>
    %cst_90 = arith.constant dense<0.000000e+00> : vector<8x512xf32>
    %298 = tpu.matmul %289, %5, %cst_90 {dimension_numbers = #tpu.dot_dimension_numbers<[1], [0], [0], [1], [0, 0, 1, 1], [], []>} : vector<8x128xf32>, vector<128x512xf32>, vector<8x512xf32> -> vector<8x512xf32>
    %299 = arith.addf %297, %298 : vector<8x512xf32>
    %300 = vector.extract_strided_slice %299 {offsets = [0, 0], sizes = [8, 128], strides = [1, 1]} : vector<8x512xf32> to vector<8x128xf32>
    %301 = arith.negf %300 : vector<8x128xf32>
    %302 = math.exp %301 : vector<8x128xf32>
    %cst_91 = arith.constant 1.000000e+00 : f32
    %303 = vector.broadcast %cst_91 : f32 to vector<8x128xf32>
    %304 = arith.addf %303, %302 : vector<8x128xf32>
    %305 = arith.divf %303, %304 : vector<8x128xf32>
    %306 = vector.extract_strided_slice %299 {offsets = [0, 128], sizes = [8, 128], strides = [1, 1]} : vector<8x512xf32> to vector<8x128xf32>
    %307 = arith.negf %306 : vector<8x128xf32>
    %308 = math.exp %307 : vector<8x128xf32>
    %cst_92 = arith.constant 1.000000e+00 : f32
    %309 = vector.broadcast %cst_92 : f32 to vector<8x128xf32>
    %310 = arith.addf %309, %308 : vector<8x128xf32>
    %311 = arith.divf %309, %310 : vector<8x128xf32>
    %312 = vector.extract_strided_slice %299 {offsets = [0, 256], sizes = [8, 128], strides = [1, 1]} : vector<8x512xf32> to vector<8x128xf32>
    %313 = math.tanh %312 : vector<8x128xf32>
    %314 = vector.extract_strided_slice %299 {offsets = [0, 384], sizes = [8, 128], strides = [1, 1]} : vector<8x512xf32> to vector<8x128xf32>
    %315 = arith.negf %314 : vector<8x128xf32>
    %316 = math.exp %315 : vector<8x128xf32>
    %cst_93 = arith.constant 1.000000e+00 : f32
    %317 = vector.broadcast %cst_93 : f32 to vector<8x128xf32>
    %318 = arith.addf %317, %316 : vector<8x128xf32>
    %319 = arith.divf %317, %318 : vector<8x128xf32>
    %320 = arith.mulf %311, %292 : vector<8x128xf32>
    %321 = arith.mulf %305, %313 : vector<8x128xf32>
    %322 = arith.addf %320, %321 : vector<8x128xf32>
    %323 = math.tanh %322 : vector<8x128xf32>
    %324 = arith.mulf %319, %323 : vector<8x128xf32>
    %c7_i32 = arith.constant 7 : i32
    %325 = arith.addi %6, %c7_i32 : i32
    %326 = vector.broadcast %325 : i32 to vector<8x1xi32>
    %327 = arith.cmpi slt, %326, %3 : vector<8x1xi32>
    %328 = vector.shape_cast %327 : vector<8x1xi1> to vector<8x1xi1>
    %329 = vector.broadcast %328 : vector<8x1xi1> to vector<8x128xi1>
    %330 = arith.select %329, %324, %289 : vector<8x128xi1>, vector<8x128xf32>
    %331 = vector.shape_cast %327 : vector<8x1xi1> to vector<8x1xi1>
    %332 = vector.broadcast %331 : vector<8x1xi1> to vector<8x128xi1>
    %333 = arith.select %332, %322, %292 : vector<8x128xi1>, vector<8x128xf32>
    %c0_94 = arith.constant 0 : index
    %c7_95 = arith.constant 7 : index
    %c0_96 = arith.constant 0 : index
    %c0_97 = arith.constant 0 : index
    %334 = vector.load %arg7[%c0_94, %c7_95, %c0_96, %c0_97] : memref<1x8x8x128xf32, #tpu.memory_space<vmem>>, vector<1x1x8x128xf32>
    %335 = vector.shape_cast %334 : vector<1x1x8x128xf32> to vector<8x128xf32>
    %336 = vector.shape_cast %330 : vector<8x128xf32> to vector<1x1x8x128xf32>
    tpu.vector_store %arg7[%c0_94, %c7_95, %c0_96, %c0_97], %336 {strides = array<i32>} : memref<1x8x8x128xf32, #tpu.memory_space<vmem>>, vector<1x1x8x128xf32>,
    %c0_98 = arith.constant 0 : index
    %c0_99 = arith.constant 0 : index
    %337 = vector.load %arg9[%c0_98, %c0_99] : memref<8x128xf32, #tpu.memory_space<vmem>>, vector<8x128xf32>
    tpu.vector_store %arg9[%c0_98, %c0_99], %330 {strides = array<i32>} : memref<8x128xf32, #tpu.memory_space<vmem>>, vector<8x128xf32>,
    %c0_100 = arith.constant 0 : index
    %c0_101 = arith.constant 0 : index
    %338 = vector.load %arg10[%c0_100, %c0_101] : memref<8x128xf32, #tpu.memory_space<vmem>>, vector<8x128xf32>
    tpu.vector_store %arg10[%c0_100, %c0_101], %333 {strides = array<i32>} : memref<8x128xf32, #tpu.memory_space<vmem>>, vector<8x128xf32>,
    %c0_i32_102 = arith.constant 0 : i32
    %339 = arith.cmpi eq, %arg1, %c0_i32_102 : i32
    %340 = arith.extui %339 : i1 to i32
    %c0_i32_103 = arith.constant 0 : i32
    %341 = arith.cmpi ne, %340, %c0_i32_103 : i32
    scf.if %341 {
      %c0_104 = arith.constant 0 : index
      %c0_105 = arith.constant 0 : index
      %c0_106 = arith.constant 0 : index
      %342 = vector.load %arg8[%c0_104, %c0_105, %c0_106] : memref<1x8x128xf32, #tpu.memory_space<vmem>>, vector<1x8x128xf32>
      %343 = vector.shape_cast %342 : vector<1x8x128xf32> to vector<8x128xf32>
      %344 = vector.shape_cast %330 : vector<8x128xf32> to vector<1x8x128xf32>
      tpu.vector_store %arg8[%c0_104, %c0_105, %c0_106], %344 {strides = array<i32>} : memref<1x8x128xf32, #tpu.memory_space<vmem>>, vector<1x8x128xf32>,
    } else {
    }
    return
  }
  func.func @transform_0(%arg0: i32, %arg1: i32) -> (i32, i32, i32, i32) {
    %c0_i32 = arith.constant 0 : i32
    %c0_i32_0 = arith.constant 0 : i32
    %c0_i32_1 = arith.constant 0 : i32
    return %arg0, %arg1, %c0_i32, %c0_i32_0 : i32, i32, i32, i32
  }
  func.func @transform_1(%arg0: i32, %arg1: i32) -> (i32, i32, i32) {
    %c0_i32 = arith.constant 0 : i32
    %c0_i32_0 = arith.constant 0 : i32
    %c0_i32_1 = arith.constant 0 : i32
    return %arg0, %c0_i32, %c0_i32_0 : i32, i32, i32
  }
  func.func @transform_2(%arg0: i32, %arg1: i32) -> (i32, i32, i32) {
    %c0_i32 = arith.constant 0 : i32
    %c0_i32_0 = arith.constant 0 : i32
    %c0_i32_1 = arith.constant 0 : i32
    return %arg0, %c0_i32, %c0_i32_0 : i32, i32, i32
  }
  func.func @transform_3(%arg0: i32, %arg1: i32) -> (i32, i32, i32) {
    %c0_i32 = arith.constant 0 : i32
    %c0_i32_0 = arith.constant 0 : i32
    %c0_i32_1 = arith.constant 0 : i32
    return %arg0, %c0_i32, %c0_i32_0 : i32, i32, i32
  }
  func.func @transform_4(%arg0: i32, %arg1: i32) -> (i32, i32) {
    %c0_i32 = arith.constant 0 : i32
    %c0_i32_0 = arith.constant 0 : i32
    %c0_i32_1 = arith.constant 0 : i32
    return %c0_i32, %c0_i32_0 : i32, i32
  }
  func.func @transform_5(%arg0: i32, %arg1: i32) -> (i32, i32, i32, i32) {
    %c0_i32 = arith.constant 0 : i32
    %c0_i32_0 = arith.constant 0 : i32
    %c0_i32_1 = arith.constant 0 : i32
    return %arg0, %arg1, %c0_i32, %c0_i32_0 : i32, i32, i32, i32
  }
  func.func @transform_6(%arg0: i32, %arg1: i32) -> (i32, i32, i32) {
    %c0_i32 = arith.constant 0 : i32
    %c0_i32_0 = arith.constant 0 : i32
    %c0_i32_1 = arith.constant 0 : i32
    return %arg0, %c0_i32, %c0_i32_0 : i32, i32, i32
  }
}

module attributes {stable_mosaic.version = 11 : i64} {
  func.func @_lstm_block_kernel(%arg0: i32, %arg1: i32, %arg2: memref<1x8x8x512xf32, #tpu.memory_space<vmem>>, %arg3: memref<1x128x512xf32, #tpu.memory_space<vmem>>, %arg4: memref<1x8x128xf32, #tpu.memory_space<vmem>>, %arg5: memref<1x8x128xf32, #tpu.memory_space<vmem>>, %arg6: memref<8x1xi32, #tpu.memory_space<vmem>>, %arg7: memref<1x8x8x128xf32, #tpu.memory_space<vmem>>, %arg8: memref<1x8x128xf32, #tpu.memory_space<vmem>>, %arg9: memref<8x128xf32, #tpu.memory_space<vmem>>, %arg10: memref<8x128xf32, #tpu.memory_space<vmem>>) attributes {dimension_semantics = [#tpu.dimension_semantics<parallel>, #tpu.dimension_semantics<arbitrary>], iteration_bounds = array<i64: 2, 1>, scalar_prefetch = 0 : i64, scratch_operands = 2 : i64, tpu.core_type = #tpu.core_type<tc>, window_params = [{transform_indices = @transform_0, window_bounds = array<i64: 1, 8, 8, 512>}, {transform_indices = @transform_1, window_bounds = array<i64: 1, 128, 512>}, {transform_indices = @transform_2, window_bounds = array<i64: 1, 8, 128>}, {transform_indices = @transform_3, window_bounds = array<i64: 1, 8, 128>}, {pipeline_mode = #tpu.pipeline_mode<synchronous>, transform_indices = @transform_4, window_bounds = array<i64: 8, 1>}, {transform_indices = @transform_5, window_bounds = array<i64: 1, 8, 8, 128>}, {transform_indices = @transform_6, window_bounds = array<i64: 1, 8, 128>}]} {
    %c0_i32 = arith.constant 0 : i32
    %0 = arith.cmpi eq, %arg1, %c0_i32 : i32
    %1 = arith.extui %0 : i1 to i32
    %c0_i32_0 = arith.constant 0 : i32
    %2 = arith.cmpi ne, %1, %c0_i32_0 : i32
    scf.if %2 {
      %c0_104 = arith.constant 0 : index
      %c0_105 = arith.constant 0 : index
      %c0_106 = arith.constant 0 : index
      %342 = vector.load %arg4[%c0_104, %c0_105, %c0_106] : memref<1x8x128xf32, #tpu.memory_space<vmem>>, vector<1x8x128xf32>
      %343 = vector.shape_cast %342 : vector<1x8x128xf32> to vector<8x128xf32>
      %c0_107 = arith.constant 0 : index
      %c0_108 = arith.constant 0 : index
      %344 = vector.load %arg9[%c0_107, %c0_108] : memref<8x128xf32, #tpu.memory_space<vmem>>, vector<8x128xf32>
      tpu.vector_store %arg9[%c0_107, %c0_108], %343 {strides = array<i32>} : memref<8x128xf32, #tpu.memory_space<vmem>>, vector<8x128xf32>,
      %c0_109 = arith.constant 0 : index
      %c0_110 = arith.constant 0 : index
      %c0_111 = arith.constant 0 : index
      %345 = vector.load %arg5[%c0_109, %c0_110, %c0_111] : memref<1x8x128xf32, #tpu.memory_space<vmem>>, vector<1x8x128xf32>
      %346 = vector.shape_cast %345 : vector<1x8x128xf32> to vector<8x128xf32>
      %c0_112 = arith.constant 0 : index
      %c0_113 = arith.constant 0 : index
      %347 = vector.load %arg10[%c0_112, %c0_113] : memref<8x128xf32, #tpu.memory_space<vmem>>, vector<8x128xf32>
      tpu.vector_store %arg10[%c0_112, %c0_113], %346 {strides = array<i32>} : memref<8x128xf32, #tpu.memory_space<vmem>>, vector<8x128xf32>,
    } else {
    }
    %c0 = arith.constant 0 : index
    %c0_1 = arith.constant 0 : index
    %3 = vector.load %arg6[%c0, %c0_1] : memref<8x1xi32, #tpu.memory_space<vmem>>, vector<8x1xi32>
    %c0_2 = arith.constant 0 : index
    %c0_3 = arith.constant 0 : index
    %c0_4 = arith.constant 0 : index
    %4 = vector.load %arg3[%c0_2, %c0_3, %c0_4] : memref<1x128x512xf32, #tpu.memory_space<vmem>>, vector<1x128x512xf32>
    %5 = vector.shape_cast %4 : vector<1x128x512xf32> to vector<128x512xf32>
    %c8_i32 = arith.constant 8 : i32
    %6 = arith.muli %arg1, %c8_i32 : i32
    %c0_5 = arith.constant 0 : index
    %c0_6 = arith.constant 0 : index
    %7 = vector.load %arg9[%c0_5, %c0_6] : memref<8x128xf32, #tpu.memory_space<vmem>>, vector<8x128xf32>
    %c0_7 = arith.constant 0 : index
    %c0_8 = arith.constant 0 : index
    %8 = vector.load %arg10[%c0_7, %c0_8] : memref<8x128xf32, #tpu.memory_space<vmem>>, vector<8x128xf32>
    %c0_9 = arith.constant 0 : index
    %c0_10 = arith.constant 0 : index
    %c0_11 = arith.constant 0 : index
    %c0_12 = arith.constant 0 : index
    %9 = vector.load %arg2[%c0_9, %c0_10, %c0_11, %c0_12] : memref<1x8x8x512xf32, #tpu.memory_space<vmem>>, vector<1x1x8x512xf32>
    %10 = vector.shape_cast %9 : vector<1x1x8x512xf32> to vector<8x512xf32>
    %cst = arith.constant dense<0.000000e+00> : vector<8x512xf32>
    %11 = tpu.matmul %7, %5, %cst {dimension_numbers = #tpu.dot_dimension_numbers<[1], [0], [0], [1], [0, 0, 1, 1], [], []>} : vector<8x128xf32>, vector<128x512xf32>, vector<8x512xf32> -> vector<8x512xf32>
    %12 = arith.addf %10, %11 : vector<8x512xf32>
    %13 = vector.extract_strided_slice %12 {offsets = [0, 0], sizes = [8, 128], strides = [1, 1]} : vector<8x512xf32> to vector<8x128xf32>
    %14 = arith.negf %13 : vector<8x128xf32>
    %15 = math.exp %14 : vector<8x128xf32>
    %cst_13 = arith.constant 1.000000e+00 : f32
    %16 = vector.broadcast %cst_13 : f32 to vector<8x128xf32>
    %17 = arith.addf %16, %15 : vector<8x128xf32>
    %18 = arith.divf %16, %17 : vector<8x128xf32>
    %19 = vector.extract_strided_slice %12 {offsets = [0, 128], sizes = [8, 128], strides = [1, 1]} : vector<8x512xf32> to vector<8x128xf32>
    %20 = arith.negf %19 : vector<8x128xf32>
    %21 = math.exp %20 : vector<8x128xf32>
    %cst_14 = arith.constant 1.000000e+00 : f32
    %22 = vector.broadcast %cst_14 : f32 to vector<8x128xf32>
    %23 = arith.addf %22, %21 : vector<8x128xf32>
    %24 = arith.divf %22, %23 : vector<8x128xf32>
    %25 = vector.extract_strided_slice %12 {offsets = [0, 256], sizes = [8, 128], strides = [1, 1]} : vector<8x512xf32> to vector<8x128xf32>
    %26 = math.tanh %25 : vector<8x128xf32>
    %27 = vector.extract_strided_slice %12 {offsets = [0, 384], sizes = [8, 128], strides = [1, 1]} : vector<8x512xf32> to vector<8x128xf32>
    %28 = arith.negf %27 : vector<8x128xf32>
    %29 = math.exp %28 : vector<8x128xf32>
    %cst_15 = arith.constant 1.000000e+00 : f32
    %30 = vector.broadcast %cst_15 : f32 to vector<8x128xf32>
    %31 = arith.addf %30, %29 : vector<8x128xf32>
    %32 = arith.divf %30, %31 : vector<8x128xf32>
    %33 = arith.mulf %24, %8 : vector<8x128xf32>
    %34 = arith.mulf %18, %26 : vector<8x128xf32>
    %35 = arith.addf %33, %34 : vector<8x128xf32>
    %36 = math.tanh %35 : vector<8x128xf32>
    %37 = arith.mulf %32, %36 : vector<8x128xf32>
    %c0_i32_16 = arith.constant 0 : i32
    %38 = arith.addi %6, %c0_i32_16 : i32
    %39 = vector.broadcast %38 : i32 to vector<8x1xi32>
    %40 = arith.cmpi slt, %39, %3 : vector<8x1xi32>
    %41 = vector.shape_cast %40 : vector<8x1xi1> to vector<8x1xi1>
    %42 = vector.broadcast %41 : vector<8x1xi1> to vector<8x128xi1>
    %43 = arith.select %42, %37, %7 : vector<8x128xi1>, vector<8x128xf32>
    %44 = vector.shape_cast %40 : vector<8x1xi1> to vector<8x1xi1>
    %45 = vector.broadcast %44 : vector<8x1xi1> to vector<8x128xi1>
    %46 = arith.select %45, %35, %8 : vector<8x128xi1>, vector<8x128xf32>
    %c0_17 = arith.constant 0 : index
    %c0_18 = arith.constant 0 : index
    %c0_19 = arith.constant 0 : index
    %c0_20 = arith.constant 0 : index
    %47 = vector.load %arg7[%c0_17, %c0_18, %c0_19, %c0_20] : memref<1x8x8x128xf32, #tpu.memory_space<vmem>>, vector<1x1x8x128xf32>
    %48 = vector.shape_cast %47 : vector<1x1x8x128xf32> to vector<8x128xf32>
    %49 = vector.shape_cast %43 : vector<8x128xf32> to vector<1x1x8x128xf32>
    tpu.vector_store %arg7[%c0_17, %c0_18, %c0_19, %c0_20], %49 {strides = array<i32>} : memref<1x8x8x128xf32, #tpu.memory_space<vmem>>, vector<1x1x8x128xf32>,
    %c0_21 = arith.constant 0 : index
    %c1 = arith.constant 1 : index
    %c0_22 = arith.constant 0 : index
    %c0_23 = arith.constant 0 : index
    %50 = vector.load %arg2[%c0_21, %c1, %c0_22, %c0_23] : memref<1x8x8x512xf32, #tpu.memory_space<vmem>>, vector<1x1x8x512xf32>
    %51 = vector.shape_cast %50 : vector<1x1x8x512xf32> to vector<8x512xf32>
    %cst_24 = arith.constant dense<0.000000e+00> : vector<8x512xf32>
    %52 = tpu.matmul %43, %5, %cst_24 {dimension_numbers = #tpu.dot_dimension_numbers<[1], [0], [0], [1], [0, 0, 1, 1], [], []>} : vector<8x128xf32>, vector<128x512xf32>, vector<8x512xf32> -> vector<8x512xf32>
    %53 = arith.addf %51, %52 : vector<8x512xf32>
    %54 = vector.extract_strided_slice %53 {offsets = [0, 0], sizes = [8, 128], strides = [1, 1]} : vector<8x512xf32> to vector<8x128xf32>
    %55 = arith.negf %54 : vector<8x128xf32>
    %56 = math.exp %55 : vector<8x128xf32>
    %cst_25 = arith.constant 1.000000e+00 : f32
    %57 = vector.broadcast %cst_25 : f32 to vector<8x128xf32>
    %58 = arith.addf %57, %56 : vector<8x128xf32>
    %59 = arith.divf %57, %58 : vector<8x128xf32>
    %60 = vector.extract_strided_slice %53 {offsets = [0, 128], sizes = [8, 128], strides = [1, 1]} : vector<8x512xf32> to vector<8x128xf32>
    %61 = arith.negf %60 : vector<8x128xf32>
    %62 = math.exp %61 : vector<8x128xf32>
    %cst_26 = arith.constant 1.000000e+00 : f32
    %63 = vector.broadcast %cst_26 : f32 to vector<8x128xf32>
    %64 = arith.addf %63, %62 : vector<8x128xf32>
    %65 = arith.divf %63, %64 : vector<8x128xf32>
    %66 = vector.extract_strided_slice %53 {offsets = [0, 256], sizes = [8, 128], strides = [1, 1]} : vector<8x512xf32> to vector<8x128xf32>
    %67 = math.tanh %66 : vector<8x128xf32>
    %68 = vector.extract_strided_slice %53 {offsets = [0, 384], sizes = [8, 128], strides = [1, 1]} : vector<8x512xf32> to vector<8x128xf32>
    %69 = arith.negf %68 : vector<8x128xf32>
    %70 = math.exp %69 : vector<8x128xf32>
    %cst_27 = arith.constant 1.000000e+00 : f32
    %71 = vector.broadcast %cst_27 : f32 to vector<8x128xf32>
    %72 = arith.addf %71, %70 : vector<8x128xf32>
    %73 = arith.divf %71, %72 : vector<8x128xf32>
    %74 = arith.mulf %65, %46 : vector<8x128xf32>
    %75 = arith.mulf %59, %67 : vector<8x128xf32>
    %76 = arith.addf %74, %75 : vector<8x128xf32>
    %77 = math.tanh %76 : vector<8x128xf32>
    %78 = arith.mulf %73, %77 : vector<8x128xf32>
    %c1_i32 = arith.constant 1 : i32
    %79 = arith.addi %6, %c1_i32 : i32
    %80 = vector.broadcast %79 : i32 to vector<8x1xi32>
    %81 = arith.cmpi slt, %80, %3 : vector<8x1xi32>
    %82 = vector.shape_cast %81 : vector<8x1xi1> to vector<8x1xi1>
    %83 = vector.broadcast %82 : vector<8x1xi1> to vector<8x128xi1>
    %84 = arith.select %83, %78, %43 : vector<8x128xi1>, vector<8x128xf32>
    %85 = vector.shape_cast %81 : vector<8x1xi1> to vector<8x1xi1>
    %86 = vector.broadcast %85 : vector<8x1xi1> to vector<8x128xi1>
    %87 = arith.select %86, %76, %46 : vector<8x128xi1>, vector<8x128xf32>
    %c0_28 = arith.constant 0 : index
    %c1_29 = arith.constant 1 : index
    %c0_30 = arith.constant 0 : index
    %c0_31 = arith.constant 0 : index
    %88 = vector.load %arg7[%c0_28, %c1_29, %c0_30, %c0_31] : memref<1x8x8x128xf32, #tpu.memory_space<vmem>>, vector<1x1x8x128xf32>
    %89 = vector.shape_cast %88 : vector<1x1x8x128xf32> to vector<8x128xf32>
    %90 = vector.shape_cast %84 : vector<8x128xf32> to vector<1x1x8x128xf32>
    tpu.vector_store %arg7[%c0_28, %c1_29, %c0_30, %c0_31], %90 {strides = array<i32>} : memref<1x8x8x128xf32, #tpu.memory_space<vmem>>, vector<1x1x8x128xf32>,
    %c0_32 = arith.constant 0 : index
    %c2 = arith.constant 2 : index
    %c0_33 = arith.constant 0 : index
    %c0_34 = arith.constant 0 : index
    %91 = vector.load %arg2[%c0_32, %c2, %c0_33, %c0_34] : memref<1x8x8x512xf32, #tpu.memory_space<vmem>>, vector<1x1x8x512xf32>
    %92 = vector.shape_cast %91 : vector<1x1x8x512xf32> to vector<8x512xf32>
    %cst_35 = arith.constant dense<0.000000e+00> : vector<8x512xf32>
    %93 = tpu.matmul %84, %5, %cst_35 {dimension_numbers = #tpu.dot_dimension_numbers<[1], [0], [0], [1], [0, 0, 1, 1], [], []>} : vector<8x128xf32>, vector<128x512xf32>, vector<8x512xf32> -> vector<8x512xf32>
    %94 = arith.addf %92, %93 : vector<8x512xf32>
    %95 = vector.extract_strided_slice %94 {offsets = [0, 0], sizes = [8, 128], strides = [1, 1]} : vector<8x512xf32> to vector<8x128xf32>
    %96 = arith.negf %95 : vector<8x128xf32>
    %97 = math.exp %96 : vector<8x128xf32>
    %cst_36 = arith.constant 1.000000e+00 : f32
    %98 = vector.broadcast %cst_36 : f32 to vector<8x128xf32>
    %99 = arith.addf %98, %97 : vector<8x128xf32>
    %100 = arith.divf %98, %99 : vector<8x128xf32>
    %101 = vector.extract_strided_slice %94 {offsets = [0, 128], sizes = [8, 128], strides = [1, 1]} : vector<8x512xf32> to vector<8x128xf32>
    %102 = arith.negf %101 : vector<8x128xf32>
    %103 = math.exp %102 : vector<8x128xf32>
    %cst_37 = arith.constant 1.000000e+00 : f32
    %104 = vector.broadcast %cst_37 : f32 to vector<8x128xf32>
    %105 = arith.addf %104, %103 : vector<8x128xf32>
    %106 = arith.divf %104, %105 : vector<8x128xf32>
    %107 = vector.extract_strided_slice %94 {offsets = [0, 256], sizes = [8, 128], strides = [1, 1]} : vector<8x512xf32> to vector<8x128xf32>
    %108 = math.tanh %107 : vector<8x128xf32>
    %109 = vector.extract_strided_slice %94 {offsets = [0, 384], sizes = [8, 128], strides = [1, 1]} : vector<8x512xf32> to vector<8x128xf32>
    %110 = arith.negf %109 : vector<8x128xf32>
    %111 = math.exp %110 : vector<8x128xf32>
    %cst_38 = arith.constant 1.000000e+00 : f32
    %112 = vector.broadcast %cst_38 : f32 to vector<8x128xf32>
    %113 = arith.addf %112, %111 : vector<8x128xf32>
    %114 = arith.divf %112, %113 : vector<8x128xf32>
    %115 = arith.mulf %106, %87 : vector<8x128xf32>
    %116 = arith.mulf %100, %108 : vector<8x128xf32>
    %117 = arith.addf %115, %116 : vector<8x128xf32>
    %118 = math.tanh %117 : vector<8x128xf32>
    %119 = arith.mulf %114, %118 : vector<8x128xf32>
    %c2_i32 = arith.constant 2 : i32
    %120 = arith.addi %6, %c2_i32 : i32
    %121 = vector.broadcast %120 : i32 to vector<8x1xi32>
    %122 = arith.cmpi slt, %121, %3 : vector<8x1xi32>
    %123 = vector.shape_cast %122 : vector<8x1xi1> to vector<8x1xi1>
    %124 = vector.broadcast %123 : vector<8x1xi1> to vector<8x128xi1>
    %125 = arith.select %124, %119, %84 : vector<8x128xi1>, vector<8x128xf32>
    %126 = vector.shape_cast %122 : vector<8x1xi1> to vector<8x1xi1>
    %127 = vector.broadcast %126 : vector<8x1xi1> to vector<8x128xi1>
    %128 = arith.select %127, %117, %87 : vector<8x128xi1>, vector<8x128xf32>
    %c0_39 = arith.constant 0 : index
    %c2_40 = arith.constant 2 : index
    %c0_41 = arith.constant 0 : index
    %c0_42 = arith.constant 0 : index
    %129 = vector.load %arg7[%c0_39, %c2_40, %c0_41, %c0_42] : memref<1x8x8x128xf32, #tpu.memory_space<vmem>>, vector<1x1x8x128xf32>
    %130 = vector.shape_cast %129 : vector<1x1x8x128xf32> to vector<8x128xf32>
    %131 = vector.shape_cast %125 : vector<8x128xf32> to vector<1x1x8x128xf32>
    tpu.vector_store %arg7[%c0_39, %c2_40, %c0_41, %c0_42], %131 {strides = array<i32>} : memref<1x8x8x128xf32, #tpu.memory_space<vmem>>, vector<1x1x8x128xf32>,
    %c0_43 = arith.constant 0 : index
    %c3 = arith.constant 3 : index
    %c0_44 = arith.constant 0 : index
    %c0_45 = arith.constant 0 : index
    %132 = vector.load %arg2[%c0_43, %c3, %c0_44, %c0_45] : memref<1x8x8x512xf32, #tpu.memory_space<vmem>>, vector<1x1x8x512xf32>
    %133 = vector.shape_cast %132 : vector<1x1x8x512xf32> to vector<8x512xf32>
    %cst_46 = arith.constant dense<0.000000e+00> : vector<8x512xf32>
    %134 = tpu.matmul %125, %5, %cst_46 {dimension_numbers = #tpu.dot_dimension_numbers<[1], [0], [0], [1], [0, 0, 1, 1], [], []>} : vector<8x128xf32>, vector<128x512xf32>, vector<8x512xf32> -> vector<8x512xf32>
    %135 = arith.addf %133, %134 : vector<8x512xf32>
    %136 = vector.extract_strided_slice %135 {offsets = [0, 0], sizes = [8, 128], strides = [1, 1]} : vector<8x512xf32> to vector<8x128xf32>
    %137 = arith.negf %136 : vector<8x128xf32>
    %138 = math.exp %137 : vector<8x128xf32>
    %cst_47 = arith.constant 1.000000e+00 : f32
    %139 = vector.broadcast %cst_47 : f32 to vector<8x128xf32>
    %140 = arith.addf %139, %138 : vector<8x128xf32>
    %141 = arith.divf %139, %140 : vector<8x128xf32>
    %142 = vector.extract_strided_slice %135 {offsets = [0, 128], sizes = [8, 128], strides = [1, 1]} : vector<8x512xf32> to vector<8x128xf32>
    %143 = arith.negf %142 : vector<8x128xf32>
    %144 = math.exp %143 : vector<8x128xf32>
    %cst_48 = arith.constant 1.000000e+00 : f32
    %145 = vector.broadcast %cst_48 : f32 to vector<8x128xf32>
    %146 = arith.addf %145, %144 : vector<8x128xf32>
    %147 = arith.divf %145, %146 : vector<8x128xf32>
    %148 = vector.extract_strided_slice %135 {offsets = [0, 256], sizes = [8, 128], strides = [1, 1]} : vector<8x512xf32> to vector<8x128xf32>
    %149 = math.tanh %148 : vector<8x128xf32>
    %150 = vector.extract_strided_slice %135 {offsets = [0, 384], sizes = [8, 128], strides = [1, 1]} : vector<8x512xf32> to vector<8x128xf32>
    %151 = arith.negf %150 : vector<8x128xf32>
    %152 = math.exp %151 : vector<8x128xf32>
    %cst_49 = arith.constant 1.000000e+00 : f32
    %153 = vector.broadcast %cst_49 : f32 to vector<8x128xf32>
    %154 = arith.addf %153, %152 : vector<8x128xf32>
    %155 = arith.divf %153, %154 : vector<8x128xf32>
    %156 = arith.mulf %147, %128 : vector<8x128xf32>
    %157 = arith.mulf %141, %149 : vector<8x128xf32>
    %158 = arith.addf %156, %157 : vector<8x128xf32>
    %159 = math.tanh %158 : vector<8x128xf32>
    %160 = arith.mulf %155, %159 : vector<8x128xf32>
    %c3_i32 = arith.constant 3 : i32
    %161 = arith.addi %6, %c3_i32 : i32
    %162 = vector.broadcast %161 : i32 to vector<8x1xi32>
    %163 = arith.cmpi slt, %162, %3 : vector<8x1xi32>
    %164 = vector.shape_cast %163 : vector<8x1xi1> to vector<8x1xi1>
    %165 = vector.broadcast %164 : vector<8x1xi1> to vector<8x128xi1>
    %166 = arith.select %165, %160, %125 : vector<8x128xi1>, vector<8x128xf32>
    %167 = vector.shape_cast %163 : vector<8x1xi1> to vector<8x1xi1>
    %168 = vector.broadcast %167 : vector<8x1xi1> to vector<8x128xi1>
    %169 = arith.select %168, %158, %128 : vector<8x128xi1>, vector<8x128xf32>
    %c0_50 = arith.constant 0 : index
    %c3_51 = arith.constant 3 : index
    %c0_52 = arith.constant 0 : index
    %c0_53 = arith.constant 0 : index
    %170 = vector.load %arg7[%c0_50, %c3_51, %c0_52, %c0_53] : memref<1x8x8x128xf32, #tpu.memory_space<vmem>>, vector<1x1x8x128xf32>
    %171 = vector.shape_cast %170 : vector<1x1x8x128xf32> to vector<8x128xf32>
    %172 = vector.shape_cast %166 : vector<8x128xf32> to vector<1x1x8x128xf32>
    tpu.vector_store %arg7[%c0_50, %c3_51, %c0_52, %c0_53], %172 {strides = array<i32>} : memref<1x8x8x128xf32, #tpu.memory_space<vmem>>, vector<1x1x8x128xf32>,
    %c0_54 = arith.constant 0 : index
    %c4 = arith.constant 4 : index
    %c0_55 = arith.constant 0 : index
    %c0_56 = arith.constant 0 : index
    %173 = vector.load %arg2[%c0_54, %c4, %c0_55, %c0_56] : memref<1x8x8x512xf32, #tpu.memory_space<vmem>>, vector<1x1x8x512xf32>
    %174 = vector.shape_cast %173 : vector<1x1x8x512xf32> to vector<8x512xf32>
    %cst_57 = arith.constant dense<0.000000e+00> : vector<8x512xf32>
    %175 = tpu.matmul %166, %5, %cst_57 {dimension_numbers = #tpu.dot_dimension_numbers<[1], [0], [0], [1], [0, 0, 1, 1], [], []>} : vector<8x128xf32>, vector<128x512xf32>, vector<8x512xf32> -> vector<8x512xf32>
    %176 = arith.addf %174, %175 : vector<8x512xf32>
    %177 = vector.extract_strided_slice %176 {offsets = [0, 0], sizes = [8, 128], strides = [1, 1]} : vector<8x512xf32> to vector<8x128xf32>
    %178 = arith.negf %177 : vector<8x128xf32>
    %179 = math.exp %178 : vector<8x128xf32>
    %cst_58 = arith.constant 1.000000e+00 : f32
    %180 = vector.broadcast %cst_58 : f32 to vector<8x128xf32>
    %181 = arith.addf %180, %179 : vector<8x128xf32>
    %182 = arith.divf %180, %181 : vector<8x128xf32>
    %183 = vector.extract_strided_slice %176 {offsets = [0, 128], sizes = [8, 128], strides = [1, 1]} : vector<8x512xf32> to vector<8x128xf32>
    %184 = arith.negf %183 : vector<8x128xf32>
    %185 = math.exp %184 : vector<8x128xf32>
    %cst_59 = arith.constant 1.000000e+00 : f32
    %186 = vector.broadcast %cst_59 : f32 to vector<8x128xf32>
    %187 = arith.addf %186, %185 : vector<8x128xf32>
    %188 = arith.divf %186, %187 : vector<8x128xf32>
    %189 = vector.extract_strided_slice %176 {offsets = [0, 256], sizes = [8, 128], strides = [1, 1]} : vector<8x512xf32> to vector<8x128xf32>
    %190 = math.tanh %189 : vector<8x128xf32>
    %191 = vector.extract_strided_slice %176 {offsets = [0, 384], sizes = [8, 128], strides = [1, 1]} : vector<8x512xf32> to vector<8x128xf32>
    %192 = arith.negf %191 : vector<8x128xf32>
    %193 = math.exp %192 : vector<8x128xf32>
    %cst_60 = arith.constant 1.000000e+00 : f32
    %194 = vector.broadcast %cst_60 : f32 to vector<8x128xf32>
    %195 = arith.addf %194, %193 : vector<8x128xf32>
    %196 = arith.divf %194, %195 : vector<8x128xf32>
    %197 = arith.mulf %188, %169 : vector<8x128xf32>
    %198 = arith.mulf %182, %190 : vector<8x128xf32>
    %199 = arith.addf %197, %198 : vector<8x128xf32>
    %200 = math.tanh %199 : vector<8x128xf32>
    %201 = arith.mulf %196, %200 : vector<8x128xf32>
    %c4_i32 = arith.constant 4 : i32
    %202 = arith.addi %6, %c4_i32 : i32
    %203 = vector.broadcast %202 : i32 to vector<8x1xi32>
    %204 = arith.cmpi slt, %203, %3 : vector<8x1xi32>
    %205 = vector.shape_cast %204 : vector<8x1xi1> to vector<8x1xi1>
    %206 = vector.broadcast %205 : vector<8x1xi1> to vector<8x128xi1>
    %207 = arith.select %206, %201, %166 : vector<8x128xi1>, vector<8x128xf32>
    %208 = vector.shape_cast %204 : vector<8x1xi1> to vector<8x1xi1>
    %209 = vector.broadcast %208 : vector<8x1xi1> to vector<8x128xi1>
    %210 = arith.select %209, %199, %169 : vector<8x128xi1>, vector<8x128xf32>
    %c0_61 = arith.constant 0 : index
    %c4_62 = arith.constant 4 : index
    %c0_63 = arith.constant 0 : index
    %c0_64 = arith.constant 0 : index
    %211 = vector.load %arg7[%c0_61, %c4_62, %c0_63, %c0_64] : memref<1x8x8x128xf32, #tpu.memory_space<vmem>>, vector<1x1x8x128xf32>
    %212 = vector.shape_cast %211 : vector<1x1x8x128xf32> to vector<8x128xf32>
    %213 = vector.shape_cast %207 : vector<8x128xf32> to vector<1x1x8x128xf32>
    tpu.vector_store %arg7[%c0_61, %c4_62, %c0_63, %c0_64], %213 {strides = array<i32>} : memref<1x8x8x128xf32, #tpu.memory_space<vmem>>, vector<1x1x8x128xf32>,
    %c0_65 = arith.constant 0 : index
    %c5 = arith.constant 5 : index
    %c0_66 = arith.constant 0 : index
    %c0_67 = arith.constant 0 : index
    %214 = vector.load %arg2[%c0_65, %c5, %c0_66, %c0_67] : memref<1x8x8x512xf32, #tpu.memory_space<vmem>>, vector<1x1x8x512xf32>
    %215 = vector.shape_cast %214 : vector<1x1x8x512xf32> to vector<8x512xf32>
    %cst_68 = arith.constant dense<0.000000e+00> : vector<8x512xf32>
    %216 = tpu.matmul %207, %5, %cst_68 {dimension_numbers = #tpu.dot_dimension_numbers<[1], [0], [0], [1], [0, 0, 1, 1], [], []>} : vector<8x128xf32>, vector<128x512xf32>, vector<8x512xf32> -> vector<8x512xf32>
    %217 = arith.addf %215, %216 : vector<8x512xf32>
    %218 = vector.extract_strided_slice %217 {offsets = [0, 0], sizes = [8, 128], strides = [1, 1]} : vector<8x512xf32> to vector<8x128xf32>
    %219 = arith.negf %218 : vector<8x128xf32>
    %220 = math.exp %219 : vector<8x128xf32>
    %cst_69 = arith.constant 1.000000e+00 : f32
    %221 = vector.broadcast %cst_69 : f32 to vector<8x128xf32>
    %222 = arith.addf %221, %220 : vector<8x128xf32>
    %223 = arith.divf %221, %222 : vector<8x128xf32>
    %224 = vector.extract_strided_slice %217 {offsets = [0, 128], sizes = [8, 128], strides = [1, 1]} : vector<8x512xf32> to vector<8x128xf32>
    %225 = arith.negf %224 : vector<8x128xf32>
    %226 = math.exp %225 : vector<8x128xf32>
    %cst_70 = arith.constant 1.000000e+00 : f32
    %227 = vector.broadcast %cst_70 : f32 to vector<8x128xf32>
    %228 = arith.addf %227, %226 : vector<8x128xf32>
    %229 = arith.divf %227, %228 : vector<8x128xf32>
    %230 = vector.extract_strided_slice %217 {offsets = [0, 256], sizes = [8, 128], strides = [1, 1]} : vector<8x512xf32> to vector<8x128xf32>
    %231 = math.tanh %230 : vector<8x128xf32>
    %232 = vector.extract_strided_slice %217 {offsets = [0, 384], sizes = [8, 128], strides = [1, 1]} : vector<8x512xf32> to vector<8x128xf32>
    %233 = arith.negf %232 : vector<8x128xf32>
    %234 = math.exp %233 : vector<8x128xf32>
    %cst_71 = arith.constant 1.000000e+00 : f32
    %235 = vector.broadcast %cst_71 : f32 to vector<8x128xf32>
    %236 = arith.addf %235, %234 : vector<8x128xf32>
    %237 = arith.divf %235, %236 : vector<8x128xf32>
    %238 = arith.mulf %229, %210 : vector<8x128xf32>
    %239 = arith.mulf %223, %231 : vector<8x128xf32>
    %240 = arith.addf %238, %239 : vector<8x128xf32>
    %241 = math.tanh %240 : vector<8x128xf32>
    %242 = arith.mulf %237, %241 : vector<8x128xf32>
    %c5_i32 = arith.constant 5 : i32
    %243 = arith.addi %6, %c5_i32 : i32
    %244 = vector.broadcast %243 : i32 to vector<8x1xi32>
    %245 = arith.cmpi slt, %244, %3 : vector<8x1xi32>
    %246 = vector.shape_cast %245 : vector<8x1xi1> to vector<8x1xi1>
    %247 = vector.broadcast %246 : vector<8x1xi1> to vector<8x128xi1>
    %248 = arith.select %247, %242, %207 : vector<8x128xi1>, vector<8x128xf32>
    %249 = vector.shape_cast %245 : vector<8x1xi1> to vector<8x1xi1>
    %250 = vector.broadcast %249 : vector<8x1xi1> to vector<8x128xi1>
    %251 = arith.select %250, %240, %210 : vector<8x128xi1>, vector<8x128xf32>
    %c0_72 = arith.constant 0 : index
    %c5_73 = arith.constant 5 : index
    %c0_74 = arith.constant 0 : index
    %c0_75 = arith.constant 0 : index
    %252 = vector.load %arg7[%c0_72, %c5_73, %c0_74, %c0_75] : memref<1x8x8x128xf32, #tpu.memory_space<vmem>>, vector<1x1x8x128xf32>
    %253 = vector.shape_cast %252 : vector<1x1x8x128xf32> to vector<8x128xf32>
    %254 = vector.shape_cast %248 : vector<8x128xf32> to vector<1x1x8x128xf32>
    tpu.vector_store %arg7[%c0_72, %c5_73, %c0_74, %c0_75], %254 {strides = array<i32>} : memref<1x8x8x128xf32, #tpu.memory_space<vmem>>, vector<1x1x8x128xf32>,
    %c0_76 = arith.constant 0 : index
    %c6 = arith.constant 6 : index
    %c0_77 = arith.constant 0 : index
    %c0_78 = arith.constant 0 : index
    %255 = vector.load %arg2[%c0_76, %c6, %c0_77, %c0_78] : memref<1x8x8x512xf32, #tpu.memory_space<vmem>>, vector<1x1x8x512xf32>
    %256 = vector.shape_cast %255 : vector<1x1x8x512xf32> to vector<8x512xf32>
    %cst_79 = arith.constant dense<0.000000e+00> : vector<8x512xf32>
    %257 = tpu.matmul %248, %5, %cst_79 {dimension_numbers = #tpu.dot_dimension_numbers<[1], [0], [0], [1], [0, 0, 1, 1], [], []>} : vector<8x128xf32>, vector<128x512xf32>, vector<8x512xf32> -> vector<8x512xf32>
    %258 = arith.addf %256, %257 : vector<8x512xf32>
    %259 = vector.extract_strided_slice %258 {offsets = [0, 0], sizes = [8, 128], strides = [1, 1]} : vector<8x512xf32> to vector<8x128xf32>
    %260 = arith.negf %259 : vector<8x128xf32>
    %261 = math.exp %260 : vector<8x128xf32>
    %cst_80 = arith.constant 1.000000e+00 : f32
    %262 = vector.broadcast %cst_80 : f32 to vector<8x128xf32>
    %263 = arith.addf %262, %261 : vector<8x128xf32>
    %264 = arith.divf %262, %263 : vector<8x128xf32>
    %265 = vector.extract_strided_slice %258 {offsets = [0, 128], sizes = [8, 128], strides = [1, 1]} : vector<8x512xf32> to vector<8x128xf32>
    %266 = arith.negf %265 : vector<8x128xf32>
    %267 = math.exp %266 : vector<8x128xf32>
    %cst_81 = arith.constant 1.000000e+00 : f32
    %268 = vector.broadcast %cst_81 : f32 to vector<8x128xf32>
    %269 = arith.addf %268, %267 : vector<8x128xf32>
    %270 = arith.divf %268, %269 : vector<8x128xf32>
    %271 = vector.extract_strided_slice %258 {offsets = [0, 256], sizes = [8, 128], strides = [1, 1]} : vector<8x512xf32> to vector<8x128xf32>
    %272 = math.tanh %271 : vector<8x128xf32>
    %273 = vector.extract_strided_slice %258 {offsets = [0, 384], sizes = [8, 128], strides = [1, 1]} : vector<8x512xf32> to vector<8x128xf32>
    %274 = arith.negf %273 : vector<8x128xf32>
    %275 = math.exp %274 : vector<8x128xf32>
    %cst_82 = arith.constant 1.000000e+00 : f32
    %276 = vector.broadcast %cst_82 : f32 to vector<8x128xf32>
    %277 = arith.addf %276, %275 : vector<8x128xf32>
    %278 = arith.divf %276, %277 : vector<8x128xf32>
    %279 = arith.mulf %270, %251 : vector<8x128xf32>
    %280 = arith.mulf %264, %272 : vector<8x128xf32>
    %281 = arith.addf %279, %280 : vector<8x128xf32>
    %282 = math.tanh %281 : vector<8x128xf32>
    %283 = arith.mulf %278, %282 : vector<8x128xf32>
    %c6_i32 = arith.constant 6 : i32
    %284 = arith.addi %6, %c6_i32 : i32
    %285 = vector.broadcast %284 : i32 to vector<8x1xi32>
    %286 = arith.cmpi slt, %285, %3 : vector<8x1xi32>
    %287 = vector.shape_cast %286 : vector<8x1xi1> to vector<8x1xi1>
    %288 = vector.broadcast %287 : vector<8x1xi1> to vector<8x128xi1>
    %289 = arith.select %288, %283, %248 : vector<8x128xi1>, vector<8x128xf32>
    %290 = vector.shape_cast %286 : vector<8x1xi1> to vector<8x1xi1>
    %291 = vector.broadcast %290 : vector<8x1xi1> to vector<8x128xi1>
    %292 = arith.select %291, %281, %251 : vector<8x128xi1>, vector<8x128xf32>
    %c0_83 = arith.constant 0 : index
    %c6_84 = arith.constant 6 : index
    %c0_85 = arith.constant 0 : index
    %c0_86 = arith.constant 0 : index
    %293 = vector.load %arg7[%c0_83, %c6_84, %c0_85, %c0_86] : memref<1x8x8x128xf32, #tpu.memory_space<vmem>>, vector<1x1x8x128xf32>
    %294 = vector.shape_cast %293 : vector<1x1x8x128xf32> to vector<8x128xf32>
    %295 = vector.shape_cast %289 : vector<8x128xf32> to vector<1x1x8x128xf32>
    tpu.vector_store %arg7[%c0_83, %c6_84, %c0_85, %c0_86], %295 {strides = array<i32>} : memref<1x8x8x128xf32, #tpu.memory_space<vmem>>, vector<1x1x8x128xf32>,
    %c0_87 = arith.constant 0 : index
    %c7 = arith.constant 7 : index
    %c0_88 = arith.constant 0 : index
    %c0_89 = arith.constant 0 : index
    %296 = vector.load %arg2[%c0_87, %c7, %c0_88, %c0_89] : memref<1x8x8x512xf32, #tpu.memory_space<vmem>>, vector<1x1x8x512xf32>
    %297 = vector.shape_cast %296 : vector<1x1x8x512xf32> to vector<8x512xf32>
    %cst_90 = arith.constant dense<0.000000e+00> : vector<8x512xf32>
    %298 = tpu.matmul %289, %5, %cst_90 {dimension_numbers = #tpu.dot_dimension_numbers<[1], [0], [0], [1], [0, 0, 1, 1], [], []>} : vector<8x128xf32>, vector<128x512xf32>, vector<8x512xf32> -> vector<8x512xf32>
    %299 = arith.addf %297, %298 : vector<8x512xf32>
    %300 = vector.extract_strided_slice %299 {offsets = [0, 0], sizes = [8, 128], strides = [1, 1]} : vector<8x512xf32> to vector<8x128xf32>
    %301 = arith.negf %300 : vector<8x128xf32>
    %302 = math.exp %301 : vector<8x128xf32>
    %cst_91 = arith.constant 1.000000e+00 : f32
    %303 = vector.broadcast %cst_91 : f32 to vector<8x128xf32>
    %304 = arith.addf %303, %302 : vector<8x128xf32>
    %305 = arith.divf %303, %304 : vector<8x128xf32>
    %306 = vector.extract_strided_slice %299 {offsets = [0, 128], sizes = [8, 128], strides = [1, 1]} : vector<8x512xf32> to vector<8x128xf32>
    %307 = arith.negf %306 : vector<8x128xf32>
    %308 = math.exp %307 : vector<8x128xf32>
    %cst_92 = arith.constant 1.000000e+00 : f32
    %309 = vector.broadcast %cst_92 : f32 to vector<8x128xf32>
    %310 = arith.addf %309, %308 : vector<8x128xf32>
    %311 = arith.divf %309, %310 : vector<8x128xf32>
    %312 = vector.extract_strided_slice %299 {offsets = [0, 256], sizes = [8, 128], strides = [1, 1]} : vector<8x512xf32> to vector<8x128xf32>
    %313 = math.tanh %312 : vector<8x128xf32>
    %314 = vector.extract_strided_slice %299 {offsets = [0, 384], sizes = [8, 128], strides = [1, 1]} : vector<8x512xf32> to vector<8x128xf32>
    %315 = arith.negf %314 : vector<8x128xf32>
    %316 = math.exp %315 : vector<8x128xf32>
    %cst_93 = arith.constant 1.000000e+00 : f32
    %317 = vector.broadcast %cst_93 : f32 to vector<8x128xf32>
    %318 = arith.addf %317, %316 : vector<8x128xf32>
    %319 = arith.divf %317, %318 : vector<8x128xf32>
    %320 = arith.mulf %311, %292 : vector<8x128xf32>
    %321 = arith.mulf %305, %313 : vector<8x128xf32>
    %322 = arith.addf %320, %321 : vector<8x128xf32>
    %323 = math.tanh %322 : vector<8x128xf32>
    %324 = arith.mulf %319, %323 : vector<8x128xf32>
    %c7_i32 = arith.constant 7 : i32
    %325 = arith.addi %6, %c7_i32 : i32
    %326 = vector.broadcast %325 : i32 to vector<8x1xi32>
    %327 = arith.cmpi slt, %326, %3 : vector<8x1xi32>
    %328 = vector.shape_cast %327 : vector<8x1xi1> to vector<8x1xi1>
    %329 = vector.broadcast %328 : vector<8x1xi1> to vector<8x128xi1>
    %330 = arith.select %329, %324, %289 : vector<8x128xi1>, vector<8x128xf32>
    %331 = vector.shape_cast %327 : vector<8x1xi1> to vector<8x1xi1>
    %332 = vector.broadcast %331 : vector<8x1xi1> to vector<8x128xi1>
    %333 = arith.select %332, %322, %292 : vector<8x128xi1>, vector<8x128xf32>
    %c0_94 = arith.constant 0 : index
    %c7_95 = arith.constant 7 : index
    %c0_96 = arith.constant 0 : index
    %c0_97 = arith.constant 0 : index
    %334 = vector.load %arg7[%c0_94, %c7_95, %c0_96, %c0_97] : memref<1x8x8x128xf32, #tpu.memory_space<vmem>>, vector<1x1x8x128xf32>
    %335 = vector.shape_cast %334 : vector<1x1x8x128xf32> to vector<8x128xf32>
    %336 = vector.shape_cast %330 : vector<8x128xf32> to vector<1x1x8x128xf32>
    tpu.vector_store %arg7[%c0_94, %c7_95, %c0_96, %c0_97], %336 {strides = array<i32>} : memref<1x8x8x128xf32, #tpu.memory_space<vmem>>, vector<1x1x8x128xf32>,
    %c0_98 = arith.constant 0 : index
    %c0_99 = arith.constant 0 : index
    %337 = vector.load %arg9[%c0_98, %c0_99] : memref<8x128xf32, #tpu.memory_space<vmem>>, vector<8x128xf32>
    tpu.vector_store %arg9[%c0_98, %c0_99], %330 {strides = array<i32>} : memref<8x128xf32, #tpu.memory_space<vmem>>, vector<8x128xf32>,
    %c0_100 = arith.constant 0 : index
    %c0_101 = arith.constant 0 : index
    %338 = vector.load %arg10[%c0_100, %c0_101] : memref<8x128xf32, #tpu.memory_space<vmem>>, vector<8x128xf32>
    tpu.vector_store %arg10[%c0_100, %c0_101], %333 {strides = array<i32>} : memref<8x128xf32, #tpu.memory_space<vmem>>, vector<8x128xf32>,
    %c0_i32_102 = arith.constant 0 : i32
    %339 = arith.cmpi eq, %arg1, %c0_i32_102 : i32
    %340 = arith.extui %339 : i1 to i32
    %c0_i32_103 = arith.constant 0 : i32
    %341 = arith.cmpi ne, %340, %c0_i32_103 : i32
    scf.if %341 {
      %c0_104 = arith.constant 0 : index
      %c0_105 = arith.constant 0 : index
      %c0_106 = arith.constant 0 : index
      %342 = vector.load %arg8[%c0_104, %c0_105, %c0_106] : memref<1x8x128xf32, #tpu.memory_space<vmem>>, vector<1x8x128xf32>
      %343 = vector.shape_cast %342 : vector<1x8x128xf32> to vector<8x128xf32>
      %344 = vector.shape_cast %330 : vector<8x128xf32> to vector<1x8x128xf32>
      tpu.vector_store %arg8[%c0_104, %c0_105, %c0_106], %344 {strides = array<i32>} : memref<1x8x128xf32, #tpu.memory_space<vmem>>, vector<1x8x128xf32>,
    } else {
    }
    return
  }
  func.func @transform_0(%arg0: i32, %arg1: i32) -> (i32, i32, i32, i32) {
    %c0_i32 = arith.constant 0 : i32
    %c0_i32_0 = arith.constant 0 : i32
    %c0_i32_1 = arith.constant 0 : i32
    return %arg0, %arg1, %c0_i32, %c0_i32_0 : i32, i32, i32, i32
  }
  func.func @transform_1(%arg0: i32, %arg1: i32) -> (i32, i32, i32) {
    %c0_i32 = arith.constant 0 : i32
    %c0_i32_0 = arith.constant 0 : i32
    %c0_i32_1 = arith.constant 0 : i32
    return %arg0, %c0_i32, %c0_i32_0 : i32, i32, i32
  }
  func.func @transform_2(%arg0: i32, %arg1: i32) -> (i32, i32, i32) {
    %c0_i32 = arith.constant 0 : i32
    %c0_i32_0 = arith.constant 0 : i32
    %c0_i32_1 = arith.constant 0 : i32
    return %arg0, %c0_i32, %c0_i32_0 : i32, i32, i32
  }
  func.func @transform_3(%arg0: i32, %arg1: i32) -> (i32, i32, i32) {
    %c0_i32 = arith.constant 0 : i32
    %c0_i32_0 = arith.constant 0 : i32
    %c0_i32_1 = arith.constant 0 : i32
    return %arg0, %c0_i32, %c0_i32_0 : i32, i32, i32
  }
  func.func @transform_4(%arg0: i32, %arg1: i32) -> (i32, i32) {
    %c0_i32 = arith.constant 0 : i32
    %c0_i32_0 = arith.constant 0 : i32
    %c0_i32_1 = arith.constant 0 : i32
    return %c0_i32, %c0_i32_0 : i32, i32
  }
  func.func @transform_5(%arg0: i32, %arg1: i32) -> (i32, i32, i32, i32) {
    %c0_i32 = arith.constant 0 : i32
    %c0_i32_0 = arith.constant 0 : i32
    %c0_i32_1 = arith.constant 0 : i32
    return %arg0, %arg1, %c0_i32, %c0_i32_0 : i32, i32, i32, i32
  }
  func.func @transform_6(%arg0: i32, %arg1: i32) -> (i32, i32, i32) {
    %c0_i32 = arith.constant 0 : i32
    %c0_i32_0 = arith.constant 0 : i32
    %c0_i32_1 = arith.constant 0 : i32
    return %arg0, %c0_i32, %c0_i32_0 : i32, i32, i32
  }
}

</mosaic_0001>

<llo_original>
// kernel: encoder_forward.3
$region0: #{encoder_forward.3}
  #allocation0 [shape = 'u32[]', space=smem, size = 0x4, offset = 0x4, fixed_abs, tag = 'smem constant byte address 0x4 - core index']
  #allocation1 [shape = 'u32[72,128]{1,0:T(1,128)}', space=vmem, size = 0x9000, scoped, tag = 'internal scratch']
  #allocation2 [shape = 'f32[8,128]{1,0:T(8,128)}', space=vmem, size = 0x1000, scoped, tag = 'scratch operand']
  #allocation3 [shape = 'f32[8,128]{1,0:T(8,128)}', space=vmem, size = 0x1000, scoped, tag = 'scratch operand']
  %s0 = inlined_call_operand.vmem [shape: f32[2,8,8,512], index: 0, kind: input, shape index: {}]
  %s1 = inlined_call_operand.vmem [shape: f32[2,128,512], index: 1, kind: input, shape index: {}]
  %s2 = inlined_call_operand.vmem [shape: f32[2,8,128], index: 2, kind: input, shape index: {}, may-alias: {2,3}]
  %s3 = inlined_call_operand.vmem [shape: f32[2,8,128], index: 3, kind: input, shape index: {}, may-alias: {2,3}]
  %s4 = inlined_call_operand.vmem [shape: s32[8,1], index: 4, kind: input, shape index: {}]
  %s5 = inlined_call_operand.hbm [shape: f32[2,8,8,128], index: 5, kind: output, shape index: {0}]
  %s6 = inlined_call_operand.vmem [shape: f32[2,8,128], index: 6, kind: output, shape index: {1}]
  %7 = xla_tuple %s5, %s6
  %s8 = sld [smem:[#allocation0]]
  $region69: #{encoder_forward.3} parent=0
    _
  %s10 = ssub.s32 1, %s8
  %s11 = scalar_select 0, %s10, %s8
  $region1: #{encoder_forward.3} parent=0
    #allocation4 [shape = 'u8[65536]{0}', space=vmem, size = 0x10000, scoped, tag = 'output window, operand 0']
    #allocation5 [shape = 's32[2]{0}', space=sflag, size = 0x8, scoped, tag = 'scoped memory for encoder_forward.3']
    %12 = vsyncpa [#allocation5], 0
    %s13 = scalar_lea.sflag [#allocation5], 1
    %14 = vsyncpa %s13, 0
    loop: start=0, step=1, limit=4
    $region2: #{encoder_forward.3} parent=1 // loop_pre_header
      _
    $region3: #{encoder_forward.3} parent=1 // loop_header
      %s16 = sphi 0, %s20
      %p17 = scmp.ge.s32.totalorder %s16, 4
      %s23 = sphi 0, %s35
      %s24 = sphi 0, %s31
      %s25 = sphi 0, %s23
      %s26 = sphi 0, %s24
      %s27 = sphi 0, %s25
      %s28 = sphi 0, %s26
      %s40 = sphi 0, %s42
      %s43 = sphi 0, %s40
      %s44 = sphi 0, %s43
      %s60 = sphi 0, %s44
      %s66 = sphi 0, %s68
      %s69 = sphi 0, %s66
      %s70 = sphi 0, %s69
      %s86 = sphi 0, %s70
      %s92 = sphi 0, %s94
      %s95 = sphi 0, %s92
      %s96 = sphi 0, %s95
      %s112 = sphi 0, %s96
      %s118 = sphi 0, %s120
      %s121 = sphi 0, %s118
      %s122 = sphi 0, %s121
      %s138 = sphi 0, %s122
      %s142 = sphi 0, %s142
      %s144 = sphi 0, %s142
      %s145 = sphi 0, %s144
      %s159 = sphi 0, %s145
      %s167 = sphi 0, %s169
      %s170 = sphi 0, %s167
      %s171 = sphi 0, %s170
      %s187 = sphi 0, %s171
      %s193 = sphi 0, %s195
      %s196 = sphi 0, %s193
      %s197 = sphi 0, %s196
      %s213 = sphi 0, %s197
    $region4: #{encoder_forward.3} parent=1 // loop_header_branch
      %19 = sbr.rel (%p17) target = $region8
    $region5: #{encoder_forward.3} parent=1 // loop_body
      %s21 = ssub.s32 %s16, 1
      %s22 = ssub.s32 %s16, 2
      %s29 = sadd.s32 1, %s24
      %p30 = scmp.ge.s32.totalorder %s29, 1
      %s31 = scalar_select %p30, 0, %s29
      %s32 = sadd.s32 1, %s23
      %s33 = scalar_select %p30, %s32, %s23
      %p34 = scmp.ge.s32.totalorder %s33, 2
      %s35 = scalar_select %p34, 0, %s33
      %s36 = ssub.s32 %s23, %s35
      %s37 = ssub.s32 %s24, %s31
      %s38 = sor.u32 %s36, %s37
      %p39 = scmp.eq.s32.totalorder %s38, 0
      %s41 = sadd.s32 %s40, 1
      %s42 = scalar_select %p39, %s40, %s41
      %p45 = pneg %p39
      %p46 = scmp.eq.s32.totalorder %s16, 1
      %p47 = por %p45, %p46
      %p48 = scmp.ne.s32.totalorder %s40, %s43
      %p49 = scmp.eq.s32.totalorder %s16, 0
      %p50 = por %p48, %p49
      %p51 = scmp.ne.s32.totalorder %s40, %s43
      %p52 = scmp.eq.s32.totalorder %s21, 1
      %p53 = por %p51, %p52
      %p54 = scmp.ne.s32.totalorder %s43, %s44
      %p55 = scmp.eq.s32.totalorder %s21, 0
      %p56 = por %p54, %p55
      %p57 = scmp.ne.s32.totalorder %s43, %s44
      %p58 = scmp.eq.s32.totalorder %s22, 1
      %p59 = por %p57, %p58
      %p61 = scmp.ne.s32.totalorder %s44, %s60
      %p62 = scmp.eq.s32.totalorder %s22, 0
      %p63 = por %p61, %p62
      %s64 = ssub.s32 %s23, %s35
      %p65 = scmp.eq.s32.totalorder %s64, 0
      %s67 = sadd.s32 %s66, 1
      %s68 = scalar_select %p65, %s66, %s67
      %p71 = pneg %p65
      %p72 = scmp.eq.s32.totalorder %s16, 1
      %p73 = por %p71, %p72
      %p74 = scmp.ne.s32.totalorder %s66, %s69
      %p75 = scmp.eq.s32.totalorder %s16, 0
      %p76 = por %p74, %p75
      %p77 = scmp.ne.s32.totalorder %s66, %s69
      %p78 = scmp.eq.s32.totalorder %s21, 1
      %p79 = por %p77, %p78
      %p80 = scmp.ne.s32.totalorder %s69, %s70
      %p81 = scmp.eq.s32.totalorder %s21, 0
      %p82 = por %p80, %p81
      %p83 = scmp.ne.s32.totalorder %s69, %s70
      %p84 = scmp.eq.s32.totalorder %s22, 1
      %p85 = por %p83, %p84
      %p87 = scmp.ne.s32.totalorder %s70, %s86
      %p88 = scmp.eq.s32.totalorder %s22, 0
      %p89 = por %p87, %p88
      %s90 = ssub.s32 %s23, %s35
      %p91 = scmp.eq.s32.totalorder %s90, 0
      %s93 = sadd.s32 %s92, 1
      %s94 = scalar_select %p91, %s92, %s93
      %p97 = pneg %p91
      %p98 = scmp.eq.s32.totalorder %s16, 1
      %p99 = por %p97, %p98
      %p100 = scmp.ne.s32.totalorder %s92, %s95
      %p101 = scmp.eq.s32.totalorder %s16, 0
      %p102 = por %p100, %p101
      %p103 = scmp.ne.s32.totalorder %s92, %s95
      %p104 = scmp.eq.s32.totalorder %s21, 1
      %p105 = por %p103, %p104
      %p106 = scmp.ne.s32.totalorder %s95, %s96
      %p107 = scmp.eq.s32.totalorder %s21, 0
      %p108 = por %p106, %p107
      %p109 = scmp.ne.s32.totalorder %s95, %s96
      %p110 = scmp.eq.s32.totalorder %s22, 1
      %p111 = por %p109, %p110
      %p113 = scmp.ne.s32.totalorder %s96, %s112
      %p114 = scmp.eq.s32.totalorder %s22, 0
      %p115 = por %p113, %p114
      %s116 = ssub.s32 %s23, %s35
      %p117 = scmp.eq.s32.totalorder %s116, 0
      %s119 = sadd.s32 %s118, 1
      %s120 = scalar_select %p117, %s118, %s119
      %p123 = pneg %p117
      %p124 = scmp.eq.s32.totalorder %s16, 1
      %p125 = por %p123, %p124
      %p126 = scmp.ne.s32.totalorder %s118, %s121
      %p127 = scmp.eq.s32.totalorder %s16, 0
      %p128 = por %p126, %p127
      %p129 = scmp.ne.s32.totalorder %s118, %s121
      %p130 = scmp.eq.s32.totalorder %s21, 1
      %p131 = por %p129, %p130
      %p132 = scmp.ne.s32.totalorder %s121, %s122
      %p133 = scmp.eq.s32.totalorder %s21, 0
      %p134 = por %p132, %p133
      %p135 = scmp.ne.s32.totalorder %s121, %s122
      %p136 = scmp.eq.s32.totalorder %s22, 1
      %p137 = por %p135, %p136
      %p139 = scmp.ne.s32.totalorder %s122, %s138
      %p140 = scmp.eq.s32.totalorder %s22, 0
      %p141 = por %p139, %p140
      %s143 = sadd.s32 %s142, 1
      %p146 = scmp.eq.s32.totalorder %s16, 1
      %p147 = scmp.ne.s32.totalorder %s142, %s144
      %p148 = scmp.eq.s32.totalorder %s16, 0
      %p149 = por %p147, %p148
      %p150 = scmp.ne.s32.totalorder %s142, %s144
      %p151 = scmp.eq.s32.totalorder %s21, 1
      %p152 = por %p150, %p151
      %p153 = scmp.ne.s32.totalorder %s144, %s145
      %p154 = scmp.eq.s32.totalorder %s21, 0
      %p155 = por %p153, %p154
      %p156 = scmp.ne.s32.totalorder %s144, %s145
      %p157 = scmp.eq.s32.totalorder %s22, 1
      %p158 = por %p156, %p157
      %p160 = scmp.ne.s32.totalorder %s145, %s159
      %p161 = scmp.eq.s32.totalorder %s22, 0
      %p162 = por %p160, %p161
      %s163 = ssub.s32 %s23, %s35
      %s164 = ssub.s32 %s24, %s31
      %s165 = sor.u32 %s163, %s164
      %p166 = scmp.eq.s32.totalorder %s165, 0
      %s168 = sadd.s32 %s167, 1
      %s169 = scalar_select %p166, %s167, %s168
      %p172 = pneg %p166
      %p173 = scmp.eq.s32.totalorder %s16, 1
      %p174 = por %p172, %p173
      %p175 = scmp.ne.s32.totalorder %s167, %s170
      %p176 = scmp.eq.s32.totalorder %s16, 0
      %p177 = por %p175, %p176
      %p178 = scmp.ne.s32.totalorder %s167, %s170
      %p179 = scmp.eq.s32.totalorder %s21, 1
      %p180 = por %p178, %p179
      %p181 = scmp.ne.s32.totalorder %s170, %s171
      %p182 = scmp.eq.s32.totalorder %s21, 0
      %p183 = por %p181, %p182
      %p184 = scmp.ne.s32.totalorder %s170, %s171
      %p185 = scmp.eq.s32.totalorder %s22, 1
      %p186 = por %p184, %p185
      %p188 = scmp.ne.s32.totalorder %s171, %s187
      %p189 = scmp.eq.s32.totalorder %s22, 0
      %p190 = por %p188, %p189
      %s191 = ssub.s32 %s23, %s35
      %p192 = scmp.eq.s32.totalorder %s191, 0
      %s194 = sadd.s32 %s193, 1
      %s195 = scalar_select %p192, %s193, %s194
      %p198 = pneg %p192
      %p199 = scmp.eq.s32.totalorder %s16, 1
      %p200 = por %p198, %p199
      %p201 = scmp.ne.s32.totalorder %s193, %s196
      %p202 = scmp.eq.s32.totalorder %s16, 0
      %p203 = por %p201, %p202
      %p204 = scmp.ne.s32.totalorder %s193, %s196
      %p205 = scmp.eq.s32.totalorder %s21, 1
      %p206 = por %p204, %p205
      %p207 = scmp.ne.s32.totalorder %s196, %s197
      %p208 = scmp.eq.s32.totalorder %s21, 0
      %p209 = por %p207, %p208
      %p210 = scmp.ne.s32.totalorder %s196, %s197
      %p211 = scmp.eq.s32.totalorder %s22, 1
      %p212 = por %p210, %p211
      %p214 = scmp.ne.s32.totalorder %s197, %s213
      %p215 = scmp.eq.s32.totalorder %s22, 0
      %p216 = por %p214, %p215
      %p217 = scmp.le.s32.totalorder 1, %s16
      %p218 = scmp.lt.s32.totalorder %s16, 3
      %p219 = pnand %p217, %p218
      %p220 = pneg %p219
      // Predicated region
      $region9: #{encoder_forward.3} parent=5 // pred_check
        _
      $region10: #{encoder_forward.3} parent=5 // pred_check_branch
        %222 = sbr.rel (%p219) target = $region12
      $region11: #{encoder_forward.3} parent=5 // pred_region
        %s223 = ssub.s32 %s16, 1
        // Predicated region
        $region13: #{encoder_forward.3} parent=11 // pred_check
          %p224 = pneg %p155
        $region14: #{encoder_forward.3} parent=11 // pred_check_branch
          %226 = sbr.rel (%p224) target = $region16
        $region15: #{encoder_forward.3} parent=11 // pred_region
          _
        $region16: #{encoder_forward.3} parent=11 // pred_fallthru
          _
      $region12: #{encoder_forward.3} parent=5 // pred_fallthru
        _
      %p227 = scmp.lt.s32.totalorder %s16, 2
      // Predicated region
      $region17: #{encoder_forward.3} parent=5 // pred_check
        %p228 = pneg %p227
      $region18: #{encoder_forward.3} parent=5 // pred_check_branch
        %230 = sbr.rel (%p228) target = $region20
      $region19: #{encoder_forward.3} parent=5 // pred_region
        // Predicated region
        $region21: #{encoder_forward.3} parent=19 // pred_check
          %p231 = pneg %p50
        $region22: #{encoder_forward.3} parent=19 // pred_check_branch
          %233 = sbr.rel (%p231) target = $region24
        $region23: #{encoder_forward.3} parent=19 // pred_region
          %s234 = smul.u32 8, %s24
          %p235 = scmp.lt.s32.totalorder %s23, 1
          %s236 = scalar_select %p235, %s23, 1
          %p237 = scmp.lt.s32.totalorder %s234, 7
          %s238 = scalar_select %p237, %s234, 7
          %s239 = smul.addr %s238, 4
          %s240 = smul.addr %s236, 32
          %s241 = sadd.s32 %s239, %s240
          %s242 = smul.addr %s241, 8
          %s243 = scalar_lea.vmem %s0, %s242
          %s244 = smul.u32 8, %s24
        $region24: #{encoder_forward.3} parent=19 // pred_fallthru
          _
        // Predicated region
        $region25: #{encoder_forward.3} parent=19 // pred_check
          %p245 = pneg %p76
        $region26: #{encoder_forward.3} parent=19 // pred_check_branch
          %247 = sbr.rel (%p245) target = $region28
        $region27: #{encoder_forward.3} parent=19 // pred_region
          %p248 = scmp.lt.s32.totalorder %s23, 1
          %s249 = scalar_select %p248, %s23, 1
          %s250 = smul.addr %s249, 64
          %s251 = smul.addr %s250, 8
          %s252 = scalar_lea.vmem %s1, %s251
        $region28: #{encoder_forward.3} parent=19 // pred_fallthru
          _
        // Predicated region
        $region29: #{encoder_forward.3} parent=19 // pred_check
          %p253 = pneg %p102
        $region30: #{encoder_forward.3} parent=19 // pred_check_branch
          %255 = sbr.rel (%p253) target = $region32
        $region31: #{encoder_forward.3} parent=19 // pred_region
          %p256 = scmp.lt.s32.totalorder %s23, 1
          %s257 = scalar_select %p256, %s23, 1
          %s258 = smul.addr %s257, 8
          %s259 = scalar_lea.vmem %s2, %s258
        $region32: #{encoder_forward.3} parent=19 // pred_fallthru
          _
        // Predicated region
        $region33: #{encoder_forward.3} parent=19 // pred_check
          %p260 = pneg %p128
        $region34: #{encoder_forward.3} parent=19 // pred_check_branch
          %262 = sbr.rel (%p260) target = $region36
        $region35: #{encoder_forward.3} parent=19 // pred_region
          %p263 = scmp.lt.s32.totalorder %s23, 1
          %s264 = scalar_select %p263, %s23, 1
          %s265 = smul.addr %s264, 8
          %s266 = scalar_lea.vmem %s3, %s265
        $region36: #{encoder_forward.3} parent=19 // pred_fallthru
          _
      $region20: #{encoder_forward.3} parent=5 // pred_fallthru
        _
      %p267 = scmp.le.s32.totalorder 1, %s16
      %p268 = scmp.lt.s32.totalorder %s16, 3
      %p269 = pnand %p267, %p268
      %p270 = pneg %p269
      // Predicated region
      $region37: #{encoder_forward.3} parent=5 // pred_check
        _
      $region38: #{encoder_forward.3} parent=5 // pred_check_branch
        %272 = sbr.rel (%p269) target = $region40
      $region39: #{encoder_forward.3} parent=5 // pred_region
        %s273 = ssub.s32 %s16, 1
        %s274 = smul.u32 8, %s26
        %p275 = scmp.lt.s32.totalorder %s25, 1
        %s276 = scalar_select %p275, %s25, 1
        %p277 = scmp.lt.s32.totalorder %s274, 7
        %s278 = scalar_select %p277, %s274, 7
        %s279 = smul.addr %s278, 4
        %s280 = smul.addr %s276, 32
        %s281 = sadd.s32 %s279, %s280
        %s282 = smul.addr %s281, 8
        %s283 = scalar_lea.vmem %s0, %s282
        %p284 = pneg %p56
        %p285 = pneg %p53
        %p286 = scmp.lt.s32.totalorder %s25, 1
        %s287 = scalar_select %p286, %s25, 1
        %s288 = smul.addr %s287, 64
        %s289 = smul.addr %s288, 8
        %s290 = scalar_lea.vmem %s1, %s289
        %p291 = pneg %p82
        %p292 = pneg %p79
        %p293 = scmp.lt.s32.totalorder %s25, 1
        %s294 = scalar_select %p293, %s25, 1
        %s295 = smul.addr %s294, 8
        %s296 = scalar_lea.vmem %s2, %s295
        %p297 = pneg %p108
        %p298 = pneg %p105
        %p299 = scmp.lt.s32.totalorder %s25, 1
        %s300 = scalar_select %p299, %s25, 1
        %s301 = smul.addr %s300, 8
        %s302 = scalar_lea.vmem %s3, %s301
        %p303 = pneg %p134
        %p304 = pneg %p131
        %p305 = pneg %p155
        %p306 = pneg %p152
        %p307 = pneg %p183
        %p308 = pneg %p180
        %s309 = sand.u32 %s170, 1
        %s310 = scalar_lea.sflag [#allocation5], %s309
        %s311 = sand.u32 %s170, 1
        %s312 = smul.addr %s311, 64
        %s313 = scalar_lea.vmem [#allocation4], %s312
        %p314 = pneg %p209
        %p315 = pneg %p206
        %p316 = scmp.lt.s32.totalorder %s25, 1
        %s317 = scalar_select %p316, %s25, 1
        %s318 = smul.addr %s317, 8
        %s319 = scalar_lea.vmem %s6, %s318
        %s320 = smul.u32 8, %s26
        %p321 = scmp.lt.s32.totalorder %s25, 1
        %s322 = scalar_select %p321, %s25, 1
        %p323 = scmp.lt.s32.totalorder %s320, 7
        %s324 = scalar_select %p323, %s320, 7
        %s325 = smul.addr %s324, 4
        %s326 = smul.addr %s322, 32
        %s327 = sadd.s32 %s325, %s326
        %s328 = smul.addr %s327, 8
        %s329 = scalar_lea.vmem %s0, %s328
        %s330 = smul.u32 8, %s26
        %p331 = scmp.lt.s32.totalorder %s25, 1
        %s332 = scalar_select %p331, %s25, 1
        %s333 = smul.addr %s332, 64
        %s334 = smul.addr %s333, 8
        %s335 = scalar_lea.vmem %s1, %s334
        %p336 = scmp.lt.s32.totalorder %s25, 1
        %s337 = scalar_select %p336, %s25, 1
        %s338 = smul.addr %s337, 8
        %s339 = scalar_lea.vmem %s2, %s338
        %p340 = scmp.lt.s32.totalorder %s25, 1
        %s341 = scalar_select %p340, %s25, 1
        %s342 = smul.addr %s341, 8
        %s343 = scalar_lea.vmem %s3, %s342
        %s344 = smul.u32 8, %s26
        %p345 = scmp.lt.s32.totalorder %s25, 1
        %s346 = scalar_select %p345, %s25, 1
        %s347 = smul.addr %s346, 8
        %s348 = scalar_lea.vmem %s6, %s347
        %p349 = scmp.eq.s32.totalorder %s26, 0
        // Predicated region
        $region41: #{encoder_forward.3} parent=39 // pred_check
          %p350 = pneg %p349
        $region42: #{encoder_forward.3} parent=39 // pred_check_branch
          %352 = sbr.rel (%p350) target = $region44
        $region43: #{encoder_forward.3} parent=39 // pred_region
          %v353 = vld [vmem:[%s339] sm:$0xff]
          %354 = vst [vmem:[#allocation2] sm:$0xff] %v353
          %v355 = vld [vmem:[%s343] sm:$0xff]
          %356 = vst [vmem:[#allocation3] sm:$0xff] %v355
        $region44: #{encoder_forward.3} parent=39 // pred_fallthru
          _
        %v357 = vld [vmem:[%s4] sm:$0xff]
        %v358 = vld [vmem:[%s335] sm:$0xff]
        %v359 = vld [vmem:[%s335 + $0x8] sm:$0xff]
        %v360 = vld [vmem:[%s335 + $0x10] sm:$0xff]
        %v361 = vld [vmem:[%s335 + $0x18] sm:$0xff]
        %v362 = vld [vmem:[%s335 + $0x20] sm:$0xff]
        %v363 = vld [vmem:[%s335 + $0x28] sm:$0xff]
        %v364 = vld [vmem:[%s335 + $0x30] sm:$0xff]
        %v365 = vld [vmem:[%s335 + $0x38] sm:$0xff]
        %v366 = vld [vmem:[%s335 + $0x40] sm:$0xff]
        %v367 = vld [vmem:[%s335 + $0x48] sm:$0xff]
        %v368 = vld [vmem:[%s335 + $0x50] sm:$0xff]
        %v369 = vld [vmem:[%s335 + $0x58] sm:$0xff]
        %v370 = vld [vmem:[%s335 + $0x60] sm:$0xff]
        %v371 = vld [vmem:[%s335 + $0x68] sm:$0xff]
        %v372 = vld [vmem:[%s335 + $0x70] sm:$0xff]
        %v373 = vld [vmem:[%s335 + $0x78] sm:$0xff]
        %v374 = vld [vmem:[%s335 + $0x80] sm:$0xff]
        %v375 = vld [vmem:[%s335 + $0x88] sm:$0xff]
        %v376 = vld [vmem:[%s335 + $0x90] sm:$0xff]
        %v377 = vld [vmem:[%s335 + $0x98] sm:$0xff]
        %v378 = vld [vmem:[%s335 + $0xa0] sm:$0xff]
        %v379 = vld [vmem:[%s335 + $0xa8] sm:$0xff]
        %v380 = vld [vmem:[%s335 + $0xb0] sm:$0xff]
        %v381 = vld [vmem:[%s335 + $0xb8] sm:$0xff]
        %v382 = vld [vmem:[%s335 + $0xc0] sm:$0xff]
        %v383 = vld [vmem:[%s335 + $0xc8] sm:$0xff]
        %v384 = vld [vmem:[%s335 + $0xd0] sm:$0xff]
        %v385 = vld [vmem:[%s335 + $0xd8] sm:$0xff]
        %v386 = vld [vmem:[%s335 + $0xe0] sm:$0xff]
        %v387 = vld [vmem:[%s335 + $0xe8] sm:$0xff]
        %v388 = vld [vmem:[%s335 + $0xf0] sm:$0xff]
        %v389 = vld [vmem:[%s335 + $0xf8] sm:$0xff]
        %v390 = vld [vmem:[%s335 + $0x100] sm:$0xff]
        %v391 = vld [vmem:[%s335 + $0x108] sm:$0xff]
        %v392 = vld [vmem:[%s335 + $0x110] sm:$0xff]
        %v393 = vld [vmem:[%s335 + $0x118] sm:$0xff]
        %v394 = vld [vmem:[%s335 + $0x120] sm:$0xff]
        %v395 = vld [vmem:[%s335 + $0x128] sm:$0xff]
        %v396 = vld [vmem:[%s335 + $0x130] sm:$0xff]
        %v397 = vld [vmem:[%s335 + $0x138] sm:$0xff]
        %v398 = vld [vmem:[%s335 + $0x140] sm:$0xff]
        %v399 = vld [vmem:[%s335 + $0x148] sm:$0xff]
        %v400 = vld [vmem:[%s335 + $0x150] sm:$0xff]
        %v401 = vld [vmem:[%s335 + $0x158] sm:$0xff]
        %v402 = vld [vmem:[%s335 + $0x160] sm:$0xff]
        %v403 = vld [vmem:[%s335 + $0x168] sm:$0xff]
        %v404 = vld [vmem:[%s335 + $0x170] sm:$0xff]
        %v405 = vld [vmem:[%s335 + $0x178] sm:$0xff]
        %v406 = vld [vmem:[%s335 + $0x180] sm:$0xff]
        %v407 = vld [vmem:[%s335 + $0x188] sm:$0xff]
        %v408 = vld [vmem:[%s335 + $0x190] sm:$0xff]
        %v409 = vld [vmem:[%s335 + $0x198] sm:$0xff]
        %v410 = vld [vmem:[%s335 + $0x1a0] sm:$0xff]
        %v411 = vld [vmem:[%s335 + $0x1a8] sm:$0xff]
        %v412 = vld [vmem:[%s335 + $0x1b0] sm:$0xff]
        %v413 = vld [vmem:[%s335 + $0x1b8] sm:$0xff]
        %v414 = vld [vmem:[%s335 + $0x1c0] sm:$0xff]
        %v415 = vld [vmem:[%s335 + $0x1c8] sm:$0xff]
        %v416 = vld [vmem:[%s335 + $0x1d0] sm:$0xff]
        %v417 = vld [vmem:[%s335 + $0x1d8] sm:$0xff]
        %v418 = vld [vmem:[%s335 + $0x1e0] sm:$0xff]
        %v419 = vld [vmem:[%s335 + $0x1e8] sm:$0xff]
        %v420 = vld [vmem:[%s335 + $0x1f0] sm:$0xff]
        %v421 = vld [vmem:[%s335 + $0x1f8] sm:$0xff]
        %s422 = smul.u32 %s26, 8
        %v423 = vld [vmem:[#allocation2] sm:$0xff]
        %v424 = vld [vmem:[#allocation3] sm:$0xff]
        %v425 = vld [vmem:[%s329] sm:$0xff]
        %v426 = vld [vmem:[%s329 + $0x8] sm:$0xff]
        %v427 = vld [vmem:[%s329 + $0x10] sm:$0xff]
        %v428 = vld [vmem:[%s329 + $0x18] sm:$0xff]
        %429 = vmatpush.msra.mxu0 %v418
        %430 = vmatpush.msra.mxu0 %v414
        %431 = vmatpush.msra.mxu0 %v410
        %432 = vmatpush.msra.mxu0 %v406
        %433 = vmatpush.msra.mxu0 %v402
        %434 = vmatpush.msra.mxu0 %v398
        %435 = vmatpush.msra.mxu0 %v394
        %436 = vmatpush.msra.mxu0 %v390
        %437 = vmatpush.msra.mxu0 %v386
        %438 = vmatpush.msra.mxu0 %v382
        %439 = vmatpush.msra.mxu0 %v378
        %440 = vmatpush.msra.mxu0 %v374
        %441 = vmatpush.msra.mxu0 %v370
        %442 = vmatpush.msra.mxu0 %v366
        %443 = vmatpush.msra.mxu0 %v362
        %444 = vmatpush.msra.mxu0 %v358
        %445 = vmatmul.f32.gmra.mxu0 %v423
        %v446 = vpop.f32.mrf.mxu0
        %v447 = vadd.f32 0.0, %v446
        %448 = vdwg.mxu0
        %449 = vmatpush.msra.mxu0 %v419
        %450 = vmatpush.msra.mxu0 %v415
        %451 = vmatpush.msra.mxu0 %v411
        %452 = vmatpush.msra.mxu0 %v407
        %453 = vmatpush.msra.mxu0 %v403
        %454 = vmatpush.msra.mxu0 %v399
        %455 = vmatpush.msra.mxu0 %v395
        %456 = vmatpush.msra.mxu0 %v391
        %457 = vmatpush.msra.mxu0 %v387
        %458 = vmatpush.msra.mxu0 %v383
        %459 = vmatpush.msra.mxu0 %v379
        %460 = vmatpush.msra.mxu0 %v375
        %461 = vmatpush.msra.mxu0 %v371
        %462 = vmatpush.msra.mxu0 %v367
        %463 = vmatpush.msra.mxu0 %v363
        %464 = vmatpush.msra.mxu0 %v359
        %465 = vmatmul.f32.gmra.mxu0 %v423
        %v466 = vpop.f32.mrf.mxu0
        %v467 = vadd.f32 0.0, %v466
        %468 = vdwg.mxu0
        %469 = vmatpush.msra.mxu0 %v420
        %470 = vmatpush.msra.mxu0 %v416
        %471 = vmatpush.msra.mxu0 %v412
        %472 = vmatpush.msra.mxu0 %v408
        %473 = vmatpush.msra.mxu0 %v404
        %474 = vmatpush.msra.mxu0 %v400
        %475 = vmatpush.msra.mxu0 %v396
        %476 = vmatpush.msra.mxu0 %v392
        %477 = vmatpush.msra.mxu0 %v388
        %478 = vmatpush.msra.mxu0 %v384
        %479 = vmatpush.msra.mxu0 %v380
        %480 = vmatpush.msra.mxu0 %v376
        %481 = vmatpush.msra.mxu0 %v372
        %482 = vmatpush.msra.mxu0 %v368
        %483 = vmatpush.msra.mxu0 %v364
        %484 = vmatpush.msra.mxu0 %v360
        %485 = vmatmul.f32.gmra.mxu0 %v423
        %v486 = vpop.f32.mrf.mxu0
        %v487 = vadd.f32 0.0, %v486
        %488 = vdwg.mxu0
        %489 = vmatpush.msra.mxu0 %v421
        %490 = vmatpush.msra.mxu0 %v417
        %491 = vmatpush.msra.mxu0 %v413
        %492 = vmatpush.msra.mxu0 %v409
        %493 = vmatpush.msra.mxu0 %v405
        %494 = vmatpush.msra.mxu0 %v401
        %495 = vmatpush.msra.mxu0 %v397
        %496 = vmatpush.msra.mxu0 %v393
        %497 = vmatpush.msra.mxu0 %v389
        %498 = vmatpush.msra.mxu0 %v385
        %499 = vmatpush.msra.mxu0 %v381
        %500 = vmatpush.msra.mxu0 %v377
        %501 = vmatpush.msra.mxu0 %v373
        %502 = vmatpush.msra.mxu0 %v369
        %503 = vmatpush.msra.mxu0 %v365
        %504 = vmatpush.msra.mxu0 %v361
        %505 = vmatmul.f32.gmra.mxu0 %v423
        %v506 = vpop.f32.mrf.mxu0
        %v507 = vadd.f32 0.0, %v506
        %508 = vdwg.mxu0
        %v509 = vadd.f32 %v425, %v447
        %v510 = vadd.f32 %v426, %v467
        %v511 = vadd.f32 %v427, %v487
        %v512 = vadd.f32 %v428, %v507
        %v513 = vxor.u32 %v509, 2147483648
        %v514 = vmul.f32 %v513, 1.442695
        %v515 = vpow.pop %v514
        %v516 = vadd.f32 %v515, 1.0
        %v517 = vrcp.pop %v516
        %v518 = vmul.f32 %v516, %v517
        %v519 = vsub.f32 1.0, %v518
        %v520 = vmul.f32 %v517, %v519
        %v521 = vadd.f32 %v517, %v520
        %vm522 = vweird.f32 %v516
        %vm523 = vweird.f32 %v517
        %vm524 = vmor %vm522, %vm523
        %v525 = vsel %vm524, %v517, %v521
        %v526 = vand.u32 2147483647, %v516
        %vm527 = vcmp.eq.f32.partialorder %v526, 8.507059e+37
        %v528 = vand.u32 %v516, 2147483648
        %v529 = vor.u32 1.1754944e-38, %v528
        %v530 = vsel %vm527, %v529, %v525
        %v531 = vmul.f32 1.0, %v530
        %v532 = vxor.u32 %v510, 2147483648
        %v533 = vmul.f32 %v532, 1.442695
        %v534 = vpow.pop %v533
        %v535 = vadd.f32 %v534, 1.0
        %v536 = vrcp.pop %v535
        %v537 = vmul.f32 %v535, %v536
        %v538 = vsub.f32 1.0, %v537
        %v539 = vmul.f32 %v536, %v538
        %v540 = vadd.f32 %v536, %v539
        %vm541 = vweird.f32 %v535
        %vm542 = vweird.f32 %v536
        %vm543 = vmor %vm541, %vm542
        %v544 = vsel %vm543, %v536, %v540
        %v545 = vand.u32 2147483647, %v535
        %vm546 = vcmp.eq.f32.partialorder %v545, 8.507059e+37
        %v547 = vand.u32 %v535, 2147483648
        %v548 = vor.u32 1.1754944e-38, %v547
        %v549 = vsel %vm546, %v548, %v544
        %v550 = vmul.f32 1.0, %v549
        %v551 = vtanh.pop %v511
        %v552 = vxor.u32 %v512, 2147483648
        %v553 = vmul.f32 %v552, 1.442695
        %v554 = vpow.pop %v553
        %v555 = vadd.f32 %v554, 1.0
        %v556 = vrcp.pop %v555
        %v557 = vmul.f32 %v555, %v556
        %v558 = vsub.f32 1.0, %v557
        %v559 = vmul.f32 %v556, %v558
        %v560 = vadd.f32 %v556, %v559
        %vm561 = vweird.f32 %v555
        %vm562 = vweird.f32 %v556
        %vm563 = vmor %vm561, %vm562
        %v564 = vsel %vm563, %v556, %v560
        %v565 = vand.u32 2147483647, %v555
        %vm566 = vcmp.eq.f32.partialorder %v565, 8.507059e+37
        %v567 = vand.u32 %v555, 2147483648
        %v568 = vor.u32 1.1754944e-38, %v567
        %v569 = vsel %vm566, %v568, %v564
        %v570 = vmul.f32 1.0, %v569
        %v571 = vmul.f32 %v550, %v424
        %v572 = vmul.f32 %v531, %v551
        %v573 = vadd.f32 %v571, %v572
        %v574 = vtanh.pop %v573
        %v575 = vmul.f32 %v570, %v574
        %v576 = vstv %s422
        %vm577 = vcmp.lt.s32.totalorder %v576, %v357
        %v578 = vsel %vm577, 1, 0
        %579 = vset.pattern.permute.xlu0 0
        %580 = vperm.xlu0 %579, %v578
        %v581 = vpop.permute.xlu0 %580
        %vm582 = vcmp.eq.s32.totalorder %v581, 1
        %v583 = vsel %vm582, %v575, %v423
        %v584 = vsel %vm582, %v573, %v424
        %585 = vst [vmem:[%s313] sm:$0xff] %v583
        %s586 = scalar_lea.vmem %s329, 32
        %v587 = vld [vmem:[%s586] sm:$0xff]
        %v588 = vld [vmem:[%s586 + $0x8] sm:$0xff]
        %v589 = vld [vmem:[%s586 + $0x10] sm:$0xff]
        %v590 = vld [vmem:[%s586 + $0x18] sm:$0xff]
        %591 = vmatpush.msra.mxu0 %v418
        %592 = vmatpush.msra.mxu0 %v414
        %593 = vmatpush.msra.mxu0 %v410
        %594 = vmatpush.msra.mxu0 %v406
        %595 = vmatpush.msra.mxu0 %v402
        %596 = vmatpush.msra.mxu0 %v398
        %597 = vmatpush.msra.mxu0 %v394
        %598 = vmatpush.msra.mxu0 %v390
        %599 = vmatpush.msra.mxu0 %v386
        %600 = vmatpush.msra.mxu0 %v382
        %601 = vmatpush.msra.mxu0 %v378
        %602 = vmatpush.msra.mxu0 %v374
        %603 = vmatpush.msra.mxu0 %v370
        %604 = vmatpush.msra.mxu0 %v366
        %605 = vmatpush.msra.mxu0 %v362
        %606 = vmatpush.msra.mxu0 %v358
        %607 = vmatmul.f32.gmra.mxu0 %v583
        %v608 = vpop.f32.mrf.mxu0
        %v609 = vadd.f32 0.0, %v608
        %610 = vdwg.mxu0
        %611 = vmatpush.msra.mxu0 %v419
        %612 = vmatpush.msra.mxu0 %v415
        %613 = vmatpush.msra.mxu0 %v411
        %614 = vmatpush.msra.mxu0 %v407
        %615 = vmatpush.msra.mxu0 %v403
        %616 = vmatpush.msra.mxu0 %v399
        %617 = vmatpush.msra.mxu0 %v395
        %618 = vmatpush.msra.mxu0 %v391
        %619 = vmatpush.msra.mxu0 %v387
        %620 = vmatpush.msra.mxu0 %v383
        %621 = vmatpush.msra.mxu0 %v379
        %622 = vmatpush.msra.mxu0 %v375
        %623 = vmatpush.msra.mxu0 %v371
        %624 = vmatpush.msra.mxu0 %v367
        %625 = vmatpush.msra.mxu0 %v363
        %626 = vmatpush.msra.mxu0 %v359
        %627 = vmatmul.f32.gmra.mxu0 %v583
        %v628 = vpop.f32.mrf.mxu0
        %v629 = vadd.f32 0.0, %v628
        %630 = vdwg.mxu0
        %631 = vmatpush.msra.mxu0 %v420
        %632 = vmatpush.msra.mxu0 %v416
        %633 = vmatpush.msra.mxu0 %v412
        %634 = vmatpush.msra.mxu0 %v408
        %635 = vmatpush.msra.mxu0 %v404
        %636 = vmatpush.msra.mxu0 %v400
        %637 = vmatpush.msra.mxu0 %v396
        %638 = vmatpush.msra.mxu0 %v392
        %639 = vmatpush.msra.mxu0 %v388
        %640 = vmatpush.msra.mxu0 %v384
        %641 = vmatpush.msra.mxu0 %v380
        %642 = vmatpush.msra.mxu0 %v376
        %643 = vmatpush.msra.mxu0 %v372
        %644 = vmatpush.msra.mxu0 %v368
        %645 = vmatpush.msra.mxu0 %v364
        %646 = vmatpush.msra.mxu0 %v360
        %647 = vmatmul.f32.gmra.mxu0 %v583
        %v648 = vpop.f32.mrf.mxu0
        %v649 = vadd.f32 0.0, %v648
        %650 = vdwg.mxu0
        %651 = vmatpush.msra.mxu0 %v421
        %652 = vmatpush.msra.mxu0 %v417
        %653 = vmatpush.msra.mxu0 %v413
        %654 = vmatpush.msra.mxu0 %v409
        %655 = vmatpush.msra.mxu0 %v405
        %656 = vmatpush.msra.mxu0 %v401
        %657 = vmatpush.msra.mxu0 %v397
        %658 = vmatpush.msra.mxu0 %v393
        %659 = vmatpush.msra.mxu0 %v389
        %660 = vmatpush.msra.mxu0 %v385
        %661 = vmatpush.msra.mxu0 %v381
        %662 = vmatpush.msra.mxu0 %v377
        %663 = vmatpush.msra.mxu0 %v373
        %664 = vmatpush.msra.mxu0 %v369
        %665 = vmatpush.msra.mxu0 %v365
        %666 = vmatpush.msra.mxu0 %v361
        %667 = vmatmul.f32.gmra.mxu0 %v583
        %v668 = vpop.f32.mrf.mxu0
        %v669 = vadd.f32 0.0, %v668
        %670 = vdwg.mxu0
        %v671 = vadd.f32 %v587, %v609
        %v672 = vadd.f32 %v588, %v629
        %v673 = vadd.f32 %v589, %v649
        %v674 = vadd.f32 %v590, %v669
        %v675 = vxor.u32 %v671, 2147483648
        %v676 = vmul.f32 %v675, 1.442695
        %v677 = vpow.pop %v676
        %v678 = vadd.f32 %v677, 1.0
        %v679 = vrcp.pop %v678
        %v680 = vmul.f32 %v678, %v679
        %v681 = vsub.f32 1.0, %v680
        %v682 = vmul.f32 %v679, %v681
        %v683 = vadd.f32 %v679, %v682
        %vm684 = vweird.f32 %v678
        %vm685 = vweird.f32 %v679
        %vm686 = vmor %vm684, %vm685
        %v687 = vsel %vm686, %v679, %v683
        %v688 = vand.u32 2147483647, %v678
        %vm689 = vcmp.eq.f32.partialorder %v688, 8.507059e+37
        %v690 = vand.u32 %v678, 2147483648
        %v691 = vor.u32 1.1754944e-38, %v690
        %v692 = vsel %vm689, %v691, %v687
        %v693 = vmul.f32 1.0, %v692
        %v694 = vxor.u32 %v672, 2147483648
        %v695 = vmul.f32 %v694, 1.442695
        %v696 = vpow.pop %v695
        %v697 = vadd.f32 %v696, 1.0
        %v698 = vrcp.pop %v697
        %v699 = vmul.f32 %v697, %v698
        %v700 = vsub.f32 1.0, %v699
        %v701 = vmul.f32 %v698, %v700
        %v702 = vadd.f32 %v698, %v701
        %vm703 = vweird.f32 %v697
        %vm704 = vweird.f32 %v698
        %vm705 = vmor %vm703, %vm704
        %v706 = vsel %vm705, %v698, %v702
        %v707 = vand.u32 2147483647, %v697
        %vm708 = vcmp.eq.f32.partialorder %v707, 8.507059e+37
        %v709 = vand.u32 %v697, 2147483648
        %v710 = vor.u32 1.1754944e-38, %v709
        %v711 = vsel %vm708, %v710, %v706
        %v712 = vmul.f32 1.0, %v711
        %v713 = vtanh.pop %v673
        %v714 = vxor.u32 %v674, 2147483648
        %v715 = vmul.f32 %v714, 1.442695
        %v716 = vpow.pop %v715
        %v717 = vadd.f32 %v716, 1.0
        %v718 = vrcp.pop %v717
        %v719 = vmul.f32 %v717, %v718
        %v720 = vsub.f32 1.0, %v719
        %v721 = vmul.f32 %v718, %v720
        %v722 = vadd.f32 %v718, %v721
        %vm723 = vweird.f32 %v717
        %vm724 = vweird.f32 %v718
        %vm725 = vmor %vm723, %vm724
        %v726 = vsel %vm725, %v718, %v722
        %v727 = vand.u32 2147483647, %v717
        %vm728 = vcmp.eq.f32.partialorder %v727, 8.507059e+37
        %v729 = vand.u32 %v717, 2147483648
        %v730 = vor.u32 1.1754944e-38, %v729
        %v731 = vsel %vm728, %v730, %v726
        %v732 = vmul.f32 1.0, %v731
        %v733 = vmul.f32 %v712, %v584
        %v734 = vmul.f32 %v693, %v713
        %v735 = vadd.f32 %v733, %v734
        %v736 = vtanh.pop %v735
        %v737 = vmul.f32 %v732, %v736
        %s738 = sadd.s32 %s422, 1
        %v739 = vstv %s738
        %vm740 = vcmp.lt.s32.totalorder %v739, %v357
        %v741 = vsel %vm740, 1, 0
        %742 = vset.pattern.permute.xlu0 0
        %743 = vperm.xlu0 %742, %v741
        %v744 = vpop.permute.xlu0 %743
        %vm745 = vcmp.eq.s32.totalorder %v744, 1
        %v746 = vsel %vm745, %v737, %v583
        %v747 = vsel %vm745, %v735, %v584
        %s748 = scalar_lea.vmem %s313, 8 [#allocation4]
        %749 = vst [vmem:[%s748] sm:$0xff] %v746
        %s750 = scalar_lea.vmem %s329, 64
        %v751 = vld [vmem:[%s750] sm:$0xff]
        %v752 = vld [vmem:[%s750 + $0x8] sm:$0xff]
        %v753 = vld [vmem:[%s750 + $0x10] sm:$0xff]
        %v754 = vld [vmem:[%s750 + $0x18] sm:$0xff]
        %755 = vmatpush.msra.mxu0 %v418
        %756 = vmatpush.msra.mxu0 %v414
        %757 = vmatpush.msra.mxu0 %v410
        %758 = vmatpush.msra.mxu0 %v406
        %759 = vmatpush.msra.mxu0 %v402
        %760 = vmatpush.msra.mxu0 %v398
        %761 = vmatpush.msra.mxu0 %v394
        %762 = vmatpush.msra.mxu0 %v390
        %763 = vmatpush.msra.mxu0 %v386
        %764 = vmatpush.msra.mxu0 %v382
        %765 = vmatpush.msra.mxu0 %v378
        %766 = vmatpush.msra.mxu0 %v374
        %767 = vmatpush.msra.mxu0 %v370
        %768 = vmatpush.msra.mxu0 %v366
        %769 = vmatpush.msra.mxu0 %v362
        %770 = vmatpush.msra.mxu0 %v358
        %771 = vmatmul.f32.gmra.mxu0 %v746
        %v772 = vpop.f32.mrf.mxu0
        %v773 = vadd.f32 0.0, %v772
        %774 = vdwg.mxu0
        %775 = vmatpush.msra.mxu0 %v419
        %776 = vmatpush.msra.mxu0 %v415
        %777 = vmatpush.msra.mxu0 %v411
        %778 = vmatpush.msra.mxu0 %v407
        %779 = vmatpush.msra.mxu0 %v403
        %780 = vmatpush.msra.mxu0 %v399
        %781 = vmatpush.msra.mxu0 %v395
        %782 = vmatpush.msra.mxu0 %v391
        %783 = vmatpush.msra.mxu0 %v387
        %784 = vmatpush.msra.mxu0 %v383
        %785 = vmatpush.msra.mxu0 %v379
        %786 = vmatpush.msra.mxu0 %v375
        %787 = vmatpush.msra.mxu0 %v371
        %788 = vmatpush.msra.mxu0 %v367
        %789 = vmatpush.msra.mxu0 %v363
        %790 = vmatpush.msra.mxu0 %v359
        %791 = vmatmul.f32.gmra.mxu0 %v746
        %v792 = vpop.f32.mrf.mxu0
        %v793 = vadd.f32 0.0, %v792
        %794 = vdwg.mxu0
        %795 = vmatpush.msra.mxu0 %v420
        %796 = vmatpush.msra.mxu0 %v416
        %797 = vmatpush.msra.mxu0 %v412
        %798 = vmatpush.msra.mxu0 %v408
        %799 = vmatpush.msra.mxu0 %v404
        %800 = vmatpush.msra.mxu0 %v400
        %801 = vmatpush.msra.mxu0 %v396
        %802 = vmatpush.msra.mxu0 %v392
        %803 = vmatpush.msra.mxu0 %v388
        %804 = vmatpush.msra.mxu0 %v384
        %805 = vmatpush.msra.mxu0 %v380
        %806 = vmatpush.msra.mxu0 %v376
        %807 = vmatpush.msra.mxu0 %v372
        %808 = vmatpush.msra.mxu0 %v368
        %809 = vmatpush.msra.mxu0 %v364
        %810 = vmatpush.msra.mxu0 %v360
        %811 = vmatmul.f32.gmra.mxu0 %v746
        %v812 = vpop.f32.mrf.mxu0
        %v813 = vadd.f32 0.0, %v812
        %814 = vdwg.mxu0
        %815 = vmatpush.msra.mxu0 %v421
        %816 = vmatpush.msra.mxu0 %v417
        %817 = vmatpush.msra.mxu0 %v413
        %818 = vmatpush.msra.mxu0 %v409
        %819 = vmatpush.msra.mxu0 %v405
        %820 = vmatpush.msra.mxu0 %v401
        %821 = vmatpush.msra.mxu0 %v397
        %822 = vmatpush.msra.mxu0 %v393
        %823 = vmatpush.msra.mxu0 %v389
        %824 = vmatpush.msra.mxu0 %v385
        %825 = vmatpush.msra.mxu0 %v381
        %826 = vmatpush.msra.mxu0 %v377
        %827 = vmatpush.msra.mxu0 %v373
        %828 = vmatpush.msra.mxu0 %v369
        %829 = vmatpush.msra.mxu0 %v365
        %830 = vmatpush.msra.mxu0 %v361
        %831 = vmatmul.f32.gmra.mxu0 %v746
        %v832 = vpop.f32.mrf.mxu0
        %v833 = vadd.f32 0.0, %v832
        %834 = vdwg.mxu0
        %v835 = vadd.f32 %v751, %v773
        %v836 = vadd.f32 %v752, %v793
        %v837 = vadd.f32 %v753, %v813
        %v838 = vadd.f32 %v754, %v833
        %v839 = vxor.u32 %v835, 2147483648
        %v840 = vmul.f32 %v839, 1.442695
        %v841 = vpow.pop %v840
        %v842 = vadd.f32 %v841, 1.0
        %v843 = vrcp.pop %v842
        %v844 = vmul.f32 %v842, %v843
        %v845 = vsub.f32 1.0, %v844
        %v846 = vmul.f32 %v843, %v845
        %v847 = vadd.f32 %v843, %v846
        %vm848 = vweird.f32 %v842
        %vm849 = vweird.f32 %v843
        %vm850 = vmor %vm848, %vm849
        %v851 = vsel %vm850, %v843, %v847
        %v852 = vand.u32 2147483647, %v842
        %vm853 = vcmp.eq.f32.partialorder %v852, 8.507059e+37
        %v854 = vand.u32 %v842, 2147483648
        %v855 = vor.u32 1.1754944e-38, %v854
        %v856 = vsel %vm853, %v855, %v851
        %v857 = vmul.f32 1.0, %v856
        %v858 = vxor.u32 %v836, 2147483648
        %v859 = vmul.f32 %v858, 1.442695
        %v860 = vpow.pop %v859
        %v861 = vadd.f32 %v860, 1.0
        %v862 = vrcp.pop %v861
        %v863 = vmul.f32 %v861, %v862
        %v864 = vsub.f32 1.0, %v863
        %v865 = vmul.f32 %v862, %v864
        %v866 = vadd.f32 %v862, %v865
        %vm867 = vweird.f32 %v861
        %vm868 = vweird.f32 %v862
        %vm869 = vmor %vm867, %vm868
        %v870 = vsel %vm869, %v862, %v866
        %v871 = vand.u32 2147483647, %v861
        %vm872 = vcmp.eq.f32.partialorder %v871, 8.507059e+37
        %v873 = vand.u32 %v861, 2147483648
        %v874 = vor.u32 1.1754944e-38, %v873
        %v875 = vsel %vm872, %v874, %v870
        %v876 = vmul.f32 1.0, %v875
        %v877 = vtanh.pop %v837
        %v878 = vxor.u32 %v838, 2147483648
        %v879 = vmul.f32 %v878, 1.442695
        %v880 = vpow.pop %v879
        %v881 = vadd.f32 %v880, 1.0
        %v882 = vrcp.pop %v881
        %v883 = vmul.f32 %v881, %v882
        %v884 = vsub.f32 1.0, %v883
        %v885 = vmul.f32 %v882, %v884
        %v886 = vadd.f32 %v882, %v885
        %vm887 = vweird.f32 %v881
        %vm888 = vweird.f32 %v882
        %vm889 = vmor %vm887, %vm888
        %v890 = vsel %vm889, %v882, %v886
        %v891 = vand.u32 2147483647, %v881
        %vm892 = vcmp.eq.f32.partialorder %v891, 8.507059e+37
        %v893 = vand.u32 %v881, 2147483648
        %v894 = vor.u32 1.1754944e-38, %v893
        %v895 = vsel %vm892, %v894, %v890
        %v896 = vmul.f32 1.0, %v895
        %v897 = vmul.f32 %v876, %v747
        %v898 = vmul.f32 %v857, %v877
        %v899 = vadd.f32 %v897, %v898
        %v900 = vtanh.pop %v899
        %v901 = vmul.f32 %v896, %v900
        %s902 = sadd.s32 %s422, 2
        %v903 = vstv %s902
        %vm904 = vcmp.lt.s32.totalorder %v903, %v357
        %v905 = vsel %vm904, 1, 0
        %906 = vset.pattern.permute.xlu0 0
        %907 = vperm.xlu0 %906, %v905
        %v908 = vpop.permute.xlu0 %907
        %vm909 = vcmp.eq.s32.totalorder %v908, 1
        %v910 = vsel %vm909, %v901, %v746
        %v911 = vsel %vm909, %v899, %v747
        %s912 = scalar_lea.vmem %s313, 16 [#allocation4]
        %913 = vst [vmem:[%s912] sm:$0xff] %v910
        %s914 = scalar_lea.vmem %s329, 96
        %v915 = vld [vmem:[%s914] sm:$0xff]
        %v916 = vld [vmem:[%s914 + $0x8] sm:$0xff]
        %v917 = vld [vmem:[%s914 + $0x10] sm:$0xff]
        %v918 = vld [vmem:[%s914 + $0x18] sm:$0xff]
        %919 = vmatpush.msra.mxu0 %v418
        %920 = vmatpush.msra.mxu0 %v414
        %921 = vmatpush.msra.mxu0 %v410
        %922 = vmatpush.msra.mxu0 %v406
        %923 = vmatpush.msra.mxu0 %v402
        %924 = vmatpush.msra.mxu0 %v398
        %925 = vmatpush.msra.mxu0 %v394
        %926 = vmatpush.msra.mxu0 %v390
        %927 = vmatpush.msra.mxu0 %v386
        %928 = vmatpush.msra.mxu0 %v382
        %929 = vmatpush.msra.mxu0 %v378
        %930 = vmatpush.msra.mxu0 %v374
        %931 = vmatpush.msra.mxu0 %v370
        %932 = vmatpush.msra.mxu0 %v366
        %933 = vmatpush.msra.mxu0 %v362
        %934 = vmatpush.msra.mxu0 %v358
        %935 = vmatmul.f32.gmra.mxu0 %v910
        %v936 = vpop.f32.mrf.mxu0
        %v937 = vadd.f32 0.0, %v936
        %938 = vdwg.mxu0
        %939 = vmatpush.msra.mxu0 %v419
        %940 = vmatpush.msra.mxu0 %v415
        %941 = vmatpush.msra.mxu0 %v411
        %942 = vmatpush.msra.mxu0 %v407
        %943 = vmatpush.msra.mxu0 %v403
        %944 = vmatpush.msra.mxu0 %v399
        %945 = vmatpush.msra.mxu0 %v395
        %946 = vmatpush.msra.mxu0 %v391
        %947 = vmatpush.msra.mxu0 %v387
        %948 = vmatpush.msra.mxu0 %v383
        %949 = vmatpush.msra.mxu0 %v379
        %950 = vmatpush.msra.mxu0 %v375
        %951 = vmatpush.msra.mxu0 %v371
        %952 = vmatpush.msra.mxu0 %v367
        %953 = vmatpush.msra.mxu0 %v363
        %954 = vmatpush.msra.mxu0 %v359
        %955 = vmatmul.f32.gmra.mxu0 %v910
        %v956 = vpop.f32.mrf.mxu0
        %v957 = vadd.f32 0.0, %v956
        %958 = vdwg.mxu0
        %959 = vmatpush.msra.mxu0 %v420
        %960 = vmatpush.msra.mxu0 %v416
        %961 = vmatpush.msra.mxu0 %v412
        %962 = vmatpush.msra.mxu0 %v408
        %963 = vmatpush.msra.mxu0 %v404
        %964 = vmatpush.msra.mxu0 %v400
        %965 = vmatpush.msra.mxu0 %v396
        %966 = vmatpush.msra.mxu0 %v392
        %967 = vmatpush.msra.mxu0 %v388
        %968 = vmatpush.msra.mxu0 %v384
        %969 = vmatpush.msra.mxu0 %v380
        %970 = vmatpush.msra.mxu0 %v376
        %971 = vmatpush.msra.mxu0 %v372
        %972 = vmatpush.msra.mxu0 %v368
        %973 = vmatpush.msra.mxu0 %v364
        %974 = vmatpush.msra.mxu0 %v360
        %975 = vmatmul.f32.gmra.mxu0 %v910
        %v976 = vpop.f32.mrf.mxu0
        %v977 = vadd.f32 0.0, %v976
        %978 = vdwg.mxu0
        %979 = vmatpush.msra.mxu0 %v421
        %980 = vmatpush.msra.mxu0 %v417
        %981 = vmatpush.msra.mxu0 %v413
        %982 = vmatpush.msra.mxu0 %v409
        %983 = vmatpush.msra.mxu0 %v405
        %984 = vmatpush.msra.mxu0 %v401
        %985 = vmatpush.msra.mxu0 %v397
        %986 = vmatpush.msra.mxu0 %v393
        %987 = vmatpush.msra.mxu0 %v389
        %988 = vmatpush.msra.mxu0 %v385
        %989 = vmatpush.msra.mxu0 %v381
        %990 = vmatpush.msra.mxu0 %v377
        %991 = vmatpush.msra.mxu0 %v373
        %992 = vmatpush.msra.mxu0 %v369
        %993 = vmatpush.msra.mxu0 %v365
        %994 = vmatpush.msra.mxu0 %v361
        %995 = vmatmul.f32.gmra.mxu0 %v910
        %v996 = vpop.f32.mrf.mxu0
        %v997 = vadd.f32 0.0, %v996
        %998 = vdwg.mxu0
        %v999 = vadd.f32 %v915, %v937
        %v1000 = vadd.f32 %v916, %v957
        %v1001 = vadd.f32 %v917, %v977
        %v1002 = vadd.f32 %v918, %v997
        %v1003 = vxor.u32 %v999, 2147483648
        %v1004 = vmul.f32 %v1003, 1.442695
        %v1005 = vpow.pop %v1004
        %v1006 = vadd.f32 %v1005, 1.0
        %v1007 = vrcp.pop %v1006
        %v1008 = vmul.f32 %v1006, %v1007
        %v1009 = vsub.f32 1.0, %v1008
        %v1010 = vmul.f32 %v1007, %v1009
        %v1011 = vadd.f32 %v1007, %v1010
        %vm1012 = vweird.f32 %v1006
        %vm1013 = vweird.f32 %v1007
        %vm1014 = vmor %vm1012, %vm1013
        %v1015 = vsel %vm1014, %v1007, %v1011
        %v1016 = vand.u32 2147483647, %v1006
        %vm1017 = vcmp.eq.f32.partialorder %v1016, 8.507059e+37
        %v1018 = vand.u32 %v1006, 2147483648
        %v1019 = vor.u32 1.1754944e-38, %v1018
        %v1020 = vsel %vm1017, %v1019, %v1015
        %v1021 = vmul.f32 1.0, %v1020
        %v1022 = vxor.u32 %v1000, 2147483648
        %v1023 = vmul.f32 %v1022, 1.442695
        %v1024 = vpow.pop %v1023
        %v1025 = vadd.f32 %v1024, 1.0
        %v1026 = vrcp.pop %v1025
        %v1027 = vmul.f32 %v1025, %v1026
        %v1028 = vsub.f32 1.0, %v1027
        %v1029 = vmul.f32 %v1026, %v1028
        %v1030 = vadd.f32 %v1026, %v1029
        %vm1031 = vweird.f32 %v1025
        %vm1032 = vweird.f32 %v1026
        %vm1033 = vmor %vm1031, %vm1032
        %v1034 = vsel %vm1033, %v1026, %v1030
        %v1035 = vand.u32 2147483647, %v1025
        %vm1036 = vcmp.eq.f32.partialorder %v1035, 8.507059e+37
        %v1037 = vand.u32 %v1025, 2147483648
        %v1038 = vor.u32 1.1754944e-38, %v1037
        %v1039 = vsel %vm1036, %v1038, %v1034
        %v1040 = vmul.f32 1.0, %v1039
        %v1041 = vtanh.pop %v1001
        %v1042 = vxor.u32 %v1002, 2147483648
        %v1043 = vmul.f32 %v1042, 1.442695
        %v1044 = vpow.pop %v1043
        %v1045 = vadd.f32 %v1044, 1.0
        %v1046 = vrcp.pop %v1045
        %v1047 = vmul.f32 %v1045, %v1046
        %v1048 = vsub.f32 1.0, %v1047
        %v1049 = vmul.f32 %v1046, %v1048
        %v1050 = vadd.f32 %v1046, %v1049
        %vm1051 = vweird.f32 %v1045
        %vm1052 = vweird.f32 %v1046
        %vm1053 = vmor %vm1051, %vm1052
        %v1054 = vsel %vm1053, %v1046, %v1050
        %v1055 = vand.u32 2147483647, %v1045
        %vm1056 = vcmp.eq.f32.partialorder %v1055, 8.507059e+37
        %v1057 = vand.u32 %v1045, 2147483648
        %v1058 = vor.u32 1.1754944e-38, %v1057
        %v1059 = vsel %vm1056, %v1058, %v1054
        %v1060 = vmul.f32 1.0, %v1059
        %v1061 = vmul.f32 %v1040, %v911
        %v1062 = vmul.f32 %v1021, %v1041
        %v1063 = vadd.f32 %v1061, %v1062
        %v1064 = vtanh.pop %v1063
        %v1065 = vmul.f32 %v1060, %v1064
        %s1066 = sadd.s32 %s422, 3
        %v1067 = vstv %s1066
        %vm1068 = vcmp.lt.s32.totalorder %v1067, %v357
        %v1069 = vsel %vm1068, 1, 0
        %1070 = vset.pattern.permute.xlu0 0
        %1071 = vperm.xlu0 %1070, %v1069
        %v1072 = vpop.permute.xlu0 %1071
        %vm1073 = vcmp.eq.s32.totalorder %v1072, 1
        %v1074 = vsel %vm1073, %v1065, %v910
        %v1075 = vsel %vm1073, %v1063, %v911
        %s1076 = scalar_lea.vmem %s313, 24 [#allocation4]
        %1077 = vst [vmem:[%s1076] sm:$0xff] %v1074
        %s1078 = scalar_lea.vmem %s329, 128
        %v1079 = vld [vmem:[%s1078] sm:$0xff]
        %v1080 = vld [vmem:[%s1078 + $0x8] sm:$0xff]
        %v1081 = vld [vmem:[%s1078 + $0x10] sm:$0xff]
        %v1082 = vld [vmem:[%s1078 + $0x18] sm:$0xff]
        %1083 = vmatpush.msra.mxu0 %v418
        %1084 = vmatpush.msra.mxu0 %v414
        %1085 = vmatpush.msra.mxu0 %v410
        %1086 = vmatpush.msra.mxu0 %v406
        %1087 = vmatpush.msra.mxu0 %v402
        %1088 = vmatpush.msra.mxu0 %v398
        %1089 = vmatpush.msra.mxu0 %v394
        %1090 = vmatpush.msra.mxu0 %v390
        %1091 = vmatpush.msra.mxu0 %v386
        %1092 = vmatpush.msra.mxu0 %v382
        %1093 = vmatpush.msra.mxu0 %v378
        %1094 = vmatpush.msra.mxu0 %v374
        %1095 = vmatpush.msra.mxu0 %v370
        %1096 = vmatpush.msra.mxu0 %v366
        %1097 = vmatpush.msra.mxu0 %v362
        %1098 = vmatpush.msra.mxu0 %v358
        %1099 = vmatmul.f32.gmra.mxu0 %v1074
        %v1100 = vpop.f32.mrf.mxu0
        %v1101 = vadd.f32 0.0, %v1100
        %1102 = vdwg.mxu0
        %1103 = vmatpush.msra.mxu0 %v419
        %1104 = vmatpush.msra.mxu0 %v415
        %1105 = vmatpush.msra.mxu0 %v411
        %1106 = vmatpush.msra.mxu0 %v407
        %1107 = vmatpush.msra.mxu0 %v403
        %1108 = vmatpush.msra.mxu0 %v399
        %1109 = vmatpush.msra.mxu0 %v395
        %1110 = vmatpush.msra.mxu0 %v391
        %1111 = vmatpush.msra.mxu0 %v387
        %1112 = vmatpush.msra.mxu0 %v383
        %1113 = vmatpush.msra.mxu0 %v379
        %1114 = vmatpush.msra.mxu0 %v375
        %1115 = vmatpush.msra.mxu0 %v371
        %1116 = vmatpush.msra.mxu0 %v367
        %1117 = vmatpush.msra.mxu0 %v363
        %1118 = vmatpush.msra.mxu0 %v359
        %1119 = vmatmul.f32.gmra.mxu0 %v1074
        %v1120 = vpop.f32.mrf.mxu0
        %v1121 = vadd.f32 0.0, %v1120
        %1122 = vdwg.mxu0
        %1123 = vmatpush.msra.mxu0 %v420
        %1124 = vmatpush.msra.mxu0 %v416
        %1125 = vmatpush.msra.mxu0 %v412
        %1126 = vmatpush.msra.mxu0 %v408
        %1127 = vmatpush.msra.mxu0 %v404
        %1128 = vmatpush.msra.mxu0 %v400
        %1129 = vmatpush.msra.mxu0 %v396
        %1130 = vmatpush.msra.mxu0 %v392
        %1131 = vmatpush.msra.mxu0 %v388
        %1132 = vmatpush.msra.mxu0 %v384
        %1133 = vmatpush.msra.mxu0 %v380
        %1134 = vmatpush.msra.mxu0 %v376
        %1135 = vmatpush.msra.mxu0 %v372
        %1136 = vmatpush.msra.mxu0 %v368
        %1137 = vmatpush.msra.mxu0 %v364
        %1138 = vmatpush.msra.mxu0 %v360
        %1139 = vmatmul.f32.gmra.mxu0 %v1074
        %v1140 = vpop.f32.mrf.mxu0
        %v1141 = vadd.f32 0.0, %v1140
        %1142 = vdwg.mxu0
        %1143 = vmatpush.msra.mxu0 %v421
        %1144 = vmatpush.msra.mxu0 %v417
        %1145 = vmatpush.msra.mxu0 %v413
        %1146 = vmatpush.msra.mxu0 %v409
        %1147 = vmatpush.msra.mxu0 %v405
        %1148 = vmatpush.msra.mxu0 %v401
        %1149 = vmatpush.msra.mxu0 %v397
        %1150 = vmatpush.msra.mxu0 %v393
        %1151 = vmatpush.msra.mxu0 %v389
        %1152 = vmatpush.msra.mxu0 %v385
        %1153 = vmatpush.msra.mxu0 %v381
        %1154 = vmatpush.msra.mxu0 %v377
        %1155 = vmatpush.msra.mxu0 %v373
        %1156 = vmatpush.msra.mxu0 %v369
        %1157 = vmatpush.msra.mxu0 %v365
        %1158 = vmatpush.msra.mxu0 %v361
        %1159 = vmatmul.f32.gmra.mxu0 %v1074
        %v1160 = vpop.f32.mrf.mxu0
        %v1161 = vadd.f32 0.0, %v1160
        %1162 = vdwg.mxu0
        %v1163 = vadd.f32 %v1079, %v1101
        %v1164 = vadd.f32 %v1080, %v1121
        %v1165 = vadd.f32 %v1081, %v1141
        %v1166 = vadd.f32 %v1082, %v1161
        %v1167 = vxor.u32 %v1163, 2147483648
        %v1168 = vmul.f32 %v1167, 1.442695
        %v1169 = vpow.pop %v1168
        %v1170 = vadd.f32 %v1169, 1.0
        %v1171 = vrcp.pop %v1170
        %v1172 = vmul.f32 %v1170, %v1171
        %v1173 = vsub.f32 1.0, %v1172
        %v1174 = vmul.f32 %v1171, %v1173
        %v1175 = vadd.f32 %v1171, %v1174
        %vm1176 = vweird.f32 %v1170
        %vm1177 = vweird.f32 %v1171
        %vm1178 = vmor %vm1176, %vm1177
        %v1179 = vsel %vm1178, %v1171, %v1175
        %v1180 = vand.u32 2147483647, %v1170
        %vm1181 = vcmp.eq.f32.partialorder %v1180, 8.507059e+37
        %v1182 = vand.u32 %v1170, 2147483648
        %v1183 = vor.u32 1.1754944e-38, %v1182
        %v1184 = vsel %vm1181, %v1183, %v1179
        %v1185 = vmul.f32 1.0, %v1184
        %v1186 = vxor.u32 %v1164, 2147483648
        %v1187 = vmul.f32 %v1186, 1.442695
        %v1188 = vpow.pop %v1187
        %v1189 = vadd.f32 %v1188, 1.0
        %v1190 = vrcp.pop %v1189
        %v1191 = vmul.f32 %v1189, %v1190
        %v1192 = vsub.f32 1.0, %v1191
        %v1193 = vmul.f32 %v1190, %v1192
        %v1194 = vadd.f32 %v1190, %v1193
        %vm1195 = vweird.f32 %v1189
        %vm1196 = vweird.f32 %v1190
        %vm1197 = vmor %vm1195, %vm1196
        %v1198 = vsel %vm1197, %v1190, %v1194
        %v1199 = vand.u32 2147483647, %v1189
        %vm1200 = vcmp.eq.f32.partialorder %v1199, 8.507059e+37
        %v1201 = vand.u32 %v1189, 2147483648
        %v1202 = vor.u32 1.1754944e-38, %v1201
        %v1203 = vsel %vm1200, %v1202, %v1198
        %v1204 = vmul.f32 1.0, %v1203
        %v1205 = vtanh.pop %v1165
        %v1206 = vxor.u32 %v1166, 2147483648
        %v1207 = vmul.f32 %v1206, 1.442695
        %v1208 = vpow.pop %v1207
        %v1209 = vadd.f32 %v1208, 1.0
        %v1210 = vrcp.pop %v1209
        %v1211 = vmul.f32 %v1209, %v1210
        %v1212 = vsub.f32 1.0, %v1211
        %v1213 = vmul.f32 %v1210, %v1212
        %v1214 = vadd.f32 %v1210, %v1213
        %vm1215 = vweird.f32 %v1209
        %vm1216 = vweird.f32 %v1210
        %vm1217 = vmor %vm1215, %vm1216
        %v1218 = vsel %vm1217, %v1210, %v1214
        %v1219 = vand.u32 2147483647, %v1209
        %vm1220 = vcmp.eq.f32.partialorder %v1219, 8.507059e+37
        %v1221 = vand.u32 %v1209, 2147483648
        %v1222 = vor.u32 1.1754944e-38, %v1221
        %v1223 = vsel %vm1220, %v1222, %v1218
        %v1224 = vmul.f32 1.0, %v1223
        %v1225 = vmul.f32 %v1204, %v1075
        %v1226 = vmul.f32 %v1185, %v1205
        %v1227 = vadd.f32 %v1225, %v1226
        %v1228 = vtanh.pop %v1227
        %v1229 = vmul.f32 %v1224, %v1228
        %s1230 = sadd.s32 %s422, 4
        %v1231 = vstv %s1230
        %vm1232 = vcmp.lt.s32.totalorder %v1231, %v357
        %v1233 = vsel %vm1232, 1, 0
        %1234 = vset.pattern.permute.xlu0 0
        %1235 = vperm.xlu0 %1234, %v1233
        %v1236 = vpop.permute.xlu0 %1235
        %vm1237 = vcmp.eq.s32.totalorder %v1236, 1
        %v1238 = vsel %vm1237, %v1229, %v1074
        %v1239 = vsel %vm1237, %v1227, %v1075
        %s1240 = scalar_lea.vmem %s313, 32 [#allocation4]
        %1241 = vst [vmem:[%s1240] sm:$0xff] %v1238
        %s1242 = scalar_lea.vmem %s329, 160
        %v1243 = vld [vmem:[%s1242] sm:$0xff]
        %v1244 = vld [vmem:[%s1242 + $0x8] sm:$0xff]
        %v1245 = vld [vmem:[%s1242 + $0x10] sm:$0xff]
        %v1246 = vld [vmem:[%s1242 + $0x18] sm:$0xff]
        %1247 = vmatpush.msra.mxu0 %v418
        %1248 = vmatpush.msra.mxu0 %v414
        %1249 = vmatpush.msra.mxu0 %v410
        %1250 = vmatpush.msra.mxu0 %v406
        %1251 = vmatpush.msra.mxu0 %v402
        %1252 = vmatpush.msra.mxu0 %v398
        %1253 = vmatpush.msra.mxu0 %v394
        %1254 = vmatpush.msra.mxu0 %v390
        %1255 = vmatpush.msra.mxu0 %v386
        %1256 = vmatpush.msra.mxu0 %v382
        %1257 = vmatpush.msra.mxu0 %v378
        %1258 = vmatpush.msra.mxu0 %v374
        %1259 = vmatpush.msra.mxu0 %v370
        %1260 = vmatpush.msra.mxu0 %v366
        %1261 = vmatpush.msra.mxu0 %v362
        %1262 = vmatpush.msra.mxu0 %v358
        %1263 = vmatmul.f32.gmra.mxu0 %v1238
        %v1264 = vpop.f32.mrf.mxu0
        %v1265 = vadd.f32 0.0, %v1264
        %1266 = vdwg.mxu0
        %1267 = vmatpush.msra.mxu0 %v419
        %1268 = vmatpush.msra.mxu0 %v415
        %1269 = vmatpush.msra.mxu0 %v411
        %1270 = vmatpush.msra.mxu0 %v407
        %1271 = vmatpush.msra.mxu0 %v403
        %1272 = vmatpush.msra.mxu0 %v399
        %1273 = vmatpush.msra.mxu0 %v395
        %1274 = vmatpush.msra.mxu0 %v391
        %1275 = vmatpush.msra.mxu0 %v387
        %1276 = vmatpush.msra.mxu0 %v383
        %1277 = vmatpush.msra.mxu0 %v379
        %1278 = vmatpush.msra.mxu0 %v375
        %1279 = vmatpush.msra.mxu0 %v371
        %1280 = vmatpush.msra.mxu0 %v367
        %1281 = vmatpush.msra.mxu0 %v363
        %1282 = vmatpush.msra.mxu0 %v359
        %1283 = vmatmul.f32.gmra.mxu0 %v1238
        %v1284 = vpop.f32.mrf.mxu0
        %v1285 = vadd.f32 0.0, %v1284
        %1286 = vdwg.mxu0
        %1287 = vmatpush.msra.mxu0 %v420
        %1288 = vmatpush.msra.mxu0 %v416
        %1289 = vmatpush.msra.mxu0 %v412
        %1290 = vmatpush.msra.mxu0 %v408
        %1291 = vmatpush.msra.mxu0 %v404
        %1292 = vmatpush.msra.mxu0 %v400
        %1293 = vmatpush.msra.mxu0 %v396
        %1294 = vmatpush.msra.mxu0 %v392
        %1295 = vmatpush.msra.mxu0 %v388
        %1296 = vmatpush.msra.mxu0 %v384
        %1297 = vmatpush.msra.mxu0 %v380
        %1298 = vmatpush.msra.mxu0 %v376
        %1299 = vmatpush.msra.mxu0 %v372
        %1300 = vmatpush.msra.mxu0 %v368
        %1301 = vmatpush.msra.mxu0 %v364
        %1302 = vmatpush.msra.mxu0 %v360
        %1303 = vmatmul.f32.gmra.mxu0 %v1238
        %v1304 = vpop.f32.mrf.mxu0
        %v1305 = vadd.f32 0.0, %v1304
        %1306 = vdwg.mxu0
        %1307 = vmatpush.msra.mxu0 %v421
        %1308 = vmatpush.msra.mxu0 %v417
        %1309 = vmatpush.msra.mxu0 %v413
        %1310 = vmatpush.msra.mxu0 %v409
        %1311 = vmatpush.msra.mxu0 %v405
        %1312 = vmatpush.msra.mxu0 %v401
        %1313 = vmatpush.msra.mxu0 %v397
        %1314 = vmatpush.msra.mxu0 %v393
        %1315 = vmatpush.msra.mxu0 %v389
        %1316 = vmatpush.msra.mxu0 %v385
        %1317 = vmatpush.msra.mxu0 %v381
        %1318 = vmatpush.msra.mxu0 %v377
        %1319 = vmatpush.msra.mxu0 %v373
        %1320 = vmatpush.msra.mxu0 %v369
        %1321 = vmatpush.msra.mxu0 %v365
        %1322 = vmatpush.msra.mxu0 %v361
        %1323 = vmatmul.f32.gmra.mxu0 %v1238
        %v1324 = vpop.f32.mrf.mxu0
        %v1325 = vadd.f32 0.0, %v1324
        %1326 = vdwg.mxu0
        %v1327 = vadd.f32 %v1243, %v1265
        %v1328 = vadd.f32 %v1244, %v1285
        %v1329 = vadd.f32 %v1245, %v1305
        %v1330 = vadd.f32 %v1246, %v1325
        %v1331 = vxor.u32 %v1327, 2147483648
        %v1332 = vmul.f32 %v1331, 1.442695
        %v1333 = vpow.pop %v1332
        %v1334 = vadd.f32 %v1333, 1.0
        %v1335 = vrcp.pop %v1334
        %v1336 = vmul.f32 %v1334, %v1335
        %v1337 = vsub.f32 1.0, %v1336
        %v1338 = vmul.f32 %v1335, %v1337
        %v1339 = vadd.f32 %v1335, %v1338
        %vm1340 = vweird.f32 %v1334
        %vm1341 = vweird.f32 %v1335
        %vm1342 = vmor %vm1340, %vm1341
        %v1343 = vsel %vm1342, %v1335, %v1339
        %v1344 = vand.u32 2147483647, %v1334
        %vm1345 = vcmp.eq.f32.partialorder %v1344, 8.507059e+37
        %v1346 = vand.u32 %v1334, 2147483648
        %v1347 = vor.u32 1.1754944e-38, %v1346
        %v1348 = vsel %vm1345, %v1347, %v1343
        %v1349 = vmul.f32 1.0, %v1348
        %v1350 = vxor.u32 %v1328, 2147483648
        %v1351 = vmul.f32 %v1350, 1.442695
        %v1352 = vpow.pop %v1351
        %v1353 = vadd.f32 %v1352, 1.0
        %v1354 = vrcp.pop %v1353
        %v1355 = vmul.f32 %v1353, %v1354
        %v1356 = vsub.f32 1.0, %v1355
        %v1357 = vmul.f32 %v1354, %v1356
        %v1358 = vadd.f32 %v1354, %v1357
        %vm1359 = vweird.f32 %v1353
        %vm1360 = vweird.f32 %v1354
        %vm1361 = vmor %vm1359, %vm1360
        %v1362 = vsel %vm1361, %v1354, %v1358
        %v1363 = vand.u32 2147483647, %v1353
        %vm1364 = vcmp.eq.f32.partialorder %v1363, 8.507059e+37
        %v1365 = vand.u32 %v1353, 2147483648
        %v1366 = vor.u32 1.1754944e-38, %v1365
        %v1367 = vsel %vm1364, %v1366, %v1362
        %v1368 = vmul.f32 1.0, %v1367
        %v1369 = vtanh.pop %v1329
        %v1370 = vxor.u32 %v1330, 2147483648
        %v1371 = vmul.f32 %v1370, 1.442695
        %v1372 = vpow.pop %v1371
        %v1373 = vadd.f32 %v1372, 1.0
        %v1374 = vrcp.pop %v1373
        %v1375 = vmul.f32 %v1373, %v1374
        %v1376 = vsub.f32 1.0, %v1375
        %v1377 = vmul.f32 %v1374, %v1376
        %v1378 = vadd.f32 %v1374, %v1377
        %vm1379 = vweird.f32 %v1373
        %vm1380 = vweird.f32 %v1374
        %vm1381 = vmor %vm1379, %vm1380
        %v1382 = vsel %vm1381, %v1374, %v1378
        %v1383 = vand.u32 2147483647, %v1373
        %vm1384 = vcmp.eq.f32.partialorder %v1383, 8.507059e+37
        %v1385 = vand.u32 %v1373, 2147483648
        %v1386 = vor.u32 1.1754944e-38, %v1385
        %v1387 = vsel %vm1384, %v1386, %v1382
        %v1388 = vmul.f32 1.0, %v1387
        %v1389 = vmul.f32 %v1368, %v1239
        %v1390 = vmul.f32 %v1349, %v1369
        %v1391 = vadd.f32 %v1389, %v1390
        %v1392 = vtanh.pop %v1391
        %v1393 = vmul.f32 %v1388, %v1392
        %s1394 = sadd.s32 %s422, 5
        %v1395 = vstv %s1394
        %vm1396 = vcmp.lt.s32.totalorder %v1395, %v357
        %v1397 = vsel %vm1396, 1, 0
        %1398 = vset.pattern.permute.xlu0 0
        %1399 = vperm.xlu0 %1398, %v1397
        %v1400 = vpop.permute.xlu0 %1399
        %vm1401 = vcmp.eq.s32.totalorder %v1400, 1
        %v1402 = vsel %vm1401, %v1393, %v1238
        %v1403 = vsel %vm1401, %v1391, %v1239
        %s1404 = scalar_lea.vmem %s313, 40 [#allocation4]
        %1405 = vst [vmem:[%s1404] sm:$0xff] %v1402
        %s1406 = scalar_lea.vmem %s329, 192
        %v1407 = vld [vmem:[%s1406] sm:$0xff]
        %v1408 = vld [vmem:[%s1406 + $0x8] sm:$0xff]
        %v1409 = vld [vmem:[%s1406 + $0x10] sm:$0xff]
        %v1410 = vld [vmem:[%s1406 + $0x18] sm:$0xff]
        %1411 = vmatpush.msra.mxu0 %v418
        %1412 = vmatpush.msra.mxu0 %v414
        %1413 = vmatpush.msra.mxu0 %v410
        %1414 = vmatpush.msra.mxu0 %v406
        %1415 = vmatpush.msra.mxu0 %v402
        %1416 = vmatpush.msra.mxu0 %v398
        %1417 = vmatpush.msra.mxu0 %v394
        %1418 = vmatpush.msra.mxu0 %v390
        %1419 = vmatpush.msra.mxu0 %v386
        %1420 = vmatpush.msra.mxu0 %v382
        %1421 = vmatpush.msra.mxu0 %v378
        %1422 = vmatpush.msra.mxu0 %v374
        %1423 = vmatpush.msra.mxu0 %v370
        %1424 = vmatpush.msra.mxu0 %v366
        %1425 = vmatpush.msra.mxu0 %v362
        %1426 = vmatpush.msra.mxu0 %v358
        %1427 = vmatmul.f32.gmra.mxu0 %v1402
        %v1428 = vpop.f32.mrf.mxu0
        %v1429 = vadd.f32 0.0, %v1428
        %1430 = vdwg.mxu0
        %1431 = vmatpush.msra.mxu0 %v419
        %1432 = vmatpush.msra.mxu0 %v415
        %1433 = vmatpush.msra.mxu0 %v411
        %1434 = vmatpush.msra.mxu0 %v407
        %1435 = vmatpush.msra.mxu0 %v403
        %1436 = vmatpush.msra.mxu0 %v399
        %1437 = vmatpush.msra.mxu0 %v395
        %1438 = vmatpush.msra.mxu0 %v391
        %1439 = vmatpush.msra.mxu0 %v387
        %1440 = vmatpush.msra.mxu0 %v383
        %1441 = vmatpush.msra.mxu0 %v379
        %1442 = vmatpush.msra.mxu0 %v375
        %1443 = vmatpush.msra.mxu0 %v371
        %1444 = vmatpush.msra.mxu0 %v367
        %1445 = vmatpush.msra.mxu0 %v363
        %1446 = vmatpush.msra.mxu0 %v359
        %1447 = vmatmul.f32.gmra.mxu0 %v1402
        %v1448 = vpop.f32.mrf.mxu0
        %v1449 = vadd.f32 0.0, %v1448
        %1450 = vdwg.mxu0
        %1451 = vmatpush.msra.mxu0 %v420
        %1452 = vmatpush.msra.mxu0 %v416
        %1453 = vmatpush.msra.mxu0 %v412
        %1454 = vmatpush.msra.mxu0 %v408
        %1455 = vmatpush.msra.mxu0 %v404
        %1456 = vmatpush.msra.mxu0 %v400
        %1457 = vmatpush.msra.mxu0 %v396
        %1458 = vmatpush.msra.mxu0 %v392
        %1459 = vmatpush.msra.mxu0 %v388
        %1460 = vmatpush.msra.mxu0 %v384
        %1461 = vmatpush.msra.mxu0 %v380
        %1462 = vmatpush.msra.mxu0 %v376
        %1463 = vmatpush.msra.mxu0 %v372
        %1464 = vmatpush.msra.mxu0 %v368
        %1465 = vmatpush.msra.mxu0 %v364
        %1466 = vmatpush.msra.mxu0 %v360
        %1467 = vmatmul.f32.gmra.mxu0 %v1402
        %v1468 = vpop.f32.mrf.mxu0
        %v1469 = vadd.f32 0.0, %v1468
        %1470 = vdwg.mxu0
        %1471 = vmatpush.msra.mxu0 %v421
        %1472 = vmatpush.msra.mxu0 %v417
        %1473 = vmatpush.msra.mxu0 %v413
        %1474 = vmatpush.msra.mxu0 %v409
        %1475 = vmatpush.msra.mxu0 %v405
        %1476 = vmatpush.msra.mxu0 %v401
        %1477 = vmatpush.msra.mxu0 %v397
        %1478 = vmatpush.msra.mxu0 %v393
        %1479 = vmatpush.msra.mxu0 %v389
        %1480 = vmatpush.msra.mxu0 %v385
        %1481 = vmatpush.msra.mxu0 %v381
        %1482 = vmatpush.msra.mxu0 %v377
        %1483 = vmatpush.msra.mxu0 %v373
        %1484 = vmatpush.msra.mxu0 %v369
        %1485 = vmatpush.msra.mxu0 %v365
        %1486 = vmatpush.msra.mxu0 %v361
        %1487 = vmatmul.f32.gmra.mxu0 %v1402
        %v1488 = vpop.f32.mrf.mxu0
        %v1489 = vadd.f32 0.0, %v1488
        %1490 = vdwg.mxu0
        %v1491 = vadd.f32 %v1407, %v1429
        %v1492 = vadd.f32 %v1408, %v1449
        %v1493 = vadd.f32 %v1409, %v1469
        %v1494 = vadd.f32 %v1410, %v1489
        %v1495 = vxor.u32 %v1491, 2147483648
        %v1496 = vmul.f32 %v1495, 1.442695
        %v1497 = vpow.pop %v1496
        %v1498 = vadd.f32 %v1497, 1.0
        %v1499 = vrcp.pop %v1498
        %v1500 = vmul.f32 %v1498, %v1499
        %v1501 = vsub.f32 1.0, %v1500
        %v1502 = vmul.f32 %v1499, %v1501
        %v1503 = vadd.f32 %v1499, %v1502
        %vm1504 = vweird.f32 %v1498
        %vm1505 = vweird.f32 %v1499
        %vm1506 = vmor %vm1504, %vm1505
        %v1507 = vsel %vm1506, %v1499, %v1503
        %v1508 = vand.u32 2147483647, %v1498
        %vm1509 = vcmp.eq.f32.partialorder %v1508, 8.507059e+37
        %v1510 = vand.u32 %v1498, 2147483648
        %v1511 = vor.u32 1.1754944e-38, %v1510
        %v1512 = vsel %vm1509, %v1511, %v1507
        %v1513 = vmul.f32 1.0, %v1512
        %v1514 = vxor.u32 %v1492, 2147483648
        %v1515 = vmul.f32 %v1514, 1.442695
        %v1516 = vpow.pop %v1515
        %v1517 = vadd.f32 %v1516, 1.0
        %v1518 = vrcp.pop %v1517
        %v1519 = vmul.f32 %v1517, %v1518
        %v1520 = vsub.f32 1.0, %v1519
        %v1521 = vmul.f32 %v1518, %v1520
        %v1522 = vadd.f32 %v1518, %v1521
        %vm1523 = vweird.f32 %v1517
        %vm1524 = vweird.f32 %v1518
        %vm1525 = vmor %vm1523, %vm1524
        %v1526 = vsel %vm1525, %v1518, %v1522
        %v1527 = vand.u32 2147483647, %v1517
        %vm1528 = vcmp.eq.f32.partialorder %v1527, 8.507059e+37
        %v1529 = vand.u32 %v1517, 2147483648
        %v1530 = vor.u32 1.1754944e-38, %v1529
        %v1531 = vsel %vm1528, %v1530, %v1526
        %v1532 = vmul.f32 1.0, %v1531
        %v1533 = vtanh.pop %v1493
        %v1534 = vxor.u32 %v1494, 2147483648
        %v1535 = vmul.f32 %v1534, 1.442695
        %v1536 = vpow.pop %v1535
        %v1537 = vadd.f32 %v1536, 1.0
        %v1538 = vrcp.pop %v1537
        %v1539 = vmul.f32 %v1537, %v1538
        %v1540 = vsub.f32 1.0, %v1539
        %v1541 = vmul.f32 %v1538, %v1540
        %v1542 = vadd.f32 %v1538, %v1541
        %vm1543 = vweird.f32 %v1537
        %vm1544 = vweird.f32 %v1538
        %vm1545 = vmor %vm1543, %vm1544
        %v1546 = vsel %vm1545, %v1538, %v1542
        %v1547 = vand.u32 2147483647, %v1537
        %vm1548 = vcmp.eq.f32.partialorder %v1547, 8.507059e+37
        %v1549 = vand.u32 %v1537, 2147483648
        %v1550 = vor.u32 1.1754944e-38, %v1549
        %v1551 = vsel %vm1548, %v1550, %v1546
        %v1552 = vmul.f32 1.0, %v1551
        %v1553 = vmul.f32 %v1532, %v1403
        %v1554 = vmul.f32 %v1513, %v1533
        %v1555 = vadd.f32 %v1553, %v1554
        %v1556 = vtanh.pop %v1555
        %v1557 = vmul.f32 %v1552, %v1556
        %s1558 = sadd.s32 %s422, 6
        %v1559 = vstv %s1558
        %vm1560 = vcmp.lt.s32.totalorder %v1559, %v357
        %v1561 = vsel %vm1560, 1, 0
        %1562 = vset.pattern.permute.xlu0 0
        %1563 = vperm.xlu0 %1562, %v1561
        %v1564 = vpop.permute.xlu0 %1563
        %vm1565 = vcmp.eq.s32.totalorder %v1564, 1
        %v1566 = vsel %vm1565, %v1557, %v1402
        %v1567 = vsel %vm1565, %v1555, %v1403
        %s1568 = scalar_lea.vmem %s313, 48 [#allocation4]
        %1569 = vst [vmem:[%s1568] sm:$0xff] %v1566
        %s1570 = scalar_lea.vmem %s329, 224
        %v1571 = vld [vmem:[%s1570] sm:$0xff]
        %v1572 = vld [vmem:[%s1570 + $0x8] sm:$0xff]
        %v1573 = vld [vmem:[%s1570 + $0x10] sm:$0xff]
        %v1574 = vld [vmem:[%s1570 + $0x18] sm:$0xff]
        %1575 = vmatpush.msra.mxu0 %v418
        %1576 = vmatpush.msra.mxu0 %v414
        %1577 = vmatpush.msra.mxu0 %v410
        %1578 = vmatpush.msra.mxu0 %v406
        %1579 = vmatpush.msra.mxu0 %v402
        %1580 = vmatpush.msra.mxu0 %v398
        %1581 = vmatpush.msra.mxu0 %v394
        %1582 = vmatpush.msra.mxu0 %v390
        %1583 = vmatpush.msra.mxu0 %v386
        %1584 = vmatpush.msra.mxu0 %v382
        %1585 = vmatpush.msra.mxu0 %v378
        %1586 = vmatpush.msra.mxu0 %v374
        %1587 = vmatpush.msra.mxu0 %v370
        %1588 = vmatpush.msra.mxu0 %v366
        %1589 = vmatpush.msra.mxu0 %v362
        %1590 = vmatpush.msra.mxu0 %v358
        %1591 = vmatmul.f32.gmra.mxu0 %v1566
        %v1592 = vpop.f32.mrf.mxu0
        %v1593 = vadd.f32 0.0, %v1592
        %1594 = vdwg.mxu0
        %1595 = vmatpush.msra.mxu0 %v419
        %1596 = vmatpush.msra.mxu0 %v415
        %1597 = vmatpush.msra.mxu0 %v411
        %1598 = vmatpush.msra.mxu0 %v407
        %1599 = vmatpush.msra.mxu0 %v403
        %1600 = vmatpush.msra.mxu0 %v399
        %1601 = vmatpush.msra.mxu0 %v395
        %1602 = vmatpush.msra.mxu0 %v391
        %1603 = vmatpush.msra.mxu0 %v387
        %1604 = vmatpush.msra.mxu0 %v383
        %1605 = vmatpush.msra.mxu0 %v379
        %1606 = vmatpush.msra.mxu0 %v375
        %1607 = vmatpush.msra.mxu0 %v371
        %1608 = vmatpush.msra.mxu0 %v367
        %1609 = vmatpush.msra.mxu0 %v363
        %1610 = vmatpush.msra.mxu0 %v359
        %1611 = vmatmul.f32.gmra.mxu0 %v1566
        %v1612 = vpop.f32.mrf.mxu0
        %v1613 = vadd.f32 0.0, %v1612
        %1614 = vdwg.mxu0
        %1615 = vmatpush.msra.mxu0 %v420
        %1616 = vmatpush.msra.mxu0 %v416
        %1617 = vmatpush.msra.mxu0 %v412
        %1618 = vmatpush.msra.mxu0 %v408
        %1619 = vmatpush.msra.mxu0 %v404
        %1620 = vmatpush.msra.mxu0 %v400
        %1621 = vmatpush.msra.mxu0 %v396
        %1622 = vmatpush.msra.mxu0 %v392
        %1623 = vmatpush.msra.mxu0 %v388
        %1624 = vmatpush.msra.mxu0 %v384
        %1625 = vmatpush.msra.mxu0 %v380
        %1626 = vmatpush.msra.mxu0 %v376
        %1627 = vmatpush.msra.mxu0 %v372
        %1628 = vmatpush.msra.mxu0 %v368
        %1629 = vmatpush.msra.mxu0 %v364
        %1630 = vmatpush.msra.mxu0 %v360
        %1631 = vmatmul.f32.gmra.mxu0 %v1566
        %v1632 = vpop.f32.mrf.mxu0
        %v1633 = vadd.f32 0.0, %v1632
        %1634 = vdwg.mxu0
        %1635 = vmatpush.msra.mxu0 %v421
        %1636 = vmatpush.msra.mxu0 %v417
        %1637 = vmatpush.msra.mxu0 %v413
        %1638 = vmatpush.msra.mxu0 %v409
        %1639 = vmatpush.msra.mxu0 %v405
        %1640 = vmatpush.msra.mxu0 %v401
        %1641 = vmatpush.msra.mxu0 %v397
        %1642 = vmatpush.msra.mxu0 %v393
        %1643 = vmatpush.msra.mxu0 %v389
        %1644 = vmatpush.msra.mxu0 %v385
        %1645 = vmatpush.msra.mxu0 %v381
        %1646 = vmatpush.msra.mxu0 %v377
        %1647 = vmatpush.msra.mxu0 %v373
        %1648 = vmatpush.msra.mxu0 %v369
        %1649 = vmatpush.msra.mxu0 %v365
        %1650 = vmatpush.msra.mxu0 %v361
        %1651 = vmatmul.f32.gmra.mxu0 %v1566
        %v1652 = vpop.f32.mrf.mxu0
        %v1653 = vadd.f32 0.0, %v1652
        %1654 = vdwg.mxu0
        %v1655 = vadd.f32 %v1571, %v1593
        %v1656 = vadd.f32 %v1572, %v1613
        %v1657 = vadd.f32 %v1573, %v1633
        %v1658 = vadd.f32 %v1574, %v1653
        %v1659 = vxor.u32 %v1655, 2147483648
        %v1660 = vmul.f32 %v1659, 1.442695
        %v1661 = vpow.pop %v1660
        %v1662 = vadd.f32 %v1661, 1.0
        %v1663 = vrcp.pop %v1662
        %v1664 = vmul.f32 %v1662, %v1663
        %v1665 = vsub.f32 1.0, %v1664
        %v1666 = vmul.f32 %v1663, %v1665
        %v1667 = vadd.f32 %v1663, %v1666
        %vm1668 = vweird.f32 %v1662
        %vm1669 = vweird.f32 %v1663
        %vm1670 = vmor %vm1668, %vm1669
        %v1671 = vsel %vm1670, %v1663, %v1667
        %v1672 = vand.u32 2147483647, %v1662
        %vm1673 = vcmp.eq.f32.partialorder %v1672, 8.507059e+37
        %v1674 = vand.u32 %v1662, 2147483648
        %v1675 = vor.u32 1.1754944e-38, %v1674
        %v1676 = vsel %vm1673, %v1675, %v1671
        %v1677 = vmul.f32 1.0, %v1676
        %v1678 = vxor.u32 %v1656, 2147483648
        %v1679 = vmul.f32 %v1678, 1.442695
        %v1680 = vpow.pop %v1679
        %v1681 = vadd.f32 %v1680, 1.0
        %v1682 = vrcp.pop %v1681
        %v1683 = vmul.f32 %v1681, %v1682
        %v1684 = vsub.f32 1.0, %v1683
        %v1685 = vmul.f32 %v1682, %v1684
        %v1686 = vadd.f32 %v1682, %v1685
        %vm1687 = vweird.f32 %v1681
        %vm1688 = vweird.f32 %v1682
        %vm1689 = vmor %vm1687, %vm1688
        %v1690 = vsel %vm1689, %v1682, %v1686
        %v1691 = vand.u32 2147483647, %v1681
        %vm1692 = vcmp.eq.f32.partialorder %v1691, 8.507059e+37
        %v1693 = vand.u32 %v1681, 2147483648
        %v1694 = vor.u32 1.1754944e-38, %v1693
        %v1695 = vsel %vm1692, %v1694, %v1690
        %v1696 = vmul.f32 1.0, %v1695
        %v1697 = vtanh.pop %v1657
        %v1698 = vxor.u32 %v1658, 2147483648
        %v1699 = vmul.f32 %v1698, 1.442695
        %v1700 = vpow.pop %v1699
        %v1701 = vadd.f32 %v1700, 1.0
        %v1702 = vrcp.pop %v1701
        %v1703 = vmul.f32 %v1701, %v1702
        %v1704 = vsub.f32 1.0, %v1703
        %v1705 = vmul.f32 %v1702, %v1704
        %v1706 = vadd.f32 %v1702, %v1705
        %vm1707 = vweird.f32 %v1701
        %vm1708 = vweird.f32 %v1702
        %vm1709 = vmor %vm1707, %vm1708
        %v1710 = vsel %vm1709, %v1702, %v1706
        %v1711 = vand.u32 2147483647, %v1701
        %vm1712 = vcmp.eq.f32.partialorder %v1711, 8.507059e+37
        %v1713 = vand.u32 %v1701, 2147483648
        %v1714 = vor.u32 1.1754944e-38, %v1713
        %v1715 = vsel %vm1712, %v1714, %v1710
        %v1716 = vmul.f32 1.0, %v1715
        %v1717 = vmul.f32 %v1696, %v1567
        %v1718 = vmul.f32 %v1677, %v1697
        %v1719 = vadd.f32 %v1717, %v1718
        %v1720 = vtanh.pop %v1719
        %v1721 = vmul.f32 %v1716, %v1720
        %s1722 = sadd.s32 %s422, 7
        %v1723 = vstv %s1722
        %vm1724 = vcmp.lt.s32.totalorder %v1723, %v357
        %v1725 = vsel %vm1724, 1, 0
        %1726 = vset.pattern.permute.xlu0 0
        %1727 = vperm.xlu0 %1726, %v1725
        %v1728 = vpop.permute.xlu0 %1727
        %vm1729 = vcmp.eq.s32.totalorder %v1728, 1
        %v1730 = vsel %vm1729, %v1721, %v1566
        %v1731 = vsel %vm1729, %v1719, %v1567
        %s1732 = scalar_lea.vmem %s313, 56 [#allocation4]
        %1733 = vst [vmem:[%s1732] sm:$0xff] %v1730
        %1734 = vst [vmem:[#allocation2] sm:$0xff] %v1730
        %1735 = vst [vmem:[#allocation3] sm:$0xff] %v1731
        // Predicated region
        $region45: #{encoder_forward.3} parent=39 // pred_check
          %p1736 = pneg %p349
        $region46: #{encoder_forward.3} parent=39 // pred_check_branch
          %1738 = sbr.rel (%p1736) target = $region48
        $region47: #{encoder_forward.3} parent=39 // pred_region
          %1739 = vst [vmem:[%s348] sm:$0xff] %v1730
        $region48: #{encoder_forward.3} parent=39 // pred_fallthru
          _
        %s1740 = sand.u32 %s170, 1
        %s1741 = scalar_lea.sflag [#allocation5], %s1740
        %s1742 = sand.u32 %s170, 1
        %s1743 = smul.addr %s1742, 64
        %s1744 = scalar_lea.vmem [#allocation4], %s1743
        %p1745 = scmp.lt.s32.totalorder %s25, 1
        %s1746 = scalar_select %p1745, %s25, 1
        %s1747 = smul.addr %s1746, 8
        %s1748 = scalar_lea.vmem %s6, %s1747
        // Predicated region
        $region49: #{encoder_forward.3} parent=39 // pred_check
          %p1749 = pneg %p180
        $region50: #{encoder_forward.3} parent=39 // pred_check_branch
          %1751 = sbr.rel (%p1749) target = $region52
        $region51: #{encoder_forward.3} parent=39 // pred_region
          %s1752 = smul.u32 8, %s26
          %1754 = vsyncadd %s1741, 0
          %s1755 = smul.addr %s25, 8
          %s1756 = sadd.s32 %s1752, %s1755
          %s1757 = smul.addr %s1756, 8
          %s1758 = scalar_lea.hbm %s5, %s1757
          %s1759 = sshll.u32 %s1744, 4
          %s1760 = int_to_ptr.vmem [resolvable:$true] %s1759
          %s1761 = sshll.u32 %s1758, 4
          %s1762 = int_to_ptr.hbm [resolvable:$true] %s1761
          %1767 = dma.vmem_to_hbm [thread:$0]  %s1760, 1024, %s1762, %s1741, 128, 128, 8
        $region52: #{encoder_forward.3} parent=39 // pred_fallthru
          _
        // Predicated region
        $region53: #{encoder_forward.3} parent=39 // pred_check
          %p1768 = pneg %p206
        $region54: #{encoder_forward.3} parent=39 // pred_check_branch
          %1770 = sbr.rel (%p1768) target = $region56
        $region55: #{encoder_forward.3} parent=39 // pred_region
          _
        $region56: #{encoder_forward.3} parent=39 // pred_fallthru
          _
      $region40: #{encoder_forward.3} parent=5 // pred_fallthru
        _
      %p1771 = scmp.le.s32.totalorder 2, %s16
      // Predicated region
      $region57: #{encoder_forward.3} parent=5 // pred_check
        %p1772 = pneg %p1771
      $region58: #{encoder_forward.3} parent=5 // pred_check_branch
        %1774 = sbr.rel (%p1772) target = $region60
      $region59: #{encoder_forward.3} parent=5 // pred_region
        %s1775 = ssub.s32 %s16, 2
        // Predicated region
        $region61: #{encoder_forward.3} parent=59 // pred_check
          %p1776 = pneg %p186
        $region62: #{encoder_forward.3} parent=59 // pred_check_branch
          %1778 = sbr.rel (%p1776) target = $region64
        $region63: #{encoder_forward.3} parent=59 // pred_region
          %s1779 = sand.u32 %s171, 1
          %s1780 = scalar_lea.sflag [#allocation5], %s1779
          %s1781 = sand.u32 %s171, 1
          %s1782 = smul.addr %s1781, 64
          %s1783 = scalar_lea.vmem [#allocation4], %s1782
          %1785 = dma.done %s1780, 1024
        $region64: #{encoder_forward.3} parent=59 // pred_fallthru
          _
        // Predicated region
        $region65: #{encoder_forward.3} parent=59 // pred_check
          %p1786 = pneg %p212
        $region66: #{encoder_forward.3} parent=59 // pred_check_branch
          %1788 = sbr.rel (%p1786) target = $region68
        $region67: #{encoder_forward.3} parent=59 // pred_region
          %p1789 = scmp.lt.s32.totalorder %s27, 1
          %s1790 = scalar_select %p1789, %s27, 1
          %s1791 = smul.addr %s1790, 8
          %s1792 = scalar_lea.vmem %s6, %s1791
        $region68: #{encoder_forward.3} parent=59 // pred_fallthru
          _
      $region60: #{encoder_forward.3} parent=5 // pred_fallthru
        _
    $region6: #{encoder_forward.3} parent=1 // loop_footer
      %s20 = sadd.s32 1, %s16
    $region7: #{encoder_forward.3} parent=1 // loop_footer_branch
      %15 = sbr.rel target = $region3
    $region8: #{encoder_forward.3} parent=1 // loop_exit
      _
    %1793 = vsyncpa [#allocation5], 1
    %s1794 = scalar_lea.sflag [#allocation5], 1
    %1795 = vsyncpa %s1794, 1

// kernel: encoder_forward.2
$region0: #{encoder_forward.2}
  #allocation0 [shape = 'u32[]', space=smem, size = 0x4, offset = 0x4, fixed_abs, tag = 'smem constant byte address 0x4 - core index']
  #allocation1 [shape = 'u32[72,128]{1,0:T(1,128)}', space=vmem, size = 0x9000, scoped, tag = 'internal scratch']
  #allocation2 [shape = 'f32[8,128]{1,0:T(8,128)}', space=vmem, size = 0x1000, scoped, tag = 'scratch operand']
  #allocation3 [shape = 'f32[8,128]{1,0:T(8,128)}', space=vmem, size = 0x1000, scoped, tag = 'scratch operand']
  %s0 = inlined_call_operand.vmem [shape: f32[2,8,8,512], index: 0, kind: input, shape index: {}]
  %s1 = inlined_call_operand.hbm [shape: f32[2,128,512], index: 1, kind: input, shape index: {}]
  %s2 = inlined_call_operand.vmem [shape: f32[2,8,128], index: 2, kind: input, shape index: {}, may-alias: {2,3}]
  %s3 = inlined_call_operand.vmem [shape: f32[2,8,128], index: 3, kind: input, shape index: {}, may-alias: {2,3}]
  %s4 = inlined_call_operand.vmem [shape: s32[8,1], index: 4, kind: input, shape index: {}]
  %s5 = inlined_call_operand.vmem [shape: f32[2,8,8,128], index: 5, kind: output, shape index: {0}]
  %s6 = inlined_call_operand.vmem [shape: f32[2,8,128], index: 6, kind: output, shape index: {1}]
  %7 = xla_tuple %s5, %s6
  %s8 = sld [smem:[#allocation0]]
  $region73: #{encoder_forward.2} parent=0
    _
  %s10 = ssub.s32 1, %s8
  %s11 = scalar_select 0, %s10, %s8
  $region1: #{encoder_forward.2} parent=0
    #allocation4 [shape = 'u8[524288]{0}', space=vmem, size = 0x80000, scoped, tag = 'input window, operand 1']
    #allocation5 [shape = 's32[2]{0}', space=sflag, size = 0x8, scoped, tag = 'scoped memory for encoder_forward.2']
    %12 = vsyncpa [#allocation5], 0
    %s13 = scalar_lea.sflag [#allocation5], 1
    %14 = vsyncpa %s13, 0
    loop: start=0, step=1, limit=4
    $region2: #{encoder_forward.2} parent=1 // loop_pre_header
      _
    $region3: #{encoder_forward.2} parent=1 // loop_header
      %s16 = sphi 0, %s20
      %p17 = scmp.ge.s32.totalorder %s16, 4
      %s23 = sphi 0, %s35
      %s24 = sphi 0, %s31
      %s25 = sphi 0, %s23
      %s26 = sphi 0, %s24
      %s27 = sphi 0, %s25
      %s28 = sphi 0, %s26
      %s40 = sphi 0, %s42
      %s43 = sphi 0, %s40
      %s44 = sphi 0, %s43
      %s60 = sphi 0, %s44
      %s66 = sphi 0, %s68
      %s69 = sphi 0, %s66
      %s70 = sphi 0, %s69
      %s86 = sphi 0, %s70
      %s92 = sphi 0, %s94
      %s95 = sphi 0, %s92
      %s96 = sphi 0, %s95
      %s112 = sphi 0, %s96
      %s118 = sphi 0, %s120
      %s121 = sphi 0, %s118
      %s122 = sphi 0, %s121
      %s138 = sphi 0, %s122
      %s142 = sphi 0, %s142
      %s144 = sphi 0, %s142
      %s145 = sphi 0, %s144
      %s159 = sphi 0, %s145
      %s167 = sphi 0, %s169
      %s170 = sphi 0, %s167
      %s171 = sphi 0, %s170
      %s187 = sphi 0, %s171
      %s193 = sphi 0, %s195
      %s196 = sphi 0, %s193
      %s197 = sphi 0, %s196
      %s213 = sphi 0, %s197
    $region4: #{encoder_forward.2} parent=1 // loop_header_branch
      %19 = sbr.rel (%p17) target = $region8
    $region5: #{encoder_forward.2} parent=1 // loop_body
      %s21 = ssub.s32 %s16, 1
      %s22 = ssub.s32 %s16, 2
      %s29 = sadd.s32 1, %s24
      %p30 = scmp.ge.s32.totalorder %s29, 1
      %s31 = scalar_select %p30, 0, %s29
      %s32 = sadd.s32 1, %s23
      %s33 = scalar_select %p30, %s32, %s23
      %p34 = scmp.ge.s32.totalorder %s33, 2
      %s35 = scalar_select %p34, 0, %s33
      %s36 = ssub.s32 %s23, %s35
      %s37 = ssub.s32 %s24, %s31
      %s38 = sor.u32 %s36, %s37
      %p39 = scmp.eq.s32.totalorder %s38, 0
      %s41 = sadd.s32 %s40, 1
      %s42 = scalar_select %p39, %s40, %s41
      %p45 = pneg %p39
      %p46 = scmp.eq.s32.totalorder %s16, 1
      %p47 = por %p45, %p46
      %p48 = scmp.ne.s32.totalorder %s40, %s43
      %p49 = scmp.eq.s32.totalorder %s16, 0
      %p50 = por %p48, %p49
      %p51 = scmp.ne.s32.totalorder %s40, %s43
      %p52 = scmp.eq.s32.totalorder %s21, 1
      %p53 = por %p51, %p52
      %p54 = scmp.ne.s32.totalorder %s43, %s44
      %p55 = scmp.eq.s32.totalorder %s21, 0
      %p56 = por %p54, %p55
      %p57 = scmp.ne.s32.totalorder %s43, %s44
      %p58 = scmp.eq.s32.totalorder %s22, 1
      %p59 = por %p57, %p58
      %p61 = scmp.ne.s32.totalorder %s44, %s60
      %p62 = scmp.eq.s32.totalorder %s22, 0
      %p63 = por %p61, %p62
      %s64 = ssub.s32 %s23, %s35
      %p65 = scmp.eq.s32.totalorder %s64, 0
      %s67 = sadd.s32 %s66, 1
      %s68 = scalar_select %p65, %s66, %s67
      %p71 = pneg %p65
      %p72 = scmp.eq.s32.totalorder %s16, 1
      %p73 = por %p71, %p72
      %p74 = scmp.ne.s32.totalorder %s66, %s69
      %p75 = scmp.eq.s32.totalorder %s16, 0
      %p76 = por %p74, %p75
      %p77 = scmp.ne.s32.totalorder %s66, %s69
      %p78 = scmp.eq.s32.totalorder %s21, 1
      %p79 = por %p77, %p78
      %p80 = scmp.ne.s32.totalorder %s69, %s70
      %p81 = scmp.eq.s32.totalorder %s21, 0
      %p82 = por %p80, %p81
      %p83 = scmp.ne.s32.totalorder %s69, %s70
      %p84 = scmp.eq.s32.totalorder %s22, 1
      %p85 = por %p83, %p84
      %p87 = scmp.ne.s32.totalorder %s70, %s86
      %p88 = scmp.eq.s32.totalorder %s22, 0
      %p89 = por %p87, %p88
      %s90 = ssub.s32 %s23, %s35
      %p91 = scmp.eq.s32.totalorder %s90, 0
      %s93 = sadd.s32 %s92, 1
      %s94 = scalar_select %p91, %s92, %s93
      %p97 = pneg %p91
      %p98 = scmp.eq.s32.totalorder %s16, 1
      %p99 = por %p97, %p98
      %p100 = scmp.ne.s32.totalorder %s92, %s95
      %p101 = scmp.eq.s32.totalorder %s16, 0
      %p102 = por %p100, %p101
      %p103 = scmp.ne.s32.totalorder %s92, %s95
      %p104 = scmp.eq.s32.totalorder %s21, 1
      %p105 = por %p103, %p104
      %p106 = scmp.ne.s32.totalorder %s95, %s96
      %p107 = scmp.eq.s32.totalorder %s21, 0
      %p108 = por %p106, %p107
      %p109 = scmp.ne.s32.totalorder %s95, %s96
      %p110 = scmp.eq.s32.totalorder %s22, 1
      %p111 = por %p109, %p110
      %p113 = scmp.ne.s32.totalorder %s96, %s112
      %p114 = scmp.eq.s32.totalorder %s22, 0
      %p115 = por %p113, %p114
      %s116 = ssub.s32 %s23, %s35
      %p117 = scmp.eq.s32.totalorder %s116, 0
      %s119 = sadd.s32 %s118, 1
      %s120 = scalar_select %p117, %s118, %s119
      %p123 = pneg %p117
      %p124 = scmp.eq.s32.totalorder %s16, 1
      %p125 = por %p123, %p124
      %p126 = scmp.ne.s32.totalorder %s118, %s121
      %p127 = scmp.eq.s32.totalorder %s16, 0
      %p128 = por %p126, %p127
      %p129 = scmp.ne.s32.totalorder %s118, %s121
      %p130 = scmp.eq.s32.totalorder %s21, 1
      %p131 = por %p129, %p130
      %p132 = scmp.ne.s32.totalorder %s121, %s122
      %p133 = scmp.eq.s32.totalorder %s21, 0
      %p134 = por %p132, %p133
      %p135 = scmp.ne.s32.totalorder %s121, %s122
      %p136 = scmp.eq.s32.totalorder %s22, 1
      %p137 = por %p135, %p136
      %p139 = scmp.ne.s32.totalorder %s122, %s138
      %p140 = scmp.eq.s32.totalorder %s22, 0
      %p141 = por %p139, %p140
      %s143 = sadd.s32 %s142, 1
      %p146 = scmp.eq.s32.totalorder %s16, 1
      %p147 = scmp.ne.s32.totalorder %s142, %s144
      %p148 = scmp.eq.s32.totalorder %s16, 0
      %p149 = por %p147, %p148
      %p150 = scmp.ne.s32.totalorder %s142, %s144
      %p151 = scmp.eq.s32.totalorder %s21, 1
      %p152 = por %p150, %p151
      %p153 = scmp.ne.s32.totalorder %s144, %s145
      %p154 = scmp.eq.s32.totalorder %s21, 0
      %p155 = por %p153, %p154
      %p156 = scmp.ne.s32.totalorder %s144, %s145
      %p157 = scmp.eq.s32.totalorder %s22, 1
      %p158 = por %p156, %p157
      %p160 = scmp.ne.s32.totalorder %s145, %s159
      %p161 = scmp.eq.s32.totalorder %s22, 0
      %p162 = por %p160, %p161
      %s163 = ssub.s32 %s23, %s35
      %s164 = ssub.s32 %s24, %s31
      %s165 = sor.u32 %s163, %s164
      %p166 = scmp.eq.s32.totalorder %s165, 0
      %s168 = sadd.s32 %s167, 1
      %s169 = scalar_select %p166, %s167, %s168
      %p172 = pneg %p166
      %p173 = scmp.eq.s32.totalorder %s16, 1
      %p174 = por %p172, %p173
      %p175 = scmp.ne.s32.totalorder %s167, %s170
      %p176 = scmp.eq.s32.totalorder %s16, 0
      %p177 = por %p175, %p176
      %p178 = scmp.ne.s32.totalorder %s167, %s170
      %p179 = scmp.eq.s32.totalorder %s21, 1
      %p180 = por %p178, %p179
      %p181 = scmp.ne.s32.totalorder %s170, %s171
      %p182 = scmp.eq.s32.totalorder %s21, 0
      %p183 = por %p181, %p182
      %p184 = scmp.ne.s32.totalorder %s170, %s171
      %p185 = scmp.eq.s32.totalorder %s22, 1
      %p186 = por %p184, %p185
      %p188 = scmp.ne.s32.totalorder %s171, %s187
      %p189 = scmp.eq.s32.totalorder %s22, 0
      %p190 = por %p188, %p189
      %s191 = ssub.s32 %s23, %s35
      %p192 = scmp.eq.s32.totalorder %s191, 0
      %s194 = sadd.s32 %s193, 1
      %s195 = scalar_select %p192, %s193, %s194
      %p198 = pneg %p192
      %p199 = scmp.eq.s32.totalorder %s16, 1
      %p200 = por %p198, %p199
      %p201 = scmp.ne.s32.totalorder %s193, %s196
      %p202 = scmp.eq.s32.totalorder %s16, 0
      %p203 = por %p201, %p202
      %p204 = scmp.ne.s32.totalorder %s193, %s196
      %p205 = scmp.eq.s32.totalorder %s21, 1
      %p206 = por %p204, %p205
      %p207 = scmp.ne.s32.totalorder %s196, %s197
      %p208 = scmp.eq.s32.totalorder %s21, 0
      %p209 = por %p207, %p208
      %p210 = scmp.ne.s32.totalorder %s196, %s197
      %p211 = scmp.eq.s32.totalorder %s22, 1
      %p212 = por %p210, %p211
      %p214 = scmp.ne.s32.totalorder %s197, %s213
      %p215 = scmp.eq.s32.totalorder %s22, 0
      %p216 = por %p214, %p215
      %p217 = scmp.le.s32.totalorder 1, %s16
      %p218 = scmp.lt.s32.totalorder %s16, 3
      %p219 = pnand %p217, %p218
      %p220 = pneg %p219
      // Predicated region
      $region9: #{encoder_forward.2} parent=5 // pred_check
        _
      $region10: #{encoder_forward.2} parent=5 // pred_check_branch
        %222 = sbr.rel (%p219) target = $region12
      $region11: #{encoder_forward.2} parent=5 // pred_region
        %s223 = ssub.s32 %s16, 1
        // Predicated region
        $region13: #{encoder_forward.2} parent=11 // pred_check
          %p224 = pneg %p155
        $region14: #{encoder_forward.2} parent=11 // pred_check_branch
          %226 = sbr.rel (%p224) target = $region16
        $region15: #{encoder_forward.2} parent=11 // pred_region
          _
        $region16: #{encoder_forward.2} parent=11 // pred_fallthru
          _
      $region12: #{encoder_forward.2} parent=5 // pred_fallthru
        _
      %p227 = scmp.lt.s32.totalorder %s16, 2
      // Predicated region
      $region17: #{encoder_forward.2} parent=5 // pred_check
        %p228 = pneg %p227
      $region18: #{encoder_forward.2} parent=5 // pred_check_branch
        %230 = sbr.rel (%p228) target = $region20
      $region19: #{encoder_forward.2} parent=5 // pred_region
        // Predicated region
        $region21: #{encoder_forward.2} parent=19 // pred_check
          %p231 = pneg %p50
        $region22: #{encoder_forward.2} parent=19 // pred_check_branch
          %233 = sbr.rel (%p231) target = $region24
        $region23: #{encoder_forward.2} parent=19 // pred_region
          %s234 = smul.u32 8, %s24
          %p235 = scmp.lt.s32.totalorder %s23, 1
          %s236 = scalar_select %p235, %s23, 1
          %p237 = scmp.lt.s32.totalorder %s234, 7
          %s238 = scalar_select %p237, %s234, 7
          %s239 = smul.addr %s238, 4
          %s240 = smul.addr %s236, 32
          %s241 = sadd.s32 %s239, %s240
          %s242 = smul.addr %s241, 8
          %s243 = scalar_lea.vmem %s0, %s242
          %s244 = smul.u32 8, %s24
        $region24: #{encoder_forward.2} parent=19 // pred_fallthru
          _
        // Predicated region
        $region25: #{encoder_forward.2} parent=19 // pred_check
          %p245 = pneg %p76
        $region26: #{encoder_forward.2} parent=19 // pred_check_branch
          %247 = sbr.rel (%p245) target = $region28
        $region27: #{encoder_forward.2} parent=19 // pred_region
          %s248 = sand.u32 %s66, 1
          %s249 = scalar_lea.sflag [#allocation5], %s248
          %s250 = sand.u32 %s66, 1
          %s251 = smul.addr %s250, 512
          %s252 = scalar_lea.vmem [#allocation4], %s251
          %254 = vsyncadd %s249, 0
          %s255 = smul.addr %s23, 64
          %s256 = smul.addr %s255, 8
          %s257 = scalar_lea.hbm %s1, %s256
          %s258 = sshll.u32 %s257, 4
          %s259 = int_to_ptr.hbm [resolvable:$true] %s258
          %s260 = sshll.u32 %s252, 4
          %s261 = int_to_ptr.vmem [resolvable:$true] %s260
          %266 = dma.hbm_to_vmem [thread:$0]  %s259, 8192, %s261, %s249, 512, 512, 32
        $region28: #{encoder_forward.2} parent=19 // pred_fallthru
          _
        // Predicated region
        $region29: #{encoder_forward.2} parent=19 // pred_check
          %p267 = pneg %p102
        $region30: #{encoder_forward.2} parent=19 // pred_check_branch
          %269 = sbr.rel (%p267) target = $region32
        $region31: #{encoder_forward.2} parent=19 // pred_region
          %p270 = scmp.lt.s32.totalorder %s23, 1
          %s271 = scalar_select %p270, %s23, 1
          %s272 = smul.addr %s271, 8
          %s273 = scalar_lea.vmem %s2, %s272
        $region32: #{encoder_forward.2} parent=19 // pred_fallthru
          _
        // Predicated region
        $region33: #{encoder_forward.2} parent=19 // pred_check
          %p274 = pneg %p128
        $region34: #{encoder_forward.2} parent=19 // pred_check_branch
          %276 = sbr.rel (%p274) target = $region36
        $region35: #{encoder_forward.2} parent=19 // pred_region
          %p277 = scmp.lt.s32.totalorder %s23, 1
          %s278 = scalar_select %p277, %s23, 1
          %s279 = smul.addr %s278, 8
          %s280 = scalar_lea.vmem %s3, %s279
        $region36: #{encoder_forward.2} parent=19 // pred_fallthru
          _
      $region20: #{encoder_forward.2} parent=5 // pred_fallthru
        _
      %p281 = scmp.le.s32.totalorder 1, %s16
      %p282 = scmp.lt.s32.totalorder %s16, 3
      %p283 = pnand %p281, %p282
      %p284 = pneg %p283
      // Predicated region
      $region37: #{encoder_forward.2} parent=5 // pred_check
        _
      $region38: #{encoder_forward.2} parent=5 // pred_check_branch
        %286 = sbr.rel (%p283) target = $region40
      $region39: #{encoder_forward.2} parent=5 // pred_region
        %s287 = ssub.s32 %s16, 1
        %s288 = sand.u32 %s69, 1
        %s289 = scalar_lea.sflag [#allocation5], %s288
        %s290 = sand.u32 %s69, 1
        %s291 = smul.addr %s290, 512
        %s292 = scalar_lea.vmem [#allocation4], %s291
        // Predicated region
        $region41: #{encoder_forward.2} parent=39 // pred_check
          %p293 = pneg %p82
        $region42: #{encoder_forward.2} parent=39 // pred_check_branch
          %295 = sbr.rel (%p293) target = $region44
        $region43: #{encoder_forward.2} parent=39 // pred_region
          %297 = dma.done %s289, 8192
        $region44: #{encoder_forward.2} parent=39 // pred_fallthru
          _
        %s298 = smul.u32 8, %s26
        %p299 = scmp.lt.s32.totalorder %s25, 1
        %s300 = scalar_select %p299, %s25, 1
        %p301 = scmp.lt.s32.totalorder %s298, 7
        %s302 = scalar_select %p301, %s298, 7
        %s303 = smul.addr %s302, 4
        %s304 = smul.addr %s300, 32
        %s305 = sadd.s32 %s303, %s304
        %s306 = smul.addr %s305, 8
        %s307 = scalar_lea.vmem %s0, %s306
        %p308 = pneg %p56
        %p309 = pneg %p53
        %s310 = sand.u32 %s69, 1
        %s311 = scalar_lea.sflag [#allocation5], %s310
        %s312 = sand.u32 %s69, 1
        %s313 = smul.addr %s312, 512
        %s314 = scalar_lea.vmem [#allocation4], %s313
        %p315 = pneg %p82
        %p316 = pneg %p79
        %p317 = scmp.lt.s32.totalorder %s25, 1
        %s318 = scalar_select %p317, %s25, 1
        %s319 = smul.addr %s318, 8
        %s320 = scalar_lea.vmem %s2, %s319
        %p321 = pneg %p108
        %p322 = pneg %p105
        %p323 = scmp.lt.s32.totalorder %s25, 1
        %s324 = scalar_select %p323, %s25, 1
        %s325 = smul.addr %s324, 8
        %s326 = scalar_lea.vmem %s3, %s325
        %p327 = pneg %p134
        %p328 = pneg %p131
        %p329 = pneg %p155
        %p330 = pneg %p152
        %p331 = pneg %p183
        %p332 = pneg %p180
        %s333 = smul.u32 8, %s26
        %p334 = scmp.lt.s32.totalorder %s25, 1
        %s335 = scalar_select %p334, %s25, 1
        %p336 = scmp.lt.s32.totalorder %s333, 7
        %s337 = scalar_select %p336, %s333, 7
        %s338 = smul.addr %s335, 8
        %s339 = sadd.s32 %s337, %s338
        %s340 = smul.addr %s339, 8
        %s341 = scalar_lea.vmem %s5, %s340
        %p342 = pneg %p209
        %p343 = pneg %p206
        %p344 = scmp.lt.s32.totalorder %s25, 1
        %s345 = scalar_select %p344, %s25, 1
        %s346 = smul.addr %s345, 8
        %s347 = scalar_lea.vmem %s6, %s346
        %s348 = smul.u32 8, %s26
        %p349 = scmp.lt.s32.totalorder %s25, 1
        %s350 = scalar_select %p349, %s25, 1
        %p351 = scmp.lt.s32.totalorder %s348, 7
        %s352 = scalar_select %p351, %s348, 7
        %s353 = smul.addr %s352, 4
        %s354 = smul.addr %s350, 32
        %s355 = sadd.s32 %s353, %s354
        %s356 = smul.addr %s355, 8
        %s357 = scalar_lea.vmem %s0, %s356
        %s358 = smul.u32 8, %s26
        %p359 = scmp.lt.s32.totalorder %s25, 1
        %s360 = scalar_select %p359, %s25, 1
        %s361 = smul.addr %s360, 8
        %s362 = scalar_lea.vmem %s2, %s361
        %p363 = scmp.lt.s32.totalorder %s25, 1
        %s364 = scalar_select %p363, %s25, 1
        %s365 = smul.addr %s364, 8
        %s366 = scalar_lea.vmem %s3, %s365
        %s367 = smul.u32 8, %s26
        %p368 = scmp.lt.s32.totalorder %s25, 1
        %s369 = scalar_select %p368, %s25, 1
        %p370 = scmp.lt.s32.totalorder %s367, 7
        %s371 = scalar_select %p370, %s367, 7
        %s372 = smul.addr %s369, 8
        %s373 = sadd.s32 %s371, %s372
        %s374 = smul.addr %s373, 8
        %s375 = scalar_lea.vmem %s5, %s374
        %s376 = smul.u32 8, %s26
        %p377 = scmp.lt.s32.totalorder %s25, 1
        %s378 = scalar_select %p377, %s25, 1
        %s379 = smul.addr %s378, 8
        %s380 = scalar_lea.vmem %s6, %s379
        %p381 = scmp.eq.s32.totalorder %s26, 0
        // Predicated region
        $region45: #{encoder_forward.2} parent=39 // pred_check
          %p382 = pneg %p381
        $region46: #{encoder_forward.2} parent=39 // pred_check_branch
          %384 = sbr.rel (%p382) target = $region48
        $region47: #{encoder_forward.2} parent=39 // pred_region
          %v385 = vld [vmem:[%s362] sm:$0xff]
          %386 = vst [vmem:[#allocation2] sm:$0xff] %v385
          %v387 = vld [vmem:[%s366] sm:$0xff]
          %388 = vst [vmem:[#allocation3] sm:$0xff] %v387
        $region48: #{encoder_forward.2} parent=39 // pred_fallthru
          _
        %v389 = vld [vmem:[%s4] sm:$0xff]
        %v390 = vld [vmem:[%s292] sm:$0xff]
        %v391 = vld [vmem:[%s292 + $0x8] sm:$0xff]
        %v392 = vld [vmem:[%s292 + $0x10] sm:$0xff]
        %v393 = vld [vmem:[%s292 + $0x18] sm:$0xff]
        %v394 = vld [vmem:[%s292 + $0x20] sm:$0xff]
        %v395 = vld [vmem:[%s292 + $0x28] sm:$0xff]
        %v396 = vld [vmem:[%s292 + $0x30] sm:$0xff]
        %v397 = vld [vmem:[%s292 + $0x38] sm:$0xff]
        %v398 = vld [vmem:[%s292 + $0x40] sm:$0xff]
        %v399 = vld [vmem:[%s292 + $0x48] sm:$0xff]
        %v400 = vld [vmem:[%s292 + $0x50] sm:$0xff]
        %v401 = vld [vmem:[%s292 + $0x58] sm:$0xff]
        %v402 = vld [vmem:[%s292 + $0x60] sm:$0xff]
        %v403 = vld [vmem:[%s292 + $0x68] sm:$0xff]
        %v404 = vld [vmem:[%s292 + $0x70] sm:$0xff]
        %v405 = vld [vmem:[%s292 + $0x78] sm:$0xff]
        %v406 = vld [vmem:[%s292 + $0x80] sm:$0xff]
        %v407 = vld [vmem:[%s292 + $0x88] sm:$0xff]
        %v408 = vld [vmem:[%s292 + $0x90] sm:$0xff]
        %v409 = vld [vmem:[%s292 + $0x98] sm:$0xff]
        %v410 = vld [vmem:[%s292 + $0xa0] sm:$0xff]
        %v411 = vld [vmem:[%s292 + $0xa8] sm:$0xff]
        %v412 = vld [vmem:[%s292 + $0xb0] sm:$0xff]
        %v413 = vld [vmem:[%s292 + $0xb8] sm:$0xff]
        %v414 = vld [vmem:[%s292 + $0xc0] sm:$0xff]
        %v415 = vld [vmem:[%s292 + $0xc8] sm:$0xff]
        %v416 = vld [vmem:[%s292 + $0xd0] sm:$0xff]
        %v417 = vld [vmem:[%s292 + $0xd8] sm:$0xff]
        %v418 = vld [vmem:[%s292 + $0xe0] sm:$0xff]
        %v419 = vld [vmem:[%s292 + $0xe8] sm:$0xff]
        %v420 = vld [vmem:[%s292 + $0xf0] sm:$0xff]
        %v421 = vld [vmem:[%s292 + $0xf8] sm:$0xff]
        %v422 = vld [vmem:[%s292 + $0x100] sm:$0xff]
        %v423 = vld [vmem:[%s292 + $0x108] sm:$0xff]
        %v424 = vld [vmem:[%s292 + $0x110] sm:$0xff]
        %v425 = vld [vmem:[%s292 + $0x118] sm:$0xff]
        %v426 = vld [vmem:[%s292 + $0x120] sm:$0xff]
        %v427 = vld [vmem:[%s292 + $0x128] sm:$0xff]
        %v428 = vld [vmem:[%s292 + $0x130] sm:$0xff]
        %v429 = vld [vmem:[%s292 + $0x138] sm:$0xff]
        %v430 = vld [vmem:[%s292 + $0x140] sm:$0xff]
        %v431 = vld [vmem:[%s292 + $0x148] sm:$0xff]
        %v432 = vld [vmem:[%s292 + $0x150] sm:$0xff]
        %v433 = vld [vmem:[%s292 + $0x158] sm:$0xff]
        %v434 = vld [vmem:[%s292 + $0x160] sm:$0xff]
        %v435 = vld [vmem:[%s292 + $0x168] sm:$0xff]
        %v436 = vld [vmem:[%s292 + $0x170] sm:$0xff]
        %v437 = vld [vmem:[%s292 + $0x178] sm:$0xff]
        %v438 = vld [vmem:[%s292 + $0x180] sm:$0xff]
        %v439 = vld [vmem:[%s292 + $0x188] sm:$0xff]
        %v440 = vld [vmem:[%s292 + $0x190] sm:$0xff]
        %v441 = vld [vmem:[%s292 + $0x198] sm:$0xff]
        %v442 = vld [vmem:[%s292 + $0x1a0] sm:$0xff]
        %v443 = vld [vmem:[%s292 + $0x1a8] sm:$0xff]
        %v444 = vld [vmem:[%s292 + $0x1b0] sm:$0xff]
        %v445 = vld [vmem:[%s292 + $0x1b8] sm:$0xff]
        %v446 = vld [vmem:[%s292 + $0x1c0] sm:$0xff]
        %v447 = vld [vmem:[%s292 + $0x1c8] sm:$0xff]
        %v448 = vld [vmem:[%s292 + $0x1d0] sm:$0xff]
        %v449 = vld [vmem:[%s292 + $0x1d8] sm:$0xff]
        %v450 = vld [vmem:[%s292 + $0x1e0] sm:$0xff]
        %v451 = vld [vmem:[%s292 + $0x1e8] sm:$0xff]
        %v452 = vld [vmem:[%s292 + $0x1f0] sm:$0xff]
        %v453 = vld [vmem:[%s292 + $0x1f8] sm:$0xff]
        %s454 = smul.u32 %s26, 8
        %v455 = vld [vmem:[#allocation2] sm:$0xff]
        %v456 = vld [vmem:[#allocation3] sm:$0xff]
        %v457 = vld [vmem:[%s357] sm:$0xff]
        %v458 = vld [vmem:[%s357 + $0x8] sm:$0xff]
        %v459 = vld [vmem:[%s357 + $0x10] sm:$0xff]
        %v460 = vld [vmem:[%s357 + $0x18] sm:$0xff]
        %461 = vmatpush.msra.mxu0 %v450
        %462 = vmatpush.msra.mxu0 %v446
        %463 = vmatpush.msra.mxu0 %v442
        %464 = vmatpush.msra.mxu0 %v438
        %465 = vmatpush.msra.mxu0 %v434
        %466 = vmatpush.msra.mxu0 %v430
        %467 = vmatpush.msra.mxu0 %v426
        %468 = vmatpush.msra.mxu0 %v422
        %469 = vmatpush.msra.mxu0 %v418
        %470 = vmatpush.msra.mxu0 %v414
        %471 = vmatpush.msra.mxu0 %v410
        %472 = vmatpush.msra.mxu0 %v406
        %473 = vmatpush.msra.mxu0 %v402
        %474 = vmatpush.msra.mxu0 %v398
        %475 = vmatpush.msra.mxu0 %v394
        %476 = vmatpush.msra.mxu0 %v390
        %477 = vmatmul.f32.gmra.mxu0 %v455
        %v478 = vpop.f32.mrf.mxu0
        %v479 = vadd.f32 0.0, %v478
        %480 = vdwg.mxu0
        %481 = vmatpush.msra.mxu0 %v451
        %482 = vmatpush.msra.mxu0 %v447
        %483 = vmatpush.msra.mxu0 %v443
        %484 = vmatpush.msra.mxu0 %v439
        %485 = vmatpush.msra.mxu0 %v435
        %486 = vmatpush.msra.mxu0 %v431
        %487 = vmatpush.msra.mxu0 %v427
        %488 = vmatpush.msra.mxu0 %v423
        %489 = vmatpush.msra.mxu0 %v419
        %490 = vmatpush.msra.mxu0 %v415
        %491 = vmatpush.msra.mxu0 %v411
        %492 = vmatpush.msra.mxu0 %v407
        %493 = vmatpush.msra.mxu0 %v403
        %494 = vmatpush.msra.mxu0 %v399
        %495 = vmatpush.msra.mxu0 %v395
        %496 = vmatpush.msra.mxu0 %v391
        %497 = vmatmul.f32.gmra.mxu0 %v455
        %v498 = vpop.f32.mrf.mxu0
        %v499 = vadd.f32 0.0, %v498
        %500 = vdwg.mxu0
        %501 = vmatpush.msra.mxu0 %v452
        %502 = vmatpush.msra.mxu0 %v448
        %503 = vmatpush.msra.mxu0 %v444
        %504 = vmatpush.msra.mxu0 %v440
        %505 = vmatpush.msra.mxu0 %v436
        %506 = vmatpush.msra.mxu0 %v432
        %507 = vmatpush.msra.mxu0 %v428
        %508 = vmatpush.msra.mxu0 %v424
        %509 = vmatpush.msra.mxu0 %v420
        %510 = vmatpush.msra.mxu0 %v416
        %511 = vmatpush.msra.mxu0 %v412
        %512 = vmatpush.msra.mxu0 %v408
        %513 = vmatpush.msra.mxu0 %v404
        %514 = vmatpush.msra.mxu0 %v400
        %515 = vmatpush.msra.mxu0 %v396
        %516 = vmatpush.msra.mxu0 %v392
        %517 = vmatmul.f32.gmra.mxu0 %v455
        %v518 = vpop.f32.mrf.mxu0
        %v519 = vadd.f32 0.0, %v518
        %520 = vdwg.mxu0
        %521 = vmatpush.msra.mxu0 %v453
        %522 = vmatpush.msra.mxu0 %v449
        %523 = vmatpush.msra.mxu0 %v445
        %524 = vmatpush.msra.mxu0 %v441
        %525 = vmatpush.msra.mxu0 %v437
        %526 = vmatpush.msra.mxu0 %v433
        %527 = vmatpush.msra.mxu0 %v429
        %528 = vmatpush.msra.mxu0 %v425
        %529 = vmatpush.msra.mxu0 %v421
        %530 = vmatpush.msra.mxu0 %v417
        %531 = vmatpush.msra.mxu0 %v413
        %532 = vmatpush.msra.mxu0 %v409
        %533 = vmatpush.msra.mxu0 %v405
        %534 = vmatpush.msra.mxu0 %v401
        %535 = vmatpush.msra.mxu0 %v397
        %536 = vmatpush.msra.mxu0 %v393
        %537 = vmatmul.f32.gmra.mxu0 %v455
        %v538 = vpop.f32.mrf.mxu0
        %v539 = vadd.f32 0.0, %v538
        %540 = vdwg.mxu0
        %v541 = vadd.f32 %v457, %v479
        %v542 = vadd.f32 %v458, %v499
        %v543 = vadd.f32 %v459, %v519
        %v544 = vadd.f32 %v460, %v539
        %v545 = vxor.u32 %v541, 2147483648
        %v546 = vmul.f32 %v545, 1.442695
        %v547 = vpow.pop %v546
        %v548 = vadd.f32 %v547, 1.0
        %v549 = vrcp.pop %v548
        %v550 = vmul.f32 %v548, %v549
        %v551 = vsub.f32 1.0, %v550
        %v552 = vmul.f32 %v549, %v551
        %v553 = vadd.f32 %v549, %v552
        %vm554 = vweird.f32 %v548
        %vm555 = vweird.f32 %v549
        %vm556 = vmor %vm554, %vm555
        %v557 = vsel %vm556, %v549, %v553
        %v558 = vand.u32 2147483647, %v548
        %vm559 = vcmp.eq.f32.partialorder %v558, 8.507059e+37
        %v560 = vand.u32 %v548, 2147483648
        %v561 = vor.u32 1.1754944e-38, %v560
        %v562 = vsel %vm559, %v561, %v557
        %v563 = vmul.f32 1.0, %v562
        %v564 = vxor.u32 %v542, 2147483648
        %v565 = vmul.f32 %v564, 1.442695
        %v566 = vpow.pop %v565
        %v567 = vadd.f32 %v566, 1.0
        %v568 = vrcp.pop %v567
        %v569 = vmul.f32 %v567, %v568
        %v570 = vsub.f32 1.0, %v569
        %v571 = vmul.f32 %v568, %v570
        %v572 = vadd.f32 %v568, %v571
        %vm573 = vweird.f32 %v567
        %vm574 = vweird.f32 %v568
        %vm575 = vmor %vm573, %vm574
        %v576 = vsel %vm575, %v568, %v572
        %v577 = vand.u32 2147483647, %v567
        %vm578 = vcmp.eq.f32.partialorder %v577, 8.507059e+37
        %v579 = vand.u32 %v567, 2147483648
        %v580 = vor.u32 1.1754944e-38, %v579
        %v581 = vsel %vm578, %v580, %v576
        %v582 = vmul.f32 1.0, %v581
        %v583 = vtanh.pop %v543
        %v584 = vxor.u32 %v544, 2147483648
        %v585 = vmul.f32 %v584, 1.442695
        %v586 = vpow.pop %v585
        %v587 = vadd.f32 %v586, 1.0
        %v588 = vrcp.pop %v587
        %v589 = vmul.f32 %v587, %v588
        %v590 = vsub.f32 1.0, %v589
        %v591 = vmul.f32 %v588, %v590
        %v592 = vadd.f32 %v588, %v591
        %vm593 = vweird.f32 %v587
        %vm594 = vweird.f32 %v588
        %vm595 = vmor %vm593, %vm594
        %v596 = vsel %vm595, %v588, %v592
        %v597 = vand.u32 2147483647, %v587
        %vm598 = vcmp.eq.f32.partialorder %v597, 8.507059e+37
        %v599 = vand.u32 %v587, 2147483648
        %v600 = vor.u32 1.1754944e-38, %v599
        %v601 = vsel %vm598, %v600, %v596
        %v602 = vmul.f32 1.0, %v601
        %v603 = vmul.f32 %v582, %v456
        %v604 = vmul.f32 %v563, %v583
        %v605 = vadd.f32 %v603, %v604
        %v606 = vtanh.pop %v605
        %v607 = vmul.f32 %v602, %v606
        %v608 = vstv %s454
        %vm609 = vcmp.lt.s32.totalorder %v608, %v389
        %v610 = vsel %vm609, 1, 0
        %611 = vset.pattern.permute.xlu0 0
        %612 = vperm.xlu0 %611, %v610
        %v613 = vpop.permute.xlu0 %612
        %vm614 = vcmp.eq.s32.totalorder %v613, 1
        %v615 = vsel %vm614, %v607, %v455
        %v616 = vsel %vm614, %v605, %v456
        %617 = vst [vmem:[%s375] sm:$0xff] %v615
        %s618 = scalar_lea.vmem %s357, 32
        %v619 = vld [vmem:[%s618] sm:$0xff]
        %v620 = vld [vmem:[%s618 + $0x8] sm:$0xff]
        %v621 = vld [vmem:[%s618 + $0x10] sm:$0xff]
        %v622 = vld [vmem:[%s618 + $0x18] sm:$0xff]
        %623 = vmatpush.msra.mxu0 %v450
        %624 = vmatpush.msra.mxu0 %v446
        %625 = vmatpush.msra.mxu0 %v442
        %626 = vmatpush.msra.mxu0 %v438
        %627 = vmatpush.msra.mxu0 %v434
        %628 = vmatpush.msra.mxu0 %v430
        %629 = vmatpush.msra.mxu0 %v426
        %630 = vmatpush.msra.mxu0 %v422
        %631 = vmatpush.msra.mxu0 %v418
        %632 = vmatpush.msra.mxu0 %v414
        %633 = vmatpush.msra.mxu0 %v410
        %634 = vmatpush.msra.mxu0 %v406
        %635 = vmatpush.msra.mxu0 %v402
        %636 = vmatpush.msra.mxu0 %v398
        %637 = vmatpush.msra.mxu0 %v394
        %638 = vmatpush.msra.mxu0 %v390
        %639 = vmatmul.f32.gmra.mxu0 %v615
        %v640 = vpop.f32.mrf.mxu0
        %v641 = vadd.f32 0.0, %v640
        %642 = vdwg.mxu0
        %643 = vmatpush.msra.mxu0 %v451
        %644 = vmatpush.msra.mxu0 %v447
        %645 = vmatpush.msra.mxu0 %v443
        %646 = vmatpush.msra.mxu0 %v439
        %647 = vmatpush.msra.mxu0 %v435
        %648 = vmatpush.msra.mxu0 %v431
        %649 = vmatpush.msra.mxu0 %v427
        %650 = vmatpush.msra.mxu0 %v423
        %651 = vmatpush.msra.mxu0 %v419
        %652 = vmatpush.msra.mxu0 %v415
        %653 = vmatpush.msra.mxu0 %v411
        %654 = vmatpush.msra.mxu0 %v407
        %655 = vmatpush.msra.mxu0 %v403
        %656 = vmatpush.msra.mxu0 %v399
        %657 = vmatpush.msra.mxu0 %v395
        %658 = vmatpush.msra.mxu0 %v391
        %659 = vmatmul.f32.gmra.mxu0 %v615
        %v660 = vpop.f32.mrf.mxu0
        %v661 = vadd.f32 0.0, %v660
        %662 = vdwg.mxu0
        %663 = vmatpush.msra.mxu0 %v452
        %664 = vmatpush.msra.mxu0 %v448
        %665 = vmatpush.msra.mxu0 %v444
        %666 = vmatpush.msra.mxu0 %v440
        %667 = vmatpush.msra.mxu0 %v436
        %668 = vmatpush.msra.mxu0 %v432
        %669 = vmatpush.msra.mxu0 %v428
        %670 = vmatpush.msra.mxu0 %v424
        %671 = vmatpush.msra.mxu0 %v420
        %672 = vmatpush.msra.mxu0 %v416
        %673 = vmatpush.msra.mxu0 %v412
        %674 = vmatpush.msra.mxu0 %v408
        %675 = vmatpush.msra.mxu0 %v404
        %676 = vmatpush.msra.mxu0 %v400
        %677 = vmatpush.msra.mxu0 %v396
        %678 = vmatpush.msra.mxu0 %v392
        %679 = vmatmul.f32.gmra.mxu0 %v615
        %v680 = vpop.f32.mrf.mxu0
        %v681 = vadd.f32 0.0, %v680
        %682 = vdwg.mxu0
        %683 = vmatpush.msra.mxu0 %v453
        %684 = vmatpush.msra.mxu0 %v449
        %685 = vmatpush.msra.mxu0 %v445
        %686 = vmatpush.msra.mxu0 %v441
        %687 = vmatpush.msra.mxu0 %v437
        %688 = vmatpush.msra.mxu0 %v433
        %689 = vmatpush.msra.mxu0 %v429
        %690 = vmatpush.msra.mxu0 %v425
        %691 = vmatpush.msra.mxu0 %v421
        %692 = vmatpush.msra.mxu0 %v417
        %693 = vmatpush.msra.mxu0 %v413
        %694 = vmatpush.msra.mxu0 %v409
        %695 = vmatpush.msra.mxu0 %v405
        %696 = vmatpush.msra.mxu0 %v401
        %697 = vmatpush.msra.mxu0 %v397
        %698 = vmatpush.msra.mxu0 %v393
        %699 = vmatmul.f32.gmra.mxu0 %v615
        %v700 = vpop.f32.mrf.mxu0
        %v701 = vadd.f32 0.0, %v700
        %702 = vdwg.mxu0
        %v703 = vadd.f32 %v619, %v641
        %v704 = vadd.f32 %v620, %v661
        %v705 = vadd.f32 %v621, %v681
        %v706 = vadd.f32 %v622, %v701
        %v707 = vxor.u32 %v703, 2147483648
        %v708 = vmul.f32 %v707, 1.442695
        %v709 = vpow.pop %v708
        %v710 = vadd.f32 %v709, 1.0
        %v711 = vrcp.pop %v710
        %v712 = vmul.f32 %v710, %v711
        %v713 = vsub.f32 1.0, %v712
        %v714 = vmul.f32 %v711, %v713
        %v715 = vadd.f32 %v711, %v714
        %vm716 = vweird.f32 %v710
        %vm717 = vweird.f32 %v711
        %vm718 = vmor %vm716, %vm717
        %v719 = vsel %vm718, %v711, %v715
        %v720 = vand.u32 2147483647, %v710
        %vm721 = vcmp.eq.f32.partialorder %v720, 8.507059e+37
        %v722 = vand.u32 %v710, 2147483648
        %v723 = vor.u32 1.1754944e-38, %v722
        %v724 = vsel %vm721, %v723, %v719
        %v725 = vmul.f32 1.0, %v724
        %v726 = vxor.u32 %v704, 2147483648
        %v727 = vmul.f32 %v726, 1.442695
        %v728 = vpow.pop %v727
        %v729 = vadd.f32 %v728, 1.0
        %v730 = vrcp.pop %v729
        %v731 = vmul.f32 %v729, %v730
        %v732 = vsub.f32 1.0, %v731
        %v733 = vmul.f32 %v730, %v732
        %v734 = vadd.f32 %v730, %v733
        %vm735 = vweird.f32 %v729
        %vm736 = vweird.f32 %v730
        %vm737 = vmor %vm735, %vm736
        %v738 = vsel %vm737, %v730, %v734
        %v739 = vand.u32 2147483647, %v729
        %vm740 = vcmp.eq.f32.partialorder %v739, 8.507059e+37
        %v741 = vand.u32 %v729, 2147483648
        %v742 = vor.u32 1.1754944e-38, %v741
        %v743 = vsel %vm740, %v742, %v738
        %v744 = vmul.f32 1.0, %v743
        %v745 = vtanh.pop %v705
        %v746 = vxor.u32 %v706, 2147483648
        %v747 = vmul.f32 %v746, 1.442695
        %v748 = vpow.pop %v747
        %v749 = vadd.f32 %v748, 1.0
        %v750 = vrcp.pop %v749
        %v751 = vmul.f32 %v749, %v750
        %v752 = vsub.f32 1.0, %v751
        %v753 = vmul.f32 %v750, %v752
        %v754 = vadd.f32 %v750, %v753
        %vm755 = vweird.f32 %v749
        %vm756 = vweird.f32 %v750
        %vm757 = vmor %vm755, %vm756
        %v758 = vsel %vm757, %v750, %v754
        %v759 = vand.u32 2147483647, %v749
        %vm760 = vcmp.eq.f32.partialorder %v759, 8.507059e+37
        %v761 = vand.u32 %v749, 2147483648
        %v762 = vor.u32 1.1754944e-38, %v761
        %v763 = vsel %vm760, %v762, %v758
        %v764 = vmul.f32 1.0, %v763
        %v765 = vmul.f32 %v744, %v616
        %v766 = vmul.f32 %v725, %v745
        %v767 = vadd.f32 %v765, %v766
        %v768 = vtanh.pop %v767
        %v769 = vmul.f32 %v764, %v768
        %s770 = sadd.s32 %s454, 1
        %v771 = vstv %s770
        %vm772 = vcmp.lt.s32.totalorder %v771, %v389
        %v773 = vsel %vm772, 1, 0
        %774 = vset.pattern.permute.xlu0 0
        %775 = vperm.xlu0 %774, %v773
        %v776 = vpop.permute.xlu0 %775
        %vm777 = vcmp.eq.s32.totalorder %v776, 1
        %v778 = vsel %vm777, %v769, %v615
        %v779 = vsel %vm777, %v767, %v616
        %s780 = scalar_lea.vmem %s375, 8
        %781 = vst [vmem:[%s780] sm:$0xff] %v778
        %s782 = scalar_lea.vmem %s357, 64
        %v783 = vld [vmem:[%s782] sm:$0xff]
        %v784 = vld [vmem:[%s782 + $0x8] sm:$0xff]
        %v785 = vld [vmem:[%s782 + $0x10] sm:$0xff]
        %v786 = vld [vmem:[%s782 + $0x18] sm:$0xff]
        %787 = vmatpush.msra.mxu0 %v450
        %788 = vmatpush.msra.mxu0 %v446
        %789 = vmatpush.msra.mxu0 %v442
        %790 = vmatpush.msra.mxu0 %v438
        %791 = vmatpush.msra.mxu0 %v434
        %792 = vmatpush.msra.mxu0 %v430
        %793 = vmatpush.msra.mxu0 %v426
        %794 = vmatpush.msra.mxu0 %v422
        %795 = vmatpush.msra.mxu0 %v418
        %796 = vmatpush.msra.mxu0 %v414
        %797 = vmatpush.msra.mxu0 %v410
        %798 = vmatpush.msra.mxu0 %v406
        %799 = vmatpush.msra.mxu0 %v402
        %800 = vmatpush.msra.mxu0 %v398
        %801 = vmatpush.msra.mxu0 %v394
        %802 = vmatpush.msra.mxu0 %v390
        %803 = vmatmul.f32.gmra.mxu0 %v778
        %v804 = vpop.f32.mrf.mxu0
        %v805 = vadd.f32 0.0, %v804
        %806 = vdwg.mxu0
        %807 = vmatpush.msra.mxu0 %v451
        %808 = vmatpush.msra.mxu0 %v447
        %809 = vmatpush.msra.mxu0 %v443
        %810 = vmatpush.msra.mxu0 %v439
        %811 = vmatpush.msra.mxu0 %v435
        %812 = vmatpush.msra.mxu0 %v431
        %813 = vmatpush.msra.mxu0 %v427
        %814 = vmatpush.msra.mxu0 %v423
        %815 = vmatpush.msra.mxu0 %v419
        %816 = vmatpush.msra.mxu0 %v415
        %817 = vmatpush.msra.mxu0 %v411
        %818 = vmatpush.msra.mxu0 %v407
        %819 = vmatpush.msra.mxu0 %v403
        %820 = vmatpush.msra.mxu0 %v399
        %821 = vmatpush.msra.mxu0 %v395
        %822 = vmatpush.msra.mxu0 %v391
        %823 = vmatmul.f32.gmra.mxu0 %v778
        %v824 = vpop.f32.mrf.mxu0
        %v825 = vadd.f32 0.0, %v824
        %826 = vdwg.mxu0
        %827 = vmatpush.msra.mxu0 %v452
        %828 = vmatpush.msra.mxu0 %v448
        %829 = vmatpush.msra.mxu0 %v444
        %830 = vmatpush.msra.mxu0 %v440
        %831 = vmatpush.msra.mxu0 %v436
        %832 = vmatpush.msra.mxu0 %v432
        %833 = vmatpush.msra.mxu0 %v428
        %834 = vmatpush.msra.mxu0 %v424
        %835 = vmatpush.msra.mxu0 %v420
        %836 = vmatpush.msra.mxu0 %v416
        %837 = vmatpush.msra.mxu0 %v412
        %838 = vmatpush.msra.mxu0 %v408
        %839 = vmatpush.msra.mxu0 %v404
        %840 = vmatpush.msra.mxu0 %v400
        %841 = vmatpush.msra.mxu0 %v396
        %842 = vmatpush.msra.mxu0 %v392
        %843 = vmatmul.f32.gmra.mxu0 %v778
        %v844 = vpop.f32.mrf.mxu0
        %v845 = vadd.f32 0.0, %v844
        %846 = vdwg.mxu0
        %847 = vmatpush.msra.mxu0 %v453
        %848 = vmatpush.msra.mxu0 %v449
        %849 = vmatpush.msra.mxu0 %v445
        %850 = vmatpush.msra.mxu0 %v441
        %851 = vmatpush.msra.mxu0 %v437
        %852 = vmatpush.msra.mxu0 %v433
        %853 = vmatpush.msra.mxu0 %v429
        %854 = vmatpush.msra.mxu0 %v425
        %855 = vmatpush.msra.mxu0 %v421
        %856 = vmatpush.msra.mxu0 %v417
        %857 = vmatpush.msra.mxu0 %v413
        %858 = vmatpush.msra.mxu0 %v409
        %859 = vmatpush.msra.mxu0 %v405
        %860 = vmatpush.msra.mxu0 %v401
        %861 = vmatpush.msra.mxu0 %v397
        %862 = vmatpush.msra.mxu0 %v393
        %863 = vmatmul.f32.gmra.mxu0 %v778
        %v864 = vpop.f32.mrf.mxu0
        %v865 = vadd.f32 0.0, %v864
        %866 = vdwg.mxu0
        %v867 = vadd.f32 %v783, %v805
        %v868 = vadd.f32 %v784, %v825
        %v869 = vadd.f32 %v785, %v845
        %v870 = vadd.f32 %v786, %v865
        %v871 = vxor.u32 %v867, 2147483648
        %v872 = vmul.f32 %v871, 1.442695
        %v873 = vpow.pop %v872
        %v874 = vadd.f32 %v873, 1.0
        %v875 = vrcp.pop %v874
        %v876 = vmul.f32 %v874, %v875
        %v877 = vsub.f32 1.0, %v876
        %v878 = vmul.f32 %v875, %v877
        %v879 = vadd.f32 %v875, %v878
        %vm880 = vweird.f32 %v874
        %vm881 = vweird.f32 %v875
        %vm882 = vmor %vm880, %vm881
        %v883 = vsel %vm882, %v875, %v879
        %v884 = vand.u32 2147483647, %v874
        %vm885 = vcmp.eq.f32.partialorder %v884, 8.507059e+37
        %v886 = vand.u32 %v874, 2147483648
        %v887 = vor.u32 1.1754944e-38, %v886
        %v888 = vsel %vm885, %v887, %v883
        %v889 = vmul.f32 1.0, %v888
        %v890 = vxor.u32 %v868, 2147483648
        %v891 = vmul.f32 %v890, 1.442695
        %v892 = vpow.pop %v891
        %v893 = vadd.f32 %v892, 1.0
        %v894 = vrcp.pop %v893
        %v895 = vmul.f32 %v893, %v894
        %v896 = vsub.f32 1.0, %v895
        %v897 = vmul.f32 %v894, %v896
        %v898 = vadd.f32 %v894, %v897
        %vm899 = vweird.f32 %v893
        %vm900 = vweird.f32 %v894
        %vm901 = vmor %vm899, %vm900
        %v902 = vsel %vm901, %v894, %v898
        %v903 = vand.u32 2147483647, %v893
        %vm904 = vcmp.eq.f32.partialorder %v903, 8.507059e+37
        %v905 = vand.u32 %v893, 2147483648
        %v906 = vor.u32 1.1754944e-38, %v905
        %v907 = vsel %vm904, %v906, %v902
        %v908 = vmul.f32 1.0, %v907
        %v909 = vtanh.pop %v869
        %v910 = vxor.u32 %v870, 2147483648
        %v911 = vmul.f32 %v910, 1.442695
        %v912 = vpow.pop %v911
        %v913 = vadd.f32 %v912, 1.0
        %v914 = vrcp.pop %v913
        %v915 = vmul.f32 %v913, %v914
        %v916 = vsub.f32 1.0, %v915
        %v917 = vmul.f32 %v914, %v916
        %v918 = vadd.f32 %v914, %v917
        %vm919 = vweird.f32 %v913
        %vm920 = vweird.f32 %v914
        %vm921 = vmor %vm919, %vm920
        %v922 = vsel %vm921, %v914, %v918
        %v923 = vand.u32 2147483647, %v913
        %vm924 = vcmp.eq.f32.partialorder %v923, 8.507059e+37
        %v925 = vand.u32 %v913, 2147483648
        %v926 = vor.u32 1.1754944e-38, %v925
        %v927 = vsel %vm924, %v926, %v922
        %v928 = vmul.f32 1.0, %v927
        %v929 = vmul.f32 %v908, %v779
        %v930 = vmul.f32 %v889, %v909
        %v931 = vadd.f32 %v929, %v930
        %v932 = vtanh.pop %v931
        %v933 = vmul.f32 %v928, %v932
        %s934 = sadd.s32 %s454, 2
        %v935 = vstv %s934
        %vm936 = vcmp.lt.s32.totalorder %v935, %v389
        %v937 = vsel %vm936, 1, 0
        %938 = vset.pattern.permute.xlu0 0
        %939 = vperm.xlu0 %938, %v937
        %v940 = vpop.permute.xlu0 %939
        %vm941 = vcmp.eq.s32.totalorder %v940, 1
        %v942 = vsel %vm941, %v933, %v778
        %v943 = vsel %vm941, %v931, %v779
        %s944 = scalar_lea.vmem %s375, 16
        %945 = vst [vmem:[%s944] sm:$0xff] %v942
        %s946 = scalar_lea.vmem %s357, 96
        %v947 = vld [vmem:[%s946] sm:$0xff]
        %v948 = vld [vmem:[%s946 + $0x8] sm:$0xff]
        %v949 = vld [vmem:[%s946 + $0x10] sm:$0xff]
        %v950 = vld [vmem:[%s946 + $0x18] sm:$0xff]
        %951 = vmatpush.msra.mxu0 %v450
        %952 = vmatpush.msra.mxu0 %v446
        %953 = vmatpush.msra.mxu0 %v442
        %954 = vmatpush.msra.mxu0 %v438
        %955 = vmatpush.msra.mxu0 %v434
        %956 = vmatpush.msra.mxu0 %v430
        %957 = vmatpush.msra.mxu0 %v426
        %958 = vmatpush.msra.mxu0 %v422
        %959 = vmatpush.msra.mxu0 %v418
        %960 = vmatpush.msra.mxu0 %v414
        %961 = vmatpush.msra.mxu0 %v410
        %962 = vmatpush.msra.mxu0 %v406
        %963 = vmatpush.msra.mxu0 %v402
        %964 = vmatpush.msra.mxu0 %v398
        %965 = vmatpush.msra.mxu0 %v394
        %966 = vmatpush.msra.mxu0 %v390
        %967 = vmatmul.f32.gmra.mxu0 %v942
        %v968 = vpop.f32.mrf.mxu0
        %v969 = vadd.f32 0.0, %v968
        %970 = vdwg.mxu0
        %971 = vmatpush.msra.mxu0 %v451
        %972 = vmatpush.msra.mxu0 %v447
        %973 = vmatpush.msra.mxu0 %v443
        %974 = vmatpush.msra.mxu0 %v439
        %975 = vmatpush.msra.mxu0 %v435
        %976 = vmatpush.msra.mxu0 %v431
        %977 = vmatpush.msra.mxu0 %v427
        %978 = vmatpush.msra.mxu0 %v423
        %979 = vmatpush.msra.mxu0 %v419
        %980 = vmatpush.msra.mxu0 %v415
        %981 = vmatpush.msra.mxu0 %v411
        %982 = vmatpush.msra.mxu0 %v407
        %983 = vmatpush.msra.mxu0 %v403
        %984 = vmatpush.msra.mxu0 %v399
        %985 = vmatpush.msra.mxu0 %v395
        %986 = vmatpush.msra.mxu0 %v391
        %987 = vmatmul.f32.gmra.mxu0 %v942
        %v988 = vpop.f32.mrf.mxu0
        %v989 = vadd.f32 0.0, %v988
        %990 = vdwg.mxu0
        %991 = vmatpush.msra.mxu0 %v452
        %992 = vmatpush.msra.mxu0 %v448
        %993 = vmatpush.msra.mxu0 %v444
        %994 = vmatpush.msra.mxu0 %v440
        %995 = vmatpush.msra.mxu0 %v436
        %996 = vmatpush.msra.mxu0 %v432
        %997 = vmatpush.msra.mxu0 %v428
        %998 = vmatpush.msra.mxu0 %v424
        %999 = vmatpush.msra.mxu0 %v420
        %1000 = vmatpush.msra.mxu0 %v416
        %1001 = vmatpush.msra.mxu0 %v412
        %1002 = vmatpush.msra.mxu0 %v408
        %1003 = vmatpush.msra.mxu0 %v404
        %1004 = vmatpush.msra.mxu0 %v400
        %1005 = vmatpush.msra.mxu0 %v396
        %1006 = vmatpush.msra.mxu0 %v392
        %1007 = vmatmul.f32.gmra.mxu0 %v942
        %v1008 = vpop.f32.mrf.mxu0
        %v1009 = vadd.f32 0.0, %v1008
        %1010 = vdwg.mxu0
        %1011 = vmatpush.msra.mxu0 %v453
        %1012 = vmatpush.msra.mxu0 %v449
        %1013 = vmatpush.msra.mxu0 %v445
        %1014 = vmatpush.msra.mxu0 %v441
        %1015 = vmatpush.msra.mxu0 %v437
        %1016 = vmatpush.msra.mxu0 %v433
        %1017 = vmatpush.msra.mxu0 %v429
        %1018 = vmatpush.msra.mxu0 %v425
        %1019 = vmatpush.msra.mxu0 %v421
        %1020 = vmatpush.msra.mxu0 %v417
        %1021 = vmatpush.msra.mxu0 %v413
        %1022 = vmatpush.msra.mxu0 %v409
        %1023 = vmatpush.msra.mxu0 %v405
        %1024 = vmatpush.msra.mxu0 %v401
        %1025 = vmatpush.msra.mxu0 %v397
        %1026 = vmatpush.msra.mxu0 %v393
        %1027 = vmatmul.f32.gmra.mxu0 %v942
        %v1028 = vpop.f32.mrf.mxu0
        %v1029 = vadd.f32 0.0, %v1028
        %1030 = vdwg.mxu0
        %v1031 = vadd.f32 %v947, %v969
        %v1032 = vadd.f32 %v948, %v989
        %v1033 = vadd.f32 %v949, %v1009
        %v1034 = vadd.f32 %v950, %v1029
        %v1035 = vxor.u32 %v1031, 2147483648
        %v1036 = vmul.f32 %v1035, 1.442695
        %v1037 = vpow.pop %v1036
        %v1038 = vadd.f32 %v1037, 1.0
        %v1039 = vrcp.pop %v1038
        %v1040 = vmul.f32 %v1038, %v1039
        %v1041 = vsub.f32 1.0, %v1040
        %v1042 = vmul.f32 %v1039, %v1041
        %v1043 = vadd.f32 %v1039, %v1042
        %vm1044 = vweird.f32 %v1038
        %vm1045 = vweird.f32 %v1039
        %vm1046 = vmor %vm1044, %vm1045
        %v1047 = vsel %vm1046, %v1039, %v1043
        %v1048 = vand.u32 2147483647, %v1038
        %vm1049 = vcmp.eq.f32.partialorder %v1048, 8.507059e+37
        %v1050 = vand.u32 %v1038, 2147483648
        %v1051 = vor.u32 1.1754944e-38, %v1050
        %v1052 = vsel %vm1049, %v1051, %v1047
        %v1053 = vmul.f32 1.0, %v1052
        %v1054 = vxor.u32 %v1032, 2147483648
        %v1055 = vmul.f32 %v1054, 1.442695
        %v1056 = vpow.pop %v1055
        %v1057 = vadd.f32 %v1056, 1.0
        %v1058 = vrcp.pop %v1057
        %v1059 = vmul.f32 %v1057, %v1058
        %v1060 = vsub.f32 1.0, %v1059
        %v1061 = vmul.f32 %v1058, %v1060
        %v1062 = vadd.f32 %v1058, %v1061
        %vm1063 = vweird.f32 %v1057
        %vm1064 = vweird.f32 %v1058
        %vm1065 = vmor %vm1063, %vm1064
        %v1066 = vsel %vm1065, %v1058, %v1062
        %v1067 = vand.u32 2147483647, %v1057
        %vm1068 = vcmp.eq.f32.partialorder %v1067, 8.507059e+37
        %v1069 = vand.u32 %v1057, 2147483648
        %v1070 = vor.u32 1.1754944e-38, %v1069
        %v1071 = vsel %vm1068, %v1070, %v1066
        %v1072 = vmul.f32 1.0, %v1071
        %v1073 = vtanh.pop %v1033
        %v1074 = vxor.u32 %v1034, 2147483648
        %v1075 = vmul.f32 %v1074, 1.442695
        %v1076 = vpow.pop %v1075
        %v1077 = vadd.f32 %v1076, 1.0
        %v1078 = vrcp.pop %v1077
        %v1079 = vmul.f32 %v1077, %v1078
        %v1080 = vsub.f32 1.0, %v1079
        %v1081 = vmul.f32 %v1078, %v1080
        %v1082 = vadd.f32 %v1078, %v1081
        %vm1083 = vweird.f32 %v1077
        %vm1084 = vweird.f32 %v1078
        %vm1085 = vmor %vm1083, %vm1084
        %v1086 = vsel %vm1085, %v1078, %v1082
        %v1087 = vand.u32 2147483647, %v1077
        %vm1088 = vcmp.eq.f32.partialorder %v1087, 8.507059e+37
        %v1089 = vand.u32 %v1077, 2147483648
        %v1090 = vor.u32 1.1754944e-38, %v1089
        %v1091 = vsel %vm1088, %v1090, %v1086
        %v1092 = vmul.f32 1.0, %v1091
        %v1093 = vmul.f32 %v1072, %v943
        %v1094 = vmul.f32 %v1053, %v1073
        %v1095 = vadd.f32 %v1093, %v1094
        %v1096 = vtanh.pop %v1095
        %v1097 = vmul.f32 %v1092, %v1096
        %s1098 = sadd.s32 %s454, 3
        %v1099 = vstv %s1098
        %vm1100 = vcmp.lt.s32.totalorder %v1099, %v389
        %v1101 = vsel %vm1100, 1, 0
        %1102 = vset.pattern.permute.xlu0 0
        %1103 = vperm.xlu0 %1102, %v1101
        %v1104 = vpop.permute.xlu0 %1103
        %vm1105 = vcmp.eq.s32.totalorder %v1104, 1
        %v1106 = vsel %vm1105, %v1097, %v942
        %v1107 = vsel %vm1105, %v1095, %v943
        %s1108 = scalar_lea.vmem %s375, 24
        %1109 = vst [vmem:[%s1108] sm:$0xff] %v1106
        %s1110 = scalar_lea.vmem %s357, 128
        %v1111 = vld [vmem:[%s1110] sm:$0xff]
        %v1112 = vld [vmem:[%s1110 + $0x8] sm:$0xff]
        %v1113 = vld [vmem:[%s1110 + $0x10] sm:$0xff]
        %v1114 = vld [vmem:[%s1110 + $0x18] sm:$0xff]
        %1115 = vmatpush.msra.mxu0 %v450
        %1116 = vmatpush.msra.mxu0 %v446
        %1117 = vmatpush.msra.mxu0 %v442
        %1118 = vmatpush.msra.mxu0 %v438
        %1119 = vmatpush.msra.mxu0 %v434
        %1120 = vmatpush.msra.mxu0 %v430
        %1121 = vmatpush.msra.mxu0 %v426
        %1122 = vmatpush.msra.mxu0 %v422
        %1123 = vmatpush.msra.mxu0 %v418
        %1124 = vmatpush.msra.mxu0 %v414
        %1125 = vmatpush.msra.mxu0 %v410
        %1126 = vmatpush.msra.mxu0 %v406
        %1127 = vmatpush.msra.mxu0 %v402
        %1128 = vmatpush.msra.mxu0 %v398
        %1129 = vmatpush.msra.mxu0 %v394
        %1130 = vmatpush.msra.mxu0 %v390
        %1131 = vmatmul.f32.gmra.mxu0 %v1106
        %v1132 = vpop.f32.mrf.mxu0
        %v1133 = vadd.f32 0.0, %v1132
        %1134 = vdwg.mxu0
        %1135 = vmatpush.msra.mxu0 %v451
        %1136 = vmatpush.msra.mxu0 %v447
        %1137 = vmatpush.msra.mxu0 %v443
        %1138 = vmatpush.msra.mxu0 %v439
        %1139 = vmatpush.msra.mxu0 %v435
        %1140 = vmatpush.msra.mxu0 %v431
        %1141 = vmatpush.msra.mxu0 %v427
        %1142 = vmatpush.msra.mxu0 %v423
        %1143 = vmatpush.msra.mxu0 %v419
        %1144 = vmatpush.msra.mxu0 %v415
        %1145 = vmatpush.msra.mxu0 %v411
        %1146 = vmatpush.msra.mxu0 %v407
        %1147 = vmatpush.msra.mxu0 %v403
        %1148 = vmatpush.msra.mxu0 %v399
        %1149 = vmatpush.msra.mxu0 %v395
        %1150 = vmatpush.msra.mxu0 %v391
        %1151 = vmatmul.f32.gmra.mxu0 %v1106
        %v1152 = vpop.f32.mrf.mxu0
        %v1153 = vadd.f32 0.0, %v1152
        %1154 = vdwg.mxu0
        %1155 = vmatpush.msra.mxu0 %v452
        %1156 = vmatpush.msra.mxu0 %v448
        %1157 = vmatpush.msra.mxu0 %v444
        %1158 = vmatpush.msra.mxu0 %v440
        %1159 = vmatpush.msra.mxu0 %v436
        %1160 = vmatpush.msra.mxu0 %v432
        %1161 = vmatpush.msra.mxu0 %v428
        %1162 = vmatpush.msra.mxu0 %v424
        %1163 = vmatpush.msra.mxu0 %v420
        %1164 = vmatpush.msra.mxu0 %v416
        %1165 = vmatpush.msra.mxu0 %v412
        %1166 = vmatpush.msra.mxu0 %v408
        %1167 = vmatpush.msra.mxu0 %v404
        %1168 = vmatpush.msra.mxu0 %v400
        %1169 = vmatpush.msra.mxu0 %v396
        %1170 = vmatpush.msra.mxu0 %v392
        %1171 = vmatmul.f32.gmra.mxu0 %v1106
        %v1172 = vpop.f32.mrf.mxu0
        %v1173 = vadd.f32 0.0, %v1172
        %1174 = vdwg.mxu0
        %1175 = vmatpush.msra.mxu0 %v453
        %1176 = vmatpush.msra.mxu0 %v449
        %1177 = vmatpush.msra.mxu0 %v445
        %1178 = vmatpush.msra.mxu0 %v441
        %1179 = vmatpush.msra.mxu0 %v437
        %1180 = vmatpush.msra.mxu0 %v433
        %1181 = vmatpush.msra.mxu0 %v429
        %1182 = vmatpush.msra.mxu0 %v425
        %1183 = vmatpush.msra.mxu0 %v421
        %1184 = vmatpush.msra.mxu0 %v417
        %1185 = vmatpush.msra.mxu0 %v413
        %1186 = vmatpush.msra.mxu0 %v409
        %1187 = vmatpush.msra.mxu0 %v405
        %1188 = vmatpush.msra.mxu0 %v401
        %1189 = vmatpush.msra.mxu0 %v397
        %1190 = vmatpush.msra.mxu0 %v393
        %1191 = vmatmul.f32.gmra.mxu0 %v1106
        %v1192 = vpop.f32.mrf.mxu0
        %v1193 = vadd.f32 0.0, %v1192
        %1194 = vdwg.mxu0
        %v1195 = vadd.f32 %v1111, %v1133
        %v1196 = vadd.f32 %v1112, %v1153
        %v1197 = vadd.f32 %v1113, %v1173
        %v1198 = vadd.f32 %v1114, %v1193
        %v1199 = vxor.u32 %v1195, 2147483648
        %v1200 = vmul.f32 %v1199, 1.442695
        %v1201 = vpow.pop %v1200
        %v1202 = vadd.f32 %v1201, 1.0
        %v1203 = vrcp.pop %v1202
        %v1204 = vmul.f32 %v1202, %v1203
        %v1205 = vsub.f32 1.0, %v1204
        %v1206 = vmul.f32 %v1203, %v1205
        %v1207 = vadd.f32 %v1203, %v1206
        %vm1208 = vweird.f32 %v1202
        %vm1209 = vweird.f32 %v1203
        %vm1210 = vmor %vm1208, %vm1209
        %v1211 = vsel %vm1210, %v1203, %v1207
        %v1212 = vand.u32 2147483647, %v1202
        %vm1213 = vcmp.eq.f32.partialorder %v1212, 8.507059e+37
        %v1214 = vand.u32 %v1202, 2147483648
        %v1215 = vor.u32 1.1754944e-38, %v1214
        %v1216 = vsel %vm1213, %v1215, %v1211
        %v1217 = vmul.f32 1.0, %v1216
        %v1218 = vxor.u32 %v1196, 2147483648
        %v1219 = vmul.f32 %v1218, 1.442695
        %v1220 = vpow.pop %v1219
        %v1221 = vadd.f32 %v1220, 1.0
        %v1222 = vrcp.pop %v1221
        %v1223 = vmul.f32 %v1221, %v1222
        %v1224 = vsub.f32 1.0, %v1223
        %v1225 = vmul.f32 %v1222, %v1224
        %v1226 = vadd.f32 %v1222, %v1225
        %vm1227 = vweird.f32 %v1221
        %vm1228 = vweird.f32 %v1222
        %vm1229 = vmor %vm1227, %vm1228
        %v1230 = vsel %vm1229, %v1222, %v1226
        %v1231 = vand.u32 2147483647, %v1221
        %vm1232 = vcmp.eq.f32.partialorder %v1231, 8.507059e+37
        %v1233 = vand.u32 %v1221, 2147483648
        %v1234 = vor.u32 1.1754944e-38, %v1233
        %v1235 = vsel %vm1232, %v1234, %v1230
        %v1236 = vmul.f32 1.0, %v1235
        %v1237 = vtanh.pop %v1197
        %v1238 = vxor.u32 %v1198, 2147483648
        %v1239 = vmul.f32 %v1238, 1.442695
        %v1240 = vpow.pop %v1239
        %v1241 = vadd.f32 %v1240, 1.0
        %v1242 = vrcp.pop %v1241
        %v1243 = vmul.f32 %v1241, %v1242
        %v1244 = vsub.f32 1.0, %v1243
        %v1245 = vmul.f32 %v1242, %v1244
        %v1246 = vadd.f32 %v1242, %v1245
        %vm1247 = vweird.f32 %v1241
        %vm1248 = vweird.f32 %v1242
        %vm1249 = vmor %vm1247, %vm1248
        %v1250 = vsel %vm1249, %v1242, %v1246
        %v1251 = vand.u32 2147483647, %v1241
        %vm1252 = vcmp.eq.f32.partialorder %v1251, 8.507059e+37
        %v1253 = vand.u32 %v1241, 2147483648
        %v1254 = vor.u32 1.1754944e-38, %v1253
        %v1255 = vsel %vm1252, %v1254, %v1250
        %v1256 = vmul.f32 1.0, %v1255
        %v1257 = vmul.f32 %v1236, %v1107
        %v1258 = vmul.f32 %v1217, %v1237
        %v1259 = vadd.f32 %v1257, %v1258
        %v1260 = vtanh.pop %v1259
        %v1261 = vmul.f32 %v1256, %v1260
        %s1262 = sadd.s32 %s454, 4
        %v1263 = vstv %s1262
        %vm1264 = vcmp.lt.s32.totalorder %v1263, %v389
        %v1265 = vsel %vm1264, 1, 0
        %1266 = vset.pattern.permute.xlu0 0
        %1267 = vperm.xlu0 %1266, %v1265
        %v1268 = vpop.permute.xlu0 %1267
        %vm1269 = vcmp.eq.s32.totalorder %v1268, 1
        %v1270 = vsel %vm1269, %v1261, %v1106
        %v1271 = vsel %vm1269, %v1259, %v1107
        %s1272 = scalar_lea.vmem %s375, 32
        %1273 = vst [vmem:[%s1272] sm:$0xff] %v1270
        %s1274 = scalar_lea.vmem %s357, 160
        %v1275 = vld [vmem:[%s1274] sm:$0xff]
        %v1276 = vld [vmem:[%s1274 + $0x8] sm:$0xff]
        %v1277 = vld [vmem:[%s1274 + $0x10] sm:$0xff]
        %v1278 = vld [vmem:[%s1274 + $0x18] sm:$0xff]
        %1279 = vmatpush.msra.mxu0 %v450
        %1280 = vmatpush.msra.mxu0 %v446
        %1281 = vmatpush.msra.mxu0 %v442
        %1282 = vmatpush.msra.mxu0 %v438
        %1283 = vmatpush.msra.mxu0 %v434
        %1284 = vmatpush.msra.mxu0 %v430
        %1285 = vmatpush.msra.mxu0 %v426
        %1286 = vmatpush.msra.mxu0 %v422
        %1287 = vmatpush.msra.mxu0 %v418
        %1288 = vmatpush.msra.mxu0 %v414
        %1289 = vmatpush.msra.mxu0 %v410
        %1290 = vmatpush.msra.mxu0 %v406
        %1291 = vmatpush.msra.mxu0 %v402
        %1292 = vmatpush.msra.mxu0 %v398
        %1293 = vmatpush.msra.mxu0 %v394
        %1294 = vmatpush.msra.mxu0 %v390
        %1295 = vmatmul.f32.gmra.mxu0 %v1270
        %v1296 = vpop.f32.mrf.mxu0
        %v1297 = vadd.f32 0.0, %v1296
        %1298 = vdwg.mxu0
        %1299 = vmatpush.msra.mxu0 %v451
        %1300 = vmatpush.msra.mxu0 %v447
        %1301 = vmatpush.msra.mxu0 %v443
        %1302 = vmatpush.msra.mxu0 %v439
        %1303 = vmatpush.msra.mxu0 %v435
        %1304 = vmatpush.msra.mxu0 %v431
        %1305 = vmatpush.msra.mxu0 %v427
        %1306 = vmatpush.msra.mxu0 %v423
        %1307 = vmatpush.msra.mxu0 %v419
        %1308 = vmatpush.msra.mxu0 %v415
        %1309 = vmatpush.msra.mxu0 %v411
        %1310 = vmatpush.msra.mxu0 %v407
        %1311 = vmatpush.msra.mxu0 %v403
        %1312 = vmatpush.msra.mxu0 %v399
        %1313 = vmatpush.msra.mxu0 %v395
        %1314 = vmatpush.msra.mxu0 %v391
        %1315 = vmatmul.f32.gmra.mxu0 %v1270
        %v1316 = vpop.f32.mrf.mxu0
        %v1317 = vadd.f32 0.0, %v1316
        %1318 = vdwg.mxu0
        %1319 = vmatpush.msra.mxu0 %v452
        %1320 = vmatpush.msra.mxu0 %v448
        %1321 = vmatpush.msra.mxu0 %v444
        %1322 = vmatpush.msra.mxu0 %v440
        %1323 = vmatpush.msra.mxu0 %v436
        %1324 = vmatpush.msra.mxu0 %v432
        %1325 = vmatpush.msra.mxu0 %v428
        %1326 = vmatpush.msra.mxu0 %v424
        %1327 = vmatpush.msra.mxu0 %v420
        %1328 = vmatpush.msra.mxu0 %v416
        %1329 = vmatpush.msra.mxu0 %v412
        %1330 = vmatpush.msra.mxu0 %v408
        %1331 = vmatpush.msra.mxu0 %v404
        %1332 = vmatpush.msra.mxu0 %v400
        %1333 = vmatpush.msra.mxu0 %v396
        %1334 = vmatpush.msra.mxu0 %v392
        %1335 = vmatmul.f32.gmra.mxu0 %v1270
        %v1336 = vpop.f32.mrf.mxu0
        %v1337 = vadd.f32 0.0, %v1336
        %1338 = vdwg.mxu0
        %1339 = vmatpush.msra.mxu0 %v453
        %1340 = vmatpush.msra.mxu0 %v449
        %1341 = vmatpush.msra.mxu0 %v445
        %1342 = vmatpush.msra.mxu0 %v441
        %1343 = vmatpush.msra.mxu0 %v437
        %1344 = vmatpush.msra.mxu0 %v433
        %1345 = vmatpush.msra.mxu0 %v429
        %1346 = vmatpush.msra.mxu0 %v425
        %1347 = vmatpush.msra.mxu0 %v421
        %1348 = vmatpush.msra.mxu0 %v417
        %1349 = vmatpush.msra.mxu0 %v413
        %1350 = vmatpush.msra.mxu0 %v409
        %1351 = vmatpush.msra.mxu0 %v405
        %1352 = vmatpush.msra.mxu0 %v401
        %1353 = vmatpush.msra.mxu0 %v397
        %1354 = vmatpush.msra.mxu0 %v393
        %1355 = vmatmul.f32.gmra.mxu0 %v1270
        %v1356 = vpop.f32.mrf.mxu0
        %v1357 = vadd.f32 0.0, %v1356
        %1358 = vdwg.mxu0
        %v1359 = vadd.f32 %v1275, %v1297
        %v1360 = vadd.f32 %v1276, %v1317
        %v1361 = vadd.f32 %v1277, %v1337
        %v1362 = vadd.f32 %v1278, %v1357
        %v1363 = vxor.u32 %v1359, 2147483648
        %v1364 = vmul.f32 %v1363, 1.442695
        %v1365 = vpow.pop %v1364
        %v1366 = vadd.f32 %v1365, 1.0
        %v1367 = vrcp.pop %v1366
        %v1368 = vmul.f32 %v1366, %v1367
        %v1369 = vsub.f32 1.0, %v1368
        %v1370 = vmul.f32 %v1367, %v1369
        %v1371 = vadd.f32 %v1367, %v1370
        %vm1372 = vweird.f32 %v1366
        %vm1373 = vweird.f32 %v1367
        %vm1374 = vmor %vm1372, %vm1373
        %v1375 = vsel %vm1374, %v1367, %v1371
        %v1376 = vand.u32 2147483647, %v1366
        %vm1377 = vcmp.eq.f32.partialorder %v1376, 8.507059e+37
        %v1378 = vand.u32 %v1366, 2147483648
        %v1379 = vor.u32 1.1754944e-38, %v1378
        %v1380 = vsel %vm1377, %v1379, %v1375
        %v1381 = vmul.f32 1.0, %v1380
        %v1382 = vxor.u32 %v1360, 2147483648
        %v1383 = vmul.f32 %v1382, 1.442695
        %v1384 = vpow.pop %v1383
        %v1385 = vadd.f32 %v1384, 1.0
        %v1386 = vrcp.pop %v1385
        %v1387 = vmul.f32 %v1385, %v1386
        %v1388 = vsub.f32 1.0, %v1387
        %v1389 = vmul.f32 %v1386, %v1388
        %v1390 = vadd.f32 %v1386, %v1389
        %vm1391 = vweird.f32 %v1385
        %vm1392 = vweird.f32 %v1386
        %vm1393 = vmor %vm1391, %vm1392
        %v1394 = vsel %vm1393, %v1386, %v1390
        %v1395 = vand.u32 2147483647, %v1385
        %vm1396 = vcmp.eq.f32.partialorder %v1395, 8.507059e+37
        %v1397 = vand.u32 %v1385, 2147483648
        %v1398 = vor.u32 1.1754944e-38, %v1397
        %v1399 = vsel %vm1396, %v1398, %v1394
        %v1400 = vmul.f32 1.0, %v1399
        %v1401 = vtanh.pop %v1361
        %v1402 = vxor.u32 %v1362, 2147483648
        %v1403 = vmul.f32 %v1402, 1.442695
        %v1404 = vpow.pop %v1403
        %v1405 = vadd.f32 %v1404, 1.0
        %v1406 = vrcp.pop %v1405
        %v1407 = vmul.f32 %v1405, %v1406
        %v1408 = vsub.f32 1.0, %v1407
        %v1409 = vmul.f32 %v1406, %v1408
        %v1410 = vadd.f32 %v1406, %v1409
        %vm1411 = vweird.f32 %v1405
        %vm1412 = vweird.f32 %v1406
        %vm1413 = vmor %vm1411, %vm1412
        %v1414 = vsel %vm1413, %v1406, %v1410
        %v1415 = vand.u32 2147483647, %v1405
        %vm1416 = vcmp.eq.f32.partialorder %v1415, 8.507059e+37
        %v1417 = vand.u32 %v1405, 2147483648
        %v1418 = vor.u32 1.1754944e-38, %v1417
        %v1419 = vsel %vm1416, %v1418, %v1414
        %v1420 = vmul.f32 1.0, %v1419
        %v1421 = vmul.f32 %v1400, %v1271
        %v1422 = vmul.f32 %v1381, %v1401
        %v1423 = vadd.f32 %v1421, %v1422
        %v1424 = vtanh.pop %v1423
        %v1425 = vmul.f32 %v1420, %v1424
        %s1426 = sadd.s32 %s454, 5
        %v1427 = vstv %s1426
        %vm1428 = vcmp.lt.s32.totalorder %v1427, %v389
        %v1429 = vsel %vm1428, 1, 0
        %1430 = vset.pattern.permute.xlu0 0
        %1431 = vperm.xlu0 %1430, %v1429
        %v1432 = vpop.permute.xlu0 %1431
        %vm1433 = vcmp.eq.s32.totalorder %v1432, 1
        %v1434 = vsel %vm1433, %v1425, %v1270
        %v1435 = vsel %vm1433, %v1423, %v1271
        %s1436 = scalar_lea.vmem %s375, 40
        %1437 = vst [vmem:[%s1436] sm:$0xff] %v1434
        %s1438 = scalar_lea.vmem %s357, 192
        %v1439 = vld [vmem:[%s1438] sm:$0xff]
        %v1440 = vld [vmem:[%s1438 + $0x8] sm:$0xff]
        %v1441 = vld [vmem:[%s1438 + $0x10] sm:$0xff]
        %v1442 = vld [vmem:[%s1438 + $0x18] sm:$0xff]
        %1443 = vmatpush.msra.mxu0 %v450
        %1444 = vmatpush.msra.mxu0 %v446
        %1445 = vmatpush.msra.mxu0 %v442
        %1446 = vmatpush.msra.mxu0 %v438
        %1447 = vmatpush.msra.mxu0 %v434
        %1448 = vmatpush.msra.mxu0 %v430
        %1449 = vmatpush.msra.mxu0 %v426
        %1450 = vmatpush.msra.mxu0 %v422
        %1451 = vmatpush.msra.mxu0 %v418
        %1452 = vmatpush.msra.mxu0 %v414
        %1453 = vmatpush.msra.mxu0 %v410
        %1454 = vmatpush.msra.mxu0 %v406
        %1455 = vmatpush.msra.mxu0 %v402
        %1456 = vmatpush.msra.mxu0 %v398
        %1457 = vmatpush.msra.mxu0 %v394
        %1458 = vmatpush.msra.mxu0 %v390
        %1459 = vmatmul.f32.gmra.mxu0 %v1434
        %v1460 = vpop.f32.mrf.mxu0
        %v1461 = vadd.f32 0.0, %v1460
        %1462 = vdwg.mxu0
        %1463 = vmatpush.msra.mxu0 %v451
        %1464 = vmatpush.msra.mxu0 %v447
        %1465 = vmatpush.msra.mxu0 %v443
        %1466 = vmatpush.msra.mxu0 %v439
        %1467 = vmatpush.msra.mxu0 %v435
        %1468 = vmatpush.msra.mxu0 %v431
        %1469 = vmatpush.msra.mxu0 %v427
        %1470 = vmatpush.msra.mxu0 %v423
        %1471 = vmatpush.msra.mxu0 %v419
        %1472 = vmatpush.msra.mxu0 %v415
        %1473 = vmatpush.msra.mxu0 %v411
        %1474 = vmatpush.msra.mxu0 %v407
        %1475 = vmatpush.msra.mxu0 %v403
        %1476 = vmatpush.msra.mxu0 %v399
        %1477 = vmatpush.msra.mxu0 %v395
        %1478 = vmatpush.msra.mxu0 %v391
        %1479 = vmatmul.f32.gmra.mxu0 %v1434
        %v1480 = vpop.f32.mrf.mxu0
        %v1481 = vadd.f32 0.0, %v1480
        %1482 = vdwg.mxu0
        %1483 = vmatpush.msra.mxu0 %v452
        %1484 = vmatpush.msra.mxu0 %v448
        %1485 = vmatpush.msra.mxu0 %v444
        %1486 = vmatpush.msra.mxu0 %v440
        %1487 = vmatpush.msra.mxu0 %v436
        %1488 = vmatpush.msra.mxu0 %v432
        %1489 = vmatpush.msra.mxu0 %v428
        %1490 = vmatpush.msra.mxu0 %v424
        %1491 = vmatpush.msra.mxu0 %v420
        %1492 = vmatpush.msra.mxu0 %v416
        %1493 = vmatpush.msra.mxu0 %v412
        %1494 = vmatpush.msra.mxu0 %v408
        %1495 = vmatpush.msra.mxu0 %v404
        %1496 = vmatpush.msra.mxu0 %v400
        %1497 = vmatpush.msra.mxu0 %v396
        %1498 = vmatpush.msra.mxu0 %v392
        %1499 = vmatmul.f32.gmra.mxu0 %v1434
        %v1500 = vpop.f32.mrf.mxu0
        %v1501 = vadd.f32 0.0, %v1500
        %1502 = vdwg.mxu0
        %1503 = vmatpush.msra.mxu0 %v453
        %1504 = vmatpush.msra.mxu0 %v449
        %1505 = vmatpush.msra.mxu0 %v445
        %1506 = vmatpush.msra.mxu0 %v441
        %1507 = vmatpush.msra.mxu0 %v437
        %1508 = vmatpush.msra.mxu0 %v433
        %1509 = vmatpush.msra.mxu0 %v429
        %1510 = vmatpush.msra.mxu0 %v425
        %1511 = vmatpush.msra.mxu0 %v421
        %1512 = vmatpush.msra.mxu0 %v417
        %1513 = vmatpush.msra.mxu0 %v413
        %1514 = vmatpush.msra.mxu0 %v409
        %1515 = vmatpush.msra.mxu0 %v405
        %1516 = vmatpush.msra.mxu0 %v401
        %1517 = vmatpush.msra.mxu0 %v397
        %1518 = vmatpush.msra.mxu0 %v393
        %1519 = vmatmul.f32.gmra.mxu0 %v1434
        %v1520 = vpop.f32.mrf.mxu0
        %v1521 = vadd.f32 0.0, %v1520
        %1522 = vdwg.mxu0
        %v1523 = vadd.f32 %v1439, %v1461
        %v1524 = vadd.f32 %v1440, %v1481
        %v1525 = vadd.f32 %v1441, %v1501
        %v1526 = vadd.f32 %v1442, %v1521
        %v1527 = vxor.u32 %v1523, 2147483648
        %v1528 = vmul.f32 %v1527, 1.442695
        %v1529 = vpow.pop %v1528
        %v1530 = vadd.f32 %v1529, 1.0
        %v1531 = vrcp.pop %v1530
        %v1532 = vmul.f32 %v1530, %v1531
        %v1533 = vsub.f32 1.0, %v1532
        %v1534 = vmul.f32 %v1531, %v1533
        %v1535 = vadd.f32 %v1531, %v1534
        %vm1536 = vweird.f32 %v1530
        %vm1537 = vweird.f32 %v1531
        %vm1538 = vmor %vm1536, %vm1537
        %v1539 = vsel %vm1538, %v1531, %v1535
        %v1540 = vand.u32 2147483647, %v1530
        %vm1541 = vcmp.eq.f32.partialorder %v1540, 8.507059e+37
        %v1542 = vand.u32 %v1530, 2147483648
        %v1543 = vor.u32 1.1754944e-38, %v1542
        %v1544 = vsel %vm1541, %v1543, %v1539
        %v1545 = vmul.f32 1.0, %v1544
        %v1546 = vxor.u32 %v1524, 2147483648
        %v1547 = vmul.f32 %v1546, 1.442695
        %v1548 = vpow.pop %v1547
        %v1549 = vadd.f32 %v1548, 1.0
        %v1550 = vrcp.pop %v1549
        %v1551 = vmul.f32 %v1549, %v1550
        %v1552 = vsub.f32 1.0, %v1551
        %v1553 = vmul.f32 %v1550, %v1552
        %v1554 = vadd.f32 %v1550, %v1553
        %vm1555 = vweird.f32 %v1549
        %vm1556 = vweird.f32 %v1550
        %vm1557 = vmor %vm1555, %vm1556
        %v1558 = vsel %vm1557, %v1550, %v1554
        %v1559 = vand.u32 2147483647, %v1549
        %vm1560 = vcmp.eq.f32.partialorder %v1559, 8.507059e+37
        %v1561 = vand.u32 %v1549, 2147483648
        %v1562 = vor.u32 1.1754944e-38, %v1561
        %v1563 = vsel %vm1560, %v1562, %v1558
        %v1564 = vmul.f32 1.0, %v1563
        %v1565 = vtanh.pop %v1525
        %v1566 = vxor.u32 %v1526, 2147483648
        %v1567 = vmul.f32 %v1566, 1.442695
        %v1568 = vpow.pop %v1567
        %v1569 = vadd.f32 %v1568, 1.0
        %v1570 = vrcp.pop %v1569
        %v1571 = vmul.f32 %v1569, %v1570
        %v1572 = vsub.f32 1.0, %v1571
        %v1573 = vmul.f32 %v1570, %v1572
        %v1574 = vadd.f32 %v1570, %v1573
        %vm1575 = vweird.f32 %v1569
        %vm1576 = vweird.f32 %v1570
        %vm1577 = vmor %vm1575, %vm1576
        %v1578 = vsel %vm1577, %v1570, %v1574
        %v1579 = vand.u32 2147483647, %v1569
        %vm1580 = vcmp.eq.f32.partialorder %v1579, 8.507059e+37
        %v1581 = vand.u32 %v1569, 2147483648
        %v1582 = vor.u32 1.1754944e-38, %v1581
        %v1583 = vsel %vm1580, %v1582, %v1578
        %v1584 = vmul.f32 1.0, %v1583
        %v1585 = vmul.f32 %v1564, %v1435
        %v1586 = vmul.f32 %v1545, %v1565
        %v1587 = vadd.f32 %v1585, %v1586
        %v1588 = vtanh.pop %v1587
        %v1589 = vmul.f32 %v1584, %v1588
        %s1590 = sadd.s32 %s454, 6
        %v1591 = vstv %s1590
        %vm1592 = vcmp.lt.s32.totalorder %v1591, %v389
        %v1593 = vsel %vm1592, 1, 0
        %1594 = vset.pattern.permute.xlu0 0
        %1595 = vperm.xlu0 %1594, %v1593
        %v1596 = vpop.permute.xlu0 %1595
        %vm1597 = vcmp.eq.s32.totalorder %v1596, 1
        %v1598 = vsel %vm1597, %v1589, %v1434
        %v1599 = vsel %vm1597, %v1587, %v1435
        %s1600 = scalar_lea.vmem %s375, 48
        %1601 = vst [vmem:[%s1600] sm:$0xff] %v1598
        %s1602 = scalar_lea.vmem %s357, 224
        %v1603 = vld [vmem:[%s1602] sm:$0xff]
        %v1604 = vld [vmem:[%s1602 + $0x8] sm:$0xff]
        %v1605 = vld [vmem:[%s1602 + $0x10] sm:$0xff]
        %v1606 = vld [vmem:[%s1602 + $0x18] sm:$0xff]
        %1607 = vmatpush.msra.mxu0 %v450
        %1608 = vmatpush.msra.mxu0 %v446
        %1609 = vmatpush.msra.mxu0 %v442
        %1610 = vmatpush.msra.mxu0 %v438
        %1611 = vmatpush.msra.mxu0 %v434
        %1612 = vmatpush.msra.mxu0 %v430
        %1613 = vmatpush.msra.mxu0 %v426
        %1614 = vmatpush.msra.mxu0 %v422
        %1615 = vmatpush.msra.mxu0 %v418
        %1616 = vmatpush.msra.mxu0 %v414
        %1617 = vmatpush.msra.mxu0 %v410
        %1618 = vmatpush.msra.mxu0 %v406
        %1619 = vmatpush.msra.mxu0 %v402
        %1620 = vmatpush.msra.mxu0 %v398
        %1621 = vmatpush.msra.mxu0 %v394
        %1622 = vmatpush.msra.mxu0 %v390
        %1623 = vmatmul.f32.gmra.mxu0 %v1598
        %v1624 = vpop.f32.mrf.mxu0
        %v1625 = vadd.f32 0.0, %v1624
        %1626 = vdwg.mxu0
        %1627 = vmatpush.msra.mxu0 %v451
        %1628 = vmatpush.msra.mxu0 %v447
        %1629 = vmatpush.msra.mxu0 %v443
        %1630 = vmatpush.msra.mxu0 %v439
        %1631 = vmatpush.msra.mxu0 %v435
        %1632 = vmatpush.msra.mxu0 %v431
        %1633 = vmatpush.msra.mxu0 %v427
        %1634 = vmatpush.msra.mxu0 %v423
        %1635 = vmatpush.msra.mxu0 %v419
        %1636 = vmatpush.msra.mxu0 %v415
        %1637 = vmatpush.msra.mxu0 %v411
        %1638 = vmatpush.msra.mxu0 %v407
        %1639 = vmatpush.msra.mxu0 %v403
        %1640 = vmatpush.msra.mxu0 %v399
        %1641 = vmatpush.msra.mxu0 %v395
        %1642 = vmatpush.msra.mxu0 %v391
        %1643 = vmatmul.f32.gmra.mxu0 %v1598
        %v1644 = vpop.f32.mrf.mxu0
        %v1645 = vadd.f32 0.0, %v1644
        %1646 = vdwg.mxu0
        %1647 = vmatpush.msra.mxu0 %v452
        %1648 = vmatpush.msra.mxu0 %v448
        %1649 = vmatpush.msra.mxu0 %v444
        %1650 = vmatpush.msra.mxu0 %v440
        %1651 = vmatpush.msra.mxu0 %v436
        %1652 = vmatpush.msra.mxu0 %v432
        %1653 = vmatpush.msra.mxu0 %v428
        %1654 = vmatpush.msra.mxu0 %v424
        %1655 = vmatpush.msra.mxu0 %v420
        %1656 = vmatpush.msra.mxu0 %v416
        %1657 = vmatpush.msra.mxu0 %v412
        %1658 = vmatpush.msra.mxu0 %v408
        %1659 = vmatpush.msra.mxu0 %v404
        %1660 = vmatpush.msra.mxu0 %v400
        %1661 = vmatpush.msra.mxu0 %v396
        %1662 = vmatpush.msra.mxu0 %v392
        %1663 = vmatmul.f32.gmra.mxu0 %v1598
        %v1664 = vpop.f32.mrf.mxu0
        %v1665 = vadd.f32 0.0, %v1664
        %1666 = vdwg.mxu0
        %1667 = vmatpush.msra.mxu0 %v453
        %1668 = vmatpush.msra.mxu0 %v449
        %1669 = vmatpush.msra.mxu0 %v445
        %1670 = vmatpush.msra.mxu0 %v441
        %1671 = vmatpush.msra.mxu0 %v437
        %1672 = vmatpush.msra.mxu0 %v433
        %1673 = vmatpush.msra.mxu0 %v429
        %1674 = vmatpush.msra.mxu0 %v425
        %1675 = vmatpush.msra.mxu0 %v421
        %1676 = vmatpush.msra.mxu0 %v417
        %1677 = vmatpush.msra.mxu0 %v413
        %1678 = vmatpush.msra.mxu0 %v409
        %1679 = vmatpush.msra.mxu0 %v405
        %1680 = vmatpush.msra.mxu0 %v401
        %1681 = vmatpush.msra.mxu0 %v397
        %1682 = vmatpush.msra.mxu0 %v393
        %1683 = vmatmul.f32.gmra.mxu0 %v1598
        %v1684 = vpop.f32.mrf.mxu0
        %v1685 = vadd.f32 0.0, %v1684
        %1686 = vdwg.mxu0
        %v1687 = vadd.f32 %v1603, %v1625
        %v1688 = vadd.f32 %v1604, %v1645
        %v1689 = vadd.f32 %v1605, %v1665
        %v1690 = vadd.f32 %v1606, %v1685
        %v1691 = vxor.u32 %v1687, 2147483648
        %v1692 = vmul.f32 %v1691, 1.442695
        %v1693 = vpow.pop %v1692
        %v1694 = vadd.f32 %v1693, 1.0
        %v1695 = vrcp.pop %v1694
        %v1696 = vmul.f32 %v1694, %v1695
        %v1697 = vsub.f32 1.0, %v1696
        %v1698 = vmul.f32 %v1695, %v1697
        %v1699 = vadd.f32 %v1695, %v1698
        %vm1700 = vweird.f32 %v1694
        %vm1701 = vweird.f32 %v1695
        %vm1702 = vmor %vm1700, %vm1701
        %v1703 = vsel %vm1702, %v1695, %v1699
        %v1704 = vand.u32 2147483647, %v1694
        %vm1705 = vcmp.eq.f32.partialorder %v1704, 8.507059e+37
        %v1706 = vand.u32 %v1694, 2147483648
        %v1707 = vor.u32 1.1754944e-38, %v1706
        %v1708 = vsel %vm1705, %v1707, %v1703
        %v1709 = vmul.f32 1.0, %v1708
        %v1710 = vxor.u32 %v1688, 2147483648
        %v1711 = vmul.f32 %v1710, 1.442695
        %v1712 = vpow.pop %v1711
        %v1713 = vadd.f32 %v1712, 1.0
        %v1714 = vrcp.pop %v1713
        %v1715 = vmul.f32 %v1713, %v1714
        %v1716 = vsub.f32 1.0, %v1715
        %v1717 = vmul.f32 %v1714, %v1716
        %v1718 = vadd.f32 %v1714, %v1717
        %vm1719 = vweird.f32 %v1713
        %vm1720 = vweird.f32 %v1714
        %vm1721 = vmor %vm1719, %vm1720
        %v1722 = vsel %vm1721, %v1714, %v1718
        %v1723 = vand.u32 2147483647, %v1713
        %vm1724 = vcmp.eq.f32.partialorder %v1723, 8.507059e+37
        %v1725 = vand.u32 %v1713, 2147483648
        %v1726 = vor.u32 1.1754944e-38, %v1725
        %v1727 = vsel %vm1724, %v1726, %v1722
        %v1728 = vmul.f32 1.0, %v1727
        %v1729 = vtanh.pop %v1689
        %v1730 = vxor.u32 %v1690, 2147483648
        %v1731 = vmul.f32 %v1730, 1.442695
        %v1732 = vpow.pop %v1731
        %v1733 = vadd.f32 %v1732, 1.0
        %v1734 = vrcp.pop %v1733
        %v1735 = vmul.f32 %v1733, %v1734
        %v1736 = vsub.f32 1.0, %v1735
        %v1737 = vmul.f32 %v1734, %v1736
        %v1738 = vadd.f32 %v1734, %v1737
        %vm1739 = vweird.f32 %v1733
        %vm1740 = vweird.f32 %v1734
        %vm1741 = vmor %vm1739, %vm1740
        %v1742 = vsel %vm1741, %v1734, %v1738
        %v1743 = vand.u32 2147483647, %v1733
        %vm1744 = vcmp.eq.f32.partialorder %v1743, 8.507059e+37
        %v1745 = vand.u32 %v1733, 2147483648
        %v1746 = vor.u32 1.1754944e-38, %v1745
        %v1747 = vsel %vm1744, %v1746, %v1742
        %v1748 = vmul.f32 1.0, %v1747
        %v1749 = vmul.f32 %v1728, %v1599
        %v1750 = vmul.f32 %v1709, %v1729
        %v1751 = vadd.f32 %v1749, %v1750
        %v1752 = vtanh.pop %v1751
        %v1753 = vmul.f32 %v1748, %v1752
        %s1754 = sadd.s32 %s454, 7
        %v1755 = vstv %s1754
        %vm1756 = vcmp.lt.s32.totalorder %v1755, %v389
        %v1757 = vsel %vm1756, 1, 0
        %1758 = vset.pattern.permute.xlu0 0
        %1759 = vperm.xlu0 %1758, %v1757
        %v1760 = vpop.permute.xlu0 %1759
        %vm1761 = vcmp.eq.s32.totalorder %v1760, 1
        %v1762 = vsel %vm1761, %v1753, %v1598
        %v1763 = vsel %vm1761, %v1751, %v1599
        %s1764 = scalar_lea.vmem %s375, 56
        %1765 = vst [vmem:[%s1764] sm:$0xff] %v1762
        %1766 = vst [vmem:[#allocation2] sm:$0xff] %v1762
        %1767 = vst [vmem:[#allocation3] sm:$0xff] %v1763
        // Predicated region
        $region49: #{encoder_forward.2} parent=39 // pred_check
          %p1768 = pneg %p381
        $region50: #{encoder_forward.2} parent=39 // pred_check_branch
          %1770 = sbr.rel (%p1768) target = $region52
        $region51: #{encoder_forward.2} parent=39 // pred_region
          %1771 = vst [vmem:[%s380] sm:$0xff] %v1762
        $region52: #{encoder_forward.2} parent=39 // pred_fallthru
          _
        %s1772 = smul.u32 8, %s26
        %p1773 = scmp.lt.s32.totalorder %s25, 1
        %s1774 = scalar_select %p1773, %s25, 1
        %p1775 = scmp.lt.s32.totalorder %s1772, 7
        %s1776 = scalar_select %p1775, %s1772, 7
        %s1777 = smul.addr %s1774, 8
        %s1778 = sadd.s32 %s1776, %s1777
        %s1779 = smul.addr %s1778, 8
        %s1780 = scalar_lea.vmem %s5, %s1779
        %p1781 = scmp.lt.s32.totalorder %s25, 1
        %s1782 = scalar_select %p1781, %s25, 1
        %s1783 = smul.addr %s1782, 8
        %s1784 = scalar_lea.vmem %s6, %s1783
        // Predicated region
        $region53: #{encoder_forward.2} parent=39 // pred_check
          %p1785 = pneg %p180
        $region54: #{encoder_forward.2} parent=39 // pred_check_branch
          %1787 = sbr.rel (%p1785) target = $region56
        $region55: #{encoder_forward.2} parent=39 // pred_region
          %s1788 = smul.u32 8, %s26
        $region56: #{encoder_forward.2} parent=39 // pred_fallthru
          _
        // Predicated region
        $region57: #{encoder_forward.2} parent=39 // pred_check
          %p1789 = pneg %p206
        $region58: #{encoder_forward.2} parent=39 // pred_check_branch
          %1791 = sbr.rel (%p1789) target = $region60
        $region59: #{encoder_forward.2} parent=39 // pred_region
          _
        $region60: #{encoder_forward.2} parent=39 // pred_fallthru
          _
      $region40: #{encoder_forward.2} parent=5 // pred_fallthru
        _
      %p1792 = scmp.le.s32.totalorder 2, %s16
      // Predicated region
      $region61: #{encoder_forward.2} parent=5 // pred_check
        %p1793 = pneg %p1792
      $region62: #{encoder_forward.2} parent=5 // pred_check_branch
        %1795 = sbr.rel (%p1793) target = $region64
      $region63: #{encoder_forward.2} parent=5 // pred_region
        %s1796 = ssub.s32 %s16, 2
        // Predicated region
        $region65: #{encoder_forward.2} parent=63 // pred_check
          %p1797 = pneg %p186
        $region66: #{encoder_forward.2} parent=63 // pred_check_branch
          %1799 = sbr.rel (%p1797) target = $region68
        $region67: #{encoder_forward.2} parent=63 // pred_region
          %s1800 = smul.u32 8, %s28
          %p1801 = scmp.lt.s32.totalorder %s27, 1
          %s1802 = scalar_select %p1801, %s27, 1
          %p1803 = scmp.lt.s32.totalorder %s1800, 7
          %s1804 = scalar_select %p1803, %s1800, 7
          %s1805 = smul.addr %s1802, 8
          %s1806 = sadd.s32 %s1804, %s1805
          %s1807 = smul.addr %s1806, 8
          %s1808 = scalar_lea.vmem %s5, %s1807
        $region68: #{encoder_forward.2} parent=63 // pred_fallthru
          _
        // Predicated region
        $region69: #{encoder_forward.2} parent=63 // pred_check
          %p1809 = pneg %p212
        $region70: #{encoder_forward.2} parent=63 // pred_check_branch
          %1811 = sbr.rel (%p1809) target = $region72
        $region71: #{encoder_forward.2} parent=63 // pred_region
          %p1812 = scmp.lt.s32.totalorder %s27, 1
          %s1813 = scalar_select %p1812, %s27, 1
          %s1814 = smul.addr %s1813, 8
          %s1815 = scalar_lea.vmem %s6, %s1814
        $region72: #{encoder_forward.2} parent=63 // pred_fallthru
          _
      $region64: #{encoder_forward.2} parent=5 // pred_fallthru
        _
    $region6: #{encoder_forward.2} parent=1 // loop_footer
      %s20 = sadd.s32 1, %s16
    $region7: #{encoder_forward.2} parent=1 // loop_footer_branch
      %15 = sbr.rel target = $region3
    $region8: #{encoder_forward.2} parent=1 // loop_exit
      _
    %1816 = vsyncpa [#allocation5], 1
    %s1817 = scalar_lea.sflag [#allocation5], 1
    %1818 = vsyncpa %s1817, 1

</llo_original>
